<compile_context>
chip_gen: v7x
topology: tpu7x:2x2x1
jax: 0.10.0
libtpu: 0.0.40
codegen_flags: <defaults>
</compile_context>

<pallas_src>
import jax
import jax.numpy as jnp
from jax import lax
from jax.experimental import pallas as pl
from jax.experimental.pallas import tpu as pltpu


def _dsblock_kernel(xm_ref, xh_ref, w_ref, b_ref, out_ref, hmax_scr):
    # Block shapes (per grid step = one batch element x one row tile):
    #   xm_ref   : (1, TH, Ws, 4*Cin)   space-to-depth input rows of this tile
    #   xh_ref   : (1, 1,  Ws, 4*Cin)   halo row (row TH of this tile)
    #   w_ref    : (2, 2, 4*Cin, Cout)  zero-padded super-pixel weights
    #   b_ref    : (1, Cout)
    #   out_ref  : (1, TH//2, Wo2, Cout)
    #   hmax_scr : (1, Wout, Cout) f32  row-pooled scratch (one output row pair)
    _, TH, Ws, _ = xm_ref.shape
    Cout = w_ref.shape[-1]
    Wout = Ws - 1
    Wo2 = Wout // 2
    n_pairs = TH // 2

    # Hoisted: weights + broadcast bias (loaded / broadcast once per grid step).
    w00 = w_ref[0, 0]
    w01 = w_ref[0, 1]
    w10 = w_ref[1, 0]
    w11 = w_ref[1, 1]
    bias = jnp.broadcast_to(b_ref[...].astype(jnp.float32), (Wout, Cout))

    for p in range(n_pairs):                                   # static unroll
        # conv output rows 2p and 2p+1 need space-to-depth rows 2p, 2p+1, 2p+2
        lo0a = xm_ref[0, 2 * p,     0:Wout, :]                 # (Wout, 4*Cin)
        lo0b = xm_ref[0, 2 * p,     1:Ws,   :]
        lo1a = xm_ref[0, 2 * p + 1, 0:Wout, :]
        lo1b = xm_ref[0, 2 * p + 1, 1:Ws,   :]
        if 2 * p + 2 < TH:
            lo2a = xm_ref[0, 2 * p + 2, 0:Wout, :]
            lo2b = xm_ref[0, 2 * p + 2, 1:Ws,   :]
        else:                                                  # last pair: use halo row
            lo2a = xh_ref[0, 0, 0:Wout, :]
            lo2b = xh_ref[0, 0, 1:Ws,   :]

        acc_a = (bias
                 + jnp.dot(lo0a, w00, preferred_element_type=jnp.float32)
                 + jnp.dot(lo0b, w01, preferred_element_type=jnp.float32)
                 + jnp.dot(lo1a, w10, preferred_element_type=jnp.float32)
                 + jnp.dot(lo1b, w11, preferred_element_type=jnp.float32))
        acc_b = (bias
                 + jnp.dot(lo1a, w00, preferred_element_type=jnp.float32)
                 + jnp.dot(lo1b, w01, preferred_element_type=jnp.float32)
                 + jnp.dot(lo2a, w10, preferred_element_type=jnp.float32)
                 + jnp.dot(lo2b, w11, preferred_element_type=jnp.float32))

        # Fused 2x2 max pool: pool the two conv rows, then the column pairs.
        hmax_scr[0] = jnp.maximum(acc_a, acc_b)                # (Wout, Cout)
        pooled = jnp.maximum(hmax_scr[:, pl.ds(0, Wo2, 2), :],
                             hmax_scr[:, pl.ds(1, Wo2, 2), :])  # (1, Wo2, Cout)
        out_ref[0, p] = pooled[0].astype(out_ref.dtype)


@jax.jit
def downsampling_block(x, weight, bias):
    """x: (N, Cin, H, W) NCHW; weight: (Cout, Cin, 3, 3) OIHW; bias: (Cout,)."""
    N, Cin, H, W = x.shape
    Cout = weight.shape[0]
    assert H % 4 == 0 and W % 4 == 0, "H, W must be divisible by 4 for conv+pool"
    Hout, Wout = H // 2, W // 2          # conv out (k=3, s=2, p=1)
    Ho2, Wo2 = Hout // 2, Wout // 2      # after 2x2 max pool
    Hs, Ws = Hout + 1, Wout + 1
    C4 = 4 * Cin

    # --- glue: NCHW -> padded NHWC -> 2x2 space-to-depth (single fused input rewrite) ---
    x_nhwc = jnp.transpose(x, (0, 2, 3, 1))
    xp = jnp.pad(x_nhwc, ((0, 0), (1, 1), (1, 1), (0, 0)))
    xs = (xp.reshape(N, Hs, 2, Ws, 2, Cin)
            .transpose(0, 1, 3, 2, 4, 5)
            .reshape(N, Hs, Ws, C4))     # channel order: (dr, dc, cin)

    # --- weight -> (r0, c0, 4*Cin, Cout), zeros for the nonexistent kh==3/kw==3 taps ---
    w_hwio = jnp.transpose(weight, (2, 3, 1, 0))                 # (3,3,Cin,Cout)
    w4 = jnp.pad(w_hwio, ((0, 1), (0, 1), (0, 0), (0, 0)))       # (4,4,Cin,Cout)
    w4 = (w4.reshape(2, 2, 2, 2, Cin, Cout)                      # (r0,dr,c0,dc,Cin,Cout)
            .transpose(0, 2, 1, 3, 4, 5)                         # (r0,c0,dr,dc,Cin,Cout)
            .reshape(2, 2, C4, Cout))
    b2 = bias.reshape(1, Cout)

    # --- row-tile size: largest even divisor of Hout (<=16) fitting a VMEM budget ---
    itm = x.dtype.itemsize
    budget = 20 * 1024 * 1024
    TH = 2
    for cand in range(2, min(Hout, 16) + 1, 2):
        if Hout % cand:
            continue
        fp = (2 * cand * Ws * C4 * itm                 # main block (double buffered)
              + 2 * Ws * C4 * itm                      # halo block
              + 2 * (cand // 2) * Wo2 * Cout * itm     # output block
              + 2 * 4 * C4 * Cout * w4.dtype.itemsize  # weights
              + Wout * Cout * 4)                       # f32 scratch
        if fp <= budget:
            TH = cand
    ntiles = Hout // TH
    TH2 = TH // 2

    # halo row for each tile: xs row (t+1)*TH  -> tiny (1/TH of xs) side input
    xs_halo = xs[:, TH::TH, :, :]        # (N, ntiles, Ws, 4*Cin)

    out_nhwc = pl.pallas_call(
        _dsblock_kernel,
        out_shape=jax.ShapeDtypeStruct((N, Ho2, Wo2, Cout), x.dtype),
        grid_spec=pltpu.PrefetchScalarGridSpec(
            num_scalar_prefetch=0,
            grid=(N, ntiles),
            in_specs=[pl.BlockSpec((1, TH, Ws, C4), lambda n, t: (n, t, 0, 0)),
                      pl.BlockSpec((1, 1, Ws, C4), lambda n, t: (n, t, 0, 0)),
                      pl.BlockSpec((2, 2, C4, Cout), lambda n, t: (0, 0, 0, 0)),
                      pl.BlockSpec((1, Cout), lambda n, t: (0, 0))],
            out_specs=pl.BlockSpec((1, TH2, Wo2, Cout), lambda n, t: (n, t, 0, 0)),
            scratch_shapes=[pltpu.VMEM((1, Wout, Cout), jnp.float32)]),
        compiler_params=pltpu.CompilerParams(
            dimension_semantics=("parallel", "parallel"),
            vmem_limit_bytes=48 * 1024 * 1024),
    )(xs, xs_halo, w4, b2)

    return jnp.transpose(out_nhwc, (0, 3, 1, 2))   # back to NCHW


def _reference(x, weight, bias):
    conv = lax.conv_general_dilated(
        x, weight, window_strides=(2, 2), padding=((1, 1), (1, 1)),
        dimension_numbers=("NCHW", "OIHW", "NCHW"))
    conv = conv + bias.reshape(1, -1, 1, 1)
    return lax.reduce_window(conv, -jnp.inf, lax.max,
                             (1, 1, 2, 2), (1, 1, 2, 2), "VALID")


if __name__ == "__main__":
    key = jax.random.PRNGKey(0)
    kx, kw, kb = jax.random.split(key, 3)

    N, Cin, Cout, H, W = 2, 4, 8, 16, 16
    x = jax.random.normal(kx, (N, Cin, H, W), dtype=jnp.float32)

    # deterministic Conv2d-style init (uniform +/- 1/sqrt(fan_in))
    fan_in = Cin * 3 * 3
    bound = 1.0 / (fan_in ** 0.5)
    weight = jax.random.uniform(kw, (Cout, Cin, 3, 3), jnp.float32, -bound, bound)
    bias = jax.random.uniform(kb, (Cout,), jnp.float32, -bound, bound)

    out = downsampling_block(x, weight, bias)
    out = jax.block_until_ready(out)

    ref = _reference(x, weight, bias)
    assert out.shape == (N, Cout, H // 4, W // 4), out.shape
    assert jnp.allclose(out, ref, atol=1e-4, rtol=1e-4), \
        float(jnp.max(jnp.abs(out - ref)))

    print("KERNEL_OK")
</pallas_src>

<mosaic_0001>
module attributes {stable_mosaic.version = 11 : i64} {
  func.func @_dsblock_kernel(%arg0: i32, %arg1: i32, %arg2: memref<1x8x9x16xf32, #tpu.memory_space<vmem>>, %arg3: memref<1x1x9x16xf32, #tpu.memory_space<vmem>>, %arg4: memref<2x2x16x8xf32, #tpu.memory_space<vmem>>, %arg5: memref<1x8xf32, #tpu.memory_space<vmem>>, %arg6: memref<1x4x4x8xf32, #tpu.memory_space<vmem>>, %arg7: memref<1x8x8xf32, #tpu.memory_space<vmem>>) attributes {dimension_semantics = [#tpu.dimension_semantics<parallel>, #tpu.dimension_semantics<parallel>], iteration_bounds = array<i64: 2, 1>, scalar_prefetch = 0 : i64, scratch_operands = 1 : i64, tpu.core_type = #tpu.core_type<tc>, window_params = [{transform_indices = @transform_0, window_bounds = array<i64: 1, 8, 9, 16>}, {transform_indices = @transform_1, window_bounds = array<i64: 1, 1, 9, 16>}, {pipeline_mode = #tpu.pipeline_mode<synchronous>, transform_indices = @transform_2, window_bounds = array<i64: 2, 2, 16, 8>}, {pipeline_mode = #tpu.pipeline_mode<synchronous>, transform_indices = @transform_3, window_bounds = array<i64: 1, 8>}, {transform_indices = @transform_4, window_bounds = array<i64: 1, 4, 4, 8>}]} {
    %c0 = arith.constant 0 : index
    %c0_0 = arith.constant 0 : index
    %c0_1 = arith.constant 0 : index
    %c0_2 = arith.constant 0 : index
    %0 = vector.load %arg4[%c0, %c0_0, %c0_1, %c0_2] : memref<2x2x16x8xf32, #tpu.memory_space<vmem>>, vector<1x1x16x8xf32>
    %1 = vector.shape_cast %0 : vector<1x1x16x8xf32> to vector<16x8xf32>
    %c0_3 = arith.constant 0 : index
    %c1 = arith.constant 1 : index
    %c0_4 = arith.constant 0 : index
    %c0_5 = arith.constant 0 : index
    %2 = vector.load %arg4[%c0_3, %c1, %c0_4, %c0_5] : memref<2x2x16x8xf32, #tpu.memory_space<vmem>>, vector<1x1x16x8xf32>
    %3 = vector.shape_cast %2 : vector<1x1x16x8xf32> to vector<16x8xf32>
    %c1_6 = arith.constant 1 : index
    %c0_7 = arith.constant 0 : index
    %c0_8 = arith.constant 0 : index
    %c0_9 = arith.constant 0 : index
    %4 = vector.load %arg4[%c1_6, %c0_7, %c0_8, %c0_9] : memref<2x2x16x8xf32, #tpu.memory_space<vmem>>, vector<1x1x16x8xf32>
    %5 = vector.shape_cast %4 : vector<1x1x16x8xf32> to vector<16x8xf32>
    %c1_10 = arith.constant 1 : index
    %c1_11 = arith.constant 1 : index
    %c0_12 = arith.constant 0 : index
    %c0_13 = arith.constant 0 : index
    %6 = vector.load %arg4[%c1_10, %c1_11, %c0_12, %c0_13] : memref<2x2x16x8xf32, #tpu.memory_space<vmem>>, vector<1x1x16x8xf32>
    %7 = vector.shape_cast %6 : vector<1x1x16x8xf32> to vector<16x8xf32>
    %c0_14 = arith.constant 0 : index
    %c0_15 = arith.constant 0 : index
    %8 = vector.load %arg5[%c0_14, %c0_15] : memref<1x8xf32, #tpu.memory_space<vmem>>, vector<1x8xf32>
    %9 = vector.shape_cast %8 : vector<1x8xf32> to vector<1x8xf32>
    %10 = vector.broadcast %9 : vector<1x8xf32> to vector<8x8xf32>
    %c0_16 = arith.constant 0 : index
    %c0_17 = arith.constant 0 : index
    %c0_18 = arith.constant 0 : index
    %c0_19 = arith.constant 0 : index
    %11 = vector.load %arg2[%c0_16, %c0_17, %c0_18, %c0_19] : memref<1x8x9x16xf32, #tpu.memory_space<vmem>>, vector<1x1x8x16xf32>
    %12 = vector.shape_cast %11 : vector<1x1x8x16xf32> to vector<8x16xf32>
    %c0_20 = arith.constant 0 : index
    %c0_21 = arith.constant 0 : index
    %c1_22 = arith.constant 1 : index
    %c0_23 = arith.constant 0 : index
    %13 = vector.load %arg2[%c0_20, %c0_21, %c1_22, %c0_23] : memref<1x8x9x16xf32, #tpu.memory_space<vmem>>, vector<1x1x8x16xf32>
    %14 = vector.shape_cast %13 : vector<1x1x8x16xf32> to vector<8x16xf32>
    %c0_24 = arith.constant 0 : index
    %c1_25 = arith.constant 1 : index
    %c0_26 = arith.constant 0 : index
    %c0_27 = arith.constant 0 : index
    %15 = vector.load %arg2[%c0_24, %c1_25, %c0_26, %c0_27] : memref<1x8x9x16xf32, #tpu.memory_space<vmem>>, vector<1x1x8x16xf32>
    %16 = vector.shape_cast %15 : vector<1x1x8x16xf32> to vector<8x16xf32>
    %c0_28 = arith.constant 0 : index
    %c1_29 = arith.constant 1 : index
    %c1_30 = arith.constant 1 : index
    %c0_31 = arith.constant 0 : index
    %17 = vector.load %arg2[%c0_28, %c1_29, %c1_30, %c0_31] : memref<1x8x9x16xf32, #tpu.memory_space<vmem>>, vector<1x1x8x16xf32>
    %18 = vector.shape_cast %17 : vector<1x1x8x16xf32> to vector<8x16xf32>
    %c0_32 = arith.constant 0 : index
    %c2 = arith.constant 2 : index
    %c0_33 = arith.constant 0 : index
    %c0_34 = arith.constant 0 : index
    %19 = vector.load %arg2[%c0_32, %c2, %c0_33, %c0_34] : memref<1x8x9x16xf32, #tpu.memory_space<vmem>>, vector<1x1x8x16xf32>
    %20 = vector.shape_cast %19 : vector<1x1x8x16xf32> to vector<8x16xf32>
    %c0_35 = arith.constant 0 : index
    %c2_36 = arith.constant 2 : index
    %c1_37 = arith.constant 1 : index
    %c0_38 = arith.constant 0 : index
    %21 = vector.load %arg2[%c0_35, %c2_36, %c1_37, %c0_38] : memref<1x8x9x16xf32, #tpu.memory_space<vmem>>, vector<1x1x8x16xf32>
    %22 = vector.shape_cast %21 : vector<1x1x8x16xf32> to vector<8x16xf32>
    %cst = arith.constant dense<0.000000e+00> : vector<8x8xf32>
    %23 = tpu.matmul %12, %1, %cst {dimension_numbers = #tpu.dot_dimension_numbers<[1], [0], [0], [1], [0, 0, 1, 1], [], []>} : vector<8x16xf32>, vector<16x8xf32>, vector<8x8xf32> -> vector<8x8xf32>
    %24 = arith.addf %10, %23 : vector<8x8xf32>
    %cst_39 = arith.constant dense<0.000000e+00> : vector<8x8xf32>
    %25 = tpu.matmul %14, %3, %cst_39 {dimension_numbers = #tpu.dot_dimension_numbers<[1], [0], [0], [1], [0, 0, 1, 1], [], []>} : vector<8x16xf32>, vector<16x8xf32>, vector<8x8xf32> -> vector<8x8xf32>
    %26 = arith.addf %24, %25 : vector<8x8xf32>
    %cst_40 = arith.constant dense<0.000000e+00> : vector<8x8xf32>
    %27 = tpu.matmul %16, %5, %cst_40 {dimension_numbers = #tpu.dot_dimension_numbers<[1], [0], [0], [1], [0, 0, 1, 1], [], []>} : vector<8x16xf32>, vector<16x8xf32>, vector<8x8xf32> -> vector<8x8xf32>
    %28 = arith.addf %26, %27 : vector<8x8xf32>
    %cst_41 = arith.constant dense<0.000000e+00> : vector<8x8xf32>
    %29 = tpu.matmul %18, %7, %cst_41 {dimension_numbers = #tpu.dot_dimension_numbers<[1], [0], [0], [1], [0, 0, 1, 1], [], []>} : vector<8x16xf32>, vector<16x8xf32>, vector<8x8xf32> -> vector<8x8xf32>
    %30 = arith.addf %28, %29 : vector<8x8xf32>
    %cst_42 = arith.constant dense<0.000000e+00> : vector<8x8xf32>
    %31 = tpu.matmul %16, %1, %cst_42 {dimension_numbers = #tpu.dot_dimension_numbers<[1], [0], [0], [1], [0, 0, 1, 1], [], []>} : vector<8x16xf32>, vector<16x8xf32>, vector<8x8xf32> -> vector<8x8xf32>
    %32 = arith.addf %10, %31 : vector<8x8xf32>
    %cst_43 = arith.constant dense<0.000000e+00> : vector<8x8xf32>
    %33 = tpu.matmul %18, %3, %cst_43 {dimension_numbers = #tpu.dot_dimension_numbers<[1], [0], [0], [1], [0, 0, 1, 1], [], []>} : vector<8x16xf32>, vector<16x8xf32>, vector<8x8xf32> -> vector<8x8xf32>
    %34 = arith.addf %32, %33 : vector<8x8xf32>
    %cst_44 = arith.constant dense<0.000000e+00> : vector<8x8xf32>
    %35 = tpu.matmul %20, %5, %cst_44 {dimension_numbers = #tpu.dot_dimension_numbers<[1], [0], [0], [1], [0, 0, 1, 1], [], []>} : vector<8x16xf32>, vector<16x8xf32>, vector<8x8xf32> -> vector<8x8xf32>
    %36 = arith.addf %34, %35 : vector<8x8xf32>
    %cst_45 = arith.constant dense<0.000000e+00> : vector<8x8xf32>
    %37 = tpu.matmul %22, %7, %cst_45 {dimension_numbers = #tpu.dot_dimension_numbers<[1], [0], [0], [1], [0, 0, 1, 1], [], []>} : vector<8x16xf32>, vector<16x8xf32>, vector<8x8xf32> -> vector<8x8xf32>
    %38 = arith.addf %36, %37 : vector<8x8xf32>
    %39 = arith.maximumf %30, %38 : vector<8x8xf32>
    %c0_46 = arith.constant 0 : index
    %c0_47 = arith.constant 0 : index
    %c0_48 = arith.constant 0 : index
    %40 = vector.load %arg7[%c0_46, %c0_47, %c0_48] : memref<1x8x8xf32, #tpu.memory_space<vmem>>, vector<1x8x8xf32>
    %41 = vector.shape_cast %40 : vector<1x8x8xf32> to vector<8x8xf32>
    %42 = vector.shape_cast %39 : vector<8x8xf32> to vector<1x8x8xf32>
    tpu.vector_store %arg7[%c0_46, %c0_47, %c0_48], %42 {strides = array<i32>} : memref<1x8x8xf32, #tpu.memory_space<vmem>>, vector<1x8x8xf32>,
    %c0_49 = arith.constant 0 : index
    %c0_50 = arith.constant 0 : index
    %c0_51 = arith.constant 0 : index
    %43 = tpu.strided_load %arg7[%c0_49, %c0_50, %c0_51] {strides = array<i32: 1, 2, 1>} : memref<1x8x8xf32, #tpu.memory_space<vmem>>, vector<1x4x8xf32>
    %c0_52 = arith.constant 0 : index
    %c1_53 = arith.constant 1 : index
    %c0_54 = arith.constant 0 : index
    %44 = tpu.strided_load %arg7[%c0_52, %c1_53, %c0_54] {strides = array<i32: 1, 2, 1>} : memref<1x8x8xf32, #tpu.memory_space<vmem>>, vector<1x4x8xf32>
    %45 = arith.maximumf %43, %44 : vector<1x4x8xf32>
    %46 = vector.shape_cast %45 : vector<1x4x8xf32> to vector<4x8xf32>
    %c0_55 = arith.constant 0 : index
    %c0_56 = arith.constant 0 : index
    %c0_57 = arith.constant 0 : index
    %c0_58 = arith.constant 0 : index
    %47 = vector.load %arg6[%c0_55, %c0_56, %c0_57, %c0_58] : memref<1x4x4x8xf32, #tpu.memory_space<vmem>>, vector<1x1x4x8xf32>
    %48 = vector.shape_cast %47 : vector<1x1x4x8xf32> to vector<4x8xf32>
    %49 = vector.shape_cast %46 : vector<4x8xf32> to vector<1x1x4x8xf32>
    tpu.vector_store %arg6[%c0_55, %c0_56, %c0_57, %c0_58], %49 {strides = array<i32>} : memref<1x4x4x8xf32, #tpu.memory_space<vmem>>, vector<1x1x4x8xf32>,
    %c0_59 = arith.constant 0 : index
    %c2_60 = arith.constant 2 : index
    %c0_61 = arith.constant 0 : index
    %c0_62 = arith.constant 0 : index
    %50 = vector.load %arg2[%c0_59, %c2_60, %c0_61, %c0_62] : memref<1x8x9x16xf32, #tpu.memory_space<vmem>>, vector<1x1x8x16xf32>
    %51 = vector.shape_cast %50 : vector<1x1x8x16xf32> to vector<8x16xf32>
    %c0_63 = arith.constant 0 : index
    %c2_64 = arith.constant 2 : index
    %c1_65 = arith.constant 1 : index
    %c0_66 = arith.constant 0 : index
    %52 = vector.load %arg2[%c0_63, %c2_64, %c1_65, %c0_66] : memref<1x8x9x16xf32, #tpu.memory_space<vmem>>, vector<1x1x8x16xf32>
    %53 = vector.shape_cast %52 : vector<1x1x8x16xf32> to vector<8x16xf32>
    %c0_67 = arith.constant 0 : index
    %c3 = arith.constant 3 : index
    %c0_68 = arith.constant 0 : index
    %c0_69 = arith.constant 0 : index
    %54 = vector.load %arg2[%c0_67, %c3, %c0_68, %c0_69] : memref<1x8x9x16xf32, #tpu.memory_space<vmem>>, vector<1x1x8x16xf32>
    %55 = vector.shape_cast %54 : vector<1x1x8x16xf32> to vector<8x16xf32>
    %c0_70 = arith.constant 0 : index
    %c3_71 = arith.constant 3 : index
    %c1_72 = arith.constant 1 : index
    %c0_73 = arith.constant 0 : index
    %56 = vector.load %arg2[%c0_70, %c3_71, %c1_72, %c0_73] : memref<1x8x9x16xf32, #tpu.memory_space<vmem>>, vector<1x1x8x16xf32>
    %57 = vector.shape_cast %56 : vector<1x1x8x16xf32> to vector<8x16xf32>
    %c0_74 = arith.constant 0 : index
    %c4 = arith.constant 4 : index
    %c0_75 = arith.constant 0 : index
    %c0_76 = arith.constant 0 : index
    %58 = vector.load %arg2[%c0_74, %c4, %c0_75, %c0_76] : memref<1x8x9x16xf32, #tpu.memory_space<vmem>>, vector<1x1x8x16xf32>
    %59 = vector.shape_cast %58 : vector<1x1x8x16xf32> to vector<8x16xf32>
    %c0_77 = arith.constant 0 : index
    %c4_78 = arith.constant 4 : index
    %c1_79 = arith.constant 1 : index
    %c0_80 = arith.constant 0 : index
    %60 = vector.load %arg2[%c0_77, %c4_78, %c1_79, %c0_80] : memref<1x8x9x16xf32, #tpu.memory_space<vmem>>, vector<1x1x8x16xf32>
    %61 = vector.shape_cast %60 : vector<1x1x8x16xf32> to vector<8x16xf32>
    %cst_81 = arith.constant dense<0.000000e+00> : vector<8x8xf32>
    %62 = tpu.matmul %51, %1, %cst_81 {dimension_numbers = #tpu.dot_dimension_numbers<[1], [0], [0], [1], [0, 0, 1, 1], [], []>} : vector<8x16xf32>, vector<16x8xf32>, vector<8x8xf32> -> vector<8x8xf32>
    %63 = arith.addf %10, %62 : vector<8x8xf32>
    %cst_82 = arith.constant dense<0.000000e+00> : vector<8x8xf32>
    %64 = tpu.matmul %53, %3, %cst_82 {dimension_numbers = #tpu.dot_dimension_numbers<[1], [0], [0], [1], [0, 0, 1, 1], [], []>} : vector<8x16xf32>, vector<16x8xf32>, vector<8x8xf32> -> vector<8x8xf32>
    %65 = arith.addf %63, %64 : vector<8x8xf32>
    %cst_83 = arith.constant dense<0.000000e+00> : vector<8x8xf32>
    %66 = tpu.matmul %55, %5, %cst_83 {dimension_numbers = #tpu.dot_dimension_numbers<[1], [0], [0], [1], [0, 0, 1, 1], [], []>} : vector<8x16xf32>, vector<16x8xf32>, vector<8x8xf32> -> vector<8x8xf32>
    %67 = arith.addf %65, %66 : vector<8x8xf32>
    %cst_84 = arith.constant dense<0.000000e+00> : vector<8x8xf32>
    %68 = tpu.matmul %57, %7, %cst_84 {dimension_numbers = #tpu.dot_dimension_numbers<[1], [0], [0], [1], [0, 0, 1, 1], [], []>} : vector<8x16xf32>, vector<16x8xf32>, vector<8x8xf32> -> vector<8x8xf32>
    %69 = arith.addf %67, %68 : vector<8x8xf32>
    %cst_85 = arith.constant dense<0.000000e+00> : vector<8x8xf32>
    %70 = tpu.matmul %55, %1, %cst_85 {dimension_numbers = #tpu.dot_dimension_numbers<[1], [0], [0], [1], [0, 0, 1, 1], [], []>} : vector<8x16xf32>, vector<16x8xf32>, vector<8x8xf32> -> vector<8x8xf32>
    %71 = arith.addf %10, %70 : vector<8x8xf32>
    %cst_86 = arith.constant dense<0.000000e+00> : vector<8x8xf32>
    %72 = tpu.matmul %57, %3, %cst_86 {dimension_numbers = #tpu.dot_dimension_numbers<[1], [0], [0], [1], [0, 0, 1, 1], [], []>} : vector<8x16xf32>, vector<16x8xf32>, vector<8x8xf32> -> vector<8x8xf32>
    %73 = arith.addf %71, %72 : vector<8x8xf32>
    %cst_87 = arith.constant dense<0.000000e+00> : vector<8x8xf32>
    %74 = tpu.matmul %59, %5, %cst_87 {dimension_numbers = #tpu.dot_dimension_numbers<[1], [0], [0], [1], [0, 0, 1, 1], [], []>} : vector<8x16xf32>, vector<16x8xf32>, vector<8x8xf32> -> vector<8x8xf32>
    %75 = arith.addf %73, %74 : vector<8x8xf32>
    %cst_88 = arith.constant dense<0.000000e+00> : vector<8x8xf32>
    %76 = tpu.matmul %61, %7, %cst_88 {dimension_numbers = #tpu.dot_dimension_numbers<[1], [0], [0], [1], [0, 0, 1, 1], [], []>} : vector<8x16xf32>, vector<16x8xf32>, vector<8x8xf32> -> vector<8x8xf32>
    %77 = arith.addf %75, %76 : vector<8x8xf32>
    %78 = arith.maximumf %69, %77 : vector<8x8xf32>
    %c0_89 = arith.constant 0 : index
    %c0_90 = arith.constant 0 : index
    %c0_91 = arith.constant 0 : index
    %79 = vector.load %arg7[%c0_89, %c0_90, %c0_91] : memref<1x8x8xf32, #tpu.memory_space<vmem>>, vector<1x8x8xf32>
    %80 = vector.shape_cast %79 : vector<1x8x8xf32> to vector<8x8xf32>
    %81 = vector.shape_cast %78 : vector<8x8xf32> to vector<1x8x8xf32>
    tpu.vector_store %arg7[%c0_89, %c0_90, %c0_91], %81 {strides = array<i32>} : memref<1x8x8xf32, #tpu.memory_space<vmem>>, vector<1x8x8xf32>,
    %c0_92 = arith.constant 0 : index
    %c0_93 = arith.constant 0 : index
    %c0_94 = arith.constant 0 : index
    %82 = tpu.strided_load %arg7[%c0_92, %c0_93, %c0_94] {strides = array<i32: 1, 2, 1>} : memref<1x8x8xf32, #tpu.memory_space<vmem>>, vector<1x4x8xf32>
    %c0_95 = arith.constant 0 : index
    %c1_96 = arith.constant 1 : index
    %c0_97 = arith.constant 0 : index
    %83 = tpu.strided_load %arg7[%c0_95, %c1_96, %c0_97] {strides = array<i32: 1, 2, 1>} : memref<1x8x8xf32, #tpu.memory_space<vmem>>, vector<1x4x8xf32>
    %84 = arith.maximumf %82, %83 : vector<1x4x8xf32>
    %85 = vector.shape_cast %84 : vector<1x4x8xf32> to vector<4x8xf32>
    %c0_98 = arith.constant 0 : index
    %c1_99 = arith.constant 1 : index
    %c0_100 = arith.constant 0 : index
    %c0_101 = arith.constant 0 : index
    %86 = vector.load %arg6[%c0_98, %c1_99, %c0_100, %c0_101] : memref<1x4x4x8xf32, #tpu.memory_space<vmem>>, vector<1x1x4x8xf32>
    %87 = vector.shape_cast %86 : vector<1x1x4x8xf32> to vector<4x8xf32>
    %88 = vector.shape_cast %85 : vector<4x8xf32> to vector<1x1x4x8xf32>
    tpu.vector_store %arg6[%c0_98, %c1_99, %c0_100, %c0_101], %88 {strides = array<i32>} : memref<1x4x4x8xf32, #tpu.memory_space<vmem>>, vector<1x1x4x8xf32>,
    %c0_102 = arith.constant 0 : index
    %c4_103 = arith.constant 4 : index
    %c0_104 = arith.constant 0 : index
    %c0_105 = arith.constant 0 : index
    %89 = vector.load %arg2[%c0_102, %c4_103, %c0_104, %c0_105] : memref<1x8x9x16xf32, #tpu.memory_space<vmem>>, vector<1x1x8x16xf32>
    %90 = vector.shape_cast %89 : vector<1x1x8x16xf32> to vector<8x16xf32>
    %c0_106 = arith.constant 0 : index
    %c4_107 = arith.constant 4 : index
    %c1_108 = arith.constant 1 : index
    %c0_109 = arith.constant 0 : index
    %91 = vector.load %arg2[%c0_106, %c4_107, %c1_108, %c0_109] : memref<1x8x9x16xf32, #tpu.memory_space<vmem>>, vector<1x1x8x16xf32>
    %92 = vector.shape_cast %91 : vector<1x1x8x16xf32> to vector<8x16xf32>
    %c0_110 = arith.constant 0 : index
    %c5 = arith.constant 5 : index
    %c0_111 = arith.constant 0 : index
    %c0_112 = arith.constant 0 : index
    %93 = vector.load %arg2[%c0_110, %c5, %c0_111, %c0_112] : memref<1x8x9x16xf32, #tpu.memory_space<vmem>>, vector<1x1x8x16xf32>
    %94 = vector.shape_cast %93 : vector<1x1x8x16xf32> to vector<8x16xf32>
    %c0_113 = arith.constant 0 : index
    %c5_114 = arith.constant 5 : index
    %c1_115 = arith.constant 1 : index
    %c0_116 = arith.constant 0 : index
    %95 = vector.load %arg2[%c0_113, %c5_114, %c1_115, %c0_116] : memref<1x8x9x16xf32, #tpu.memory_space<vmem>>, vector<1x1x8x16xf32>
    %96 = vector.shape_cast %95 : vector<1x1x8x16xf32> to vector<8x16xf32>
    %c0_117 = arith.constant 0 : index
    %c6 = arith.constant 6 : index
    %c0_118 = arith.constant 0 : index
    %c0_119 = arith.constant 0 : index
    %97 = vector.load %arg2[%c0_117, %c6, %c0_118, %c0_119] : memref<1x8x9x16xf32, #tpu.memory_space<vmem>>, vector<1x1x8x16xf32>
    %98 = vector.shape_cast %97 : vector<1x1x8x16xf32> to vector<8x16xf32>
    %c0_120 = arith.constant 0 : index
    %c6_121 = arith.constant 6 : index
    %c1_122 = arith.constant 1 : index
    %c0_123 = arith.constant 0 : index
    %99 = vector.load %arg2[%c0_120, %c6_121, %c1_122, %c0_123] : memref<1x8x9x16xf32, #tpu.memory_space<vmem>>, vector<1x1x8x16xf32>
    %100 = vector.shape_cast %99 : vector<1x1x8x16xf32> to vector<8x16xf32>
    %cst_124 = arith.constant dense<0.000000e+00> : vector<8x8xf32>
    %101 = tpu.matmul %90, %1, %cst_124 {dimension_numbers = #tpu.dot_dimension_numbers<[1], [0], [0], [1], [0, 0, 1, 1], [], []>} : vector<8x16xf32>, vector<16x8xf32>, vector<8x8xf32> -> vector<8x8xf32>
    %102 = arith.addf %10, %101 : vector<8x8xf32>
    %cst_125 = arith.constant dense<0.000000e+00> : vector<8x8xf32>
    %103 = tpu.matmul %92, %3, %cst_125 {dimension_numbers = #tpu.dot_dimension_numbers<[1], [0], [0], [1], [0, 0, 1, 1], [], []>} : vector<8x16xf32>, vector<16x8xf32>, vector<8x8xf32> -> vector<8x8xf32>
    %104 = arith.addf %102, %103 : vector<8x8xf32>
    %cst_126 = arith.constant dense<0.000000e+00> : vector<8x8xf32>
    %105 = tpu.matmul %94, %5, %cst_126 {dimension_numbers = #tpu.dot_dimension_numbers<[1], [0], [0], [1], [0, 0, 1, 1], [], []>} : vector<8x16xf32>, vector<16x8xf32>, vector<8x8xf32> -> vector<8x8xf32>
    %106 = arith.addf %104, %105 : vector<8x8xf32>
    %cst_127 = arith.constant dense<0.000000e+00> : vector<8x8xf32>
    %107 = tpu.matmul %96, %7, %cst_127 {dimension_numbers = #tpu.dot_dimension_numbers<[1], [0], [0], [1], [0, 0, 1, 1], [], []>} : vector<8x16xf32>, vector<16x8xf32>, vector<8x8xf32> -> vector<8x8xf32>
    %108 = arith.addf %106, %107 : vector<8x8xf32>
    %cst_128 = arith.constant dense<0.000000e+00> : vector<8x8xf32>
    %109 = tpu.matmul %94, %1, %cst_128 {dimension_numbers = #tpu.dot_dimension_numbers<[1], [0], [0], [1], [0, 0, 1, 1], [], []>} : vector<8x16xf32>, vector<16x8xf32>, vector<8x8xf32> -> vector<8x8xf32>
    %110 = arith.addf %10, %109 : vector<8x8xf32>
    %cst_129 = arith.constant dense<0.000000e+00> : vector<8x8xf32>
    %111 = tpu.matmul %96, %3, %cst_129 {dimension_numbers = #tpu.dot_dimension_numbers<[1], [0], [0], [1], [0, 0, 1, 1], [], []>} : vector<8x16xf32>, vector<16x8xf32>, vector<8x8xf32> -> vector<8x8xf32>
    %112 = arith.addf %110, %111 : vector<8x8xf32>
    %cst_130 = arith.constant dense<0.000000e+00> : vector<8x8xf32>
    %113 = tpu.matmul %98, %5, %cst_130 {dimension_numbers = #tpu.dot_dimension_numbers<[1], [0], [0], [1], [0, 0, 1, 1], [], []>} : vector<8x16xf32>, vector<16x8xf32>, vector<8x8xf32> -> vector<8x8xf32>
    %114 = arith.addf %112, %113 : vector<8x8xf32>
    %cst_131 = arith.constant dense<0.000000e+00> : vector<8x8xf32>
    %115 = tpu.matmul %100, %7, %cst_131 {dimension_numbers = #tpu.dot_dimension_numbers<[1], [0], [0], [1], [0, 0, 1, 1], [], []>} : vector<8x16xf32>, vector<16x8xf32>, vector<8x8xf32> -> vector<8x8xf32>
    %116 = arith.addf %114, %115 : vector<8x8xf32>
    %117 = arith.maximumf %108, %116 : vector<8x8xf32>
    %c0_132 = arith.constant 0 : index
    %c0_133 = arith.constant 0 : index
    %c0_134 = arith.constant 0 : index
    %118 = vector.load %arg7[%c0_132, %c0_133, %c0_134] : memref<1x8x8xf32, #tpu.memory_space<vmem>>, vector<1x8x8xf32>
    %119 = vector.shape_cast %118 : vector<1x8x8xf32> to vector<8x8xf32>
    %120 = vector.shape_cast %117 : vector<8x8xf32> to vector<1x8x8xf32>
    tpu.vector_store %arg7[%c0_132, %c0_133, %c0_134], %120 {strides = array<i32>} : memref<1x8x8xf32, #tpu.memory_space<vmem>>, vector<1x8x8xf32>,
    %c0_135 = arith.constant 0 : index
    %c0_136 = arith.constant 0 : index
    %c0_137 = arith.constant 0 : index
    %121 = tpu.strided_load %arg7[%c0_135, %c0_136, %c0_137] {strides = array<i32: 1, 2, 1>} : memref<1x8x8xf32, #tpu.memory_space<vmem>>, vector<1x4x8xf32>
    %c0_138 = arith.constant 0 : index
    %c1_139 = arith.constant 1 : index
    %c0_140 = arith.constant 0 : index
    %122 = tpu.strided_load %arg7[%c0_138, %c1_139, %c0_140] {strides = array<i32: 1, 2, 1>} : memref<1x8x8xf32, #tpu.memory_space<vmem>>, vector<1x4x8xf32>
    %123 = arith.maximumf %121, %122 : vector<1x4x8xf32>
    %124 = vector.shape_cast %123 : vector<1x4x8xf32> to vector<4x8xf32>
    %c0_141 = arith.constant 0 : index
    %c2_142 = arith.constant 2 : index
    %c0_143 = arith.constant 0 : index
    %c0_144 = arith.constant 0 : index
    %125 = vector.load %arg6[%c0_141, %c2_142, %c0_143, %c0_144] : memref<1x4x4x8xf32, #tpu.memory_space<vmem>>, vector<1x1x4x8xf32>
    %126 = vector.shape_cast %125 : vector<1x1x4x8xf32> to vector<4x8xf32>
    %127 = vector.shape_cast %124 : vector<4x8xf32> to vector<1x1x4x8xf32>
    tpu.vector_store %arg6[%c0_141, %c2_142, %c0_143, %c0_144], %127 {strides = array<i32>} : memref<1x4x4x8xf32, #tpu.memory_space<vmem>>, vector<1x1x4x8xf32>,
    %c0_145 = arith.constant 0 : index
    %c6_146 = arith.constant 6 : index
    %c0_147 = arith.constant 0 : index
    %c0_148 = arith.constant 0 : index
    %128 = vector.load %arg2[%c0_145, %c6_146, %c0_147, %c0_148] : memref<1x8x9x16xf32, #tpu.memory_space<vmem>>, vector<1x1x8x16xf32>
    %129 = vector.shape_cast %128 : vector<1x1x8x16xf32> to vector<8x16xf32>
    %c0_149 = arith.constant 0 : index
    %c6_150 = arith.constant 6 : index
    %c1_151 = arith.constant 1 : index
    %c0_152 = arith.constant 0 : index
    %130 = vector.load %arg2[%c0_149, %c6_150, %c1_151, %c0_152] : memref<1x8x9x16xf32, #tpu.memory_space<vmem>>, vector<1x1x8x16xf32>
    %131 = vector.shape_cast %130 : vector<1x1x8x16xf32> to vector<8x16xf32>
    %c0_153 = arith.constant 0 : index
    %c7 = arith.constant 7 : index
    %c0_154 = arith.constant 0 : index
    %c0_155 = arith.constant 0 : index
    %132 = vector.load %arg2[%c0_153, %c7, %c0_154, %c0_155] : memref<1x8x9x16xf32, #tpu.memory_space<vmem>>, vector<1x1x8x16xf32>
    %133 = vector.shape_cast %132 : vector<1x1x8x16xf32> to vector<8x16xf32>
    %c0_156 = arith.constant 0 : index
    %c7_157 = arith.constant 7 : index
    %c1_158 = arith.constant 1 : index
    %c0_159 = arith.constant 0 : index
    %134 = vector.load %arg2[%c0_156, %c7_157, %c1_158, %c0_159] : memref<1x8x9x16xf32, #tpu.memory_space<vmem>>, vector<1x1x8x16xf32>
    %135 = vector.shape_cast %134 : vector<1x1x8x16xf32> to vector<8x16xf32>
    %c0_160 = arith.constant 0 : index
    %c0_161 = arith.constant 0 : index
    %c0_162 = arith.constant 0 : index
    %c0_163 = arith.constant 0 : index
    %136 = vector.load %arg3[%c0_160, %c0_161, %c0_162, %c0_163] : memref<1x1x9x16xf32, #tpu.memory_space<vmem>>, vector<1x1x8x16xf32>
    %137 = vector.shape_cast %136 : vector<1x1x8x16xf32> to vector<8x16xf32>
    %c0_164 = arith.constant 0 : index
    %c0_165 = arith.constant 0 : index
    %c1_166 = arith.constant 1 : index
    %c0_167 = arith.constant 0 : index
    %138 = vector.load %arg3[%c0_164, %c0_165, %c1_166, %c0_167] : memref<1x1x9x16xf32, #tpu.memory_space<vmem>>, vector<1x1x8x16xf32>
    %139 = vector.shape_cast %138 : vector<1x1x8x16xf32> to vector<8x16xf32>
    %cst_168 = arith.constant dense<0.000000e+00> : vector<8x8xf32>
    %140 = tpu.matmul %129, %1, %cst_168 {dimension_numbers = #tpu.dot_dimension_numbers<[1], [0], [0], [1], [0, 0, 1, 1], [], []>} : vector<8x16xf32>, vector<16x8xf32>, vector<8x8xf32> -> vector<8x8xf32>
    %141 = arith.addf %10, %140 : vector<8x8xf32>
    %cst_169 = arith.constant dense<0.000000e+00> : vector<8x8xf32>
    %142 = tpu.matmul %131, %3, %cst_169 {dimension_numbers = #tpu.dot_dimension_numbers<[1], [0], [0], [1], [0, 0, 1, 1], [], []>} : vector<8x16xf32>, vector<16x8xf32>, vector<8x8xf32> -> vector<8x8xf32>
    %143 = arith.addf %141, %142 : vector<8x8xf32>
    %cst_170 = arith.constant dense<0.000000e+00> : vector<8x8xf32>
    %144 = tpu.matmul %133, %5, %cst_170 {dimension_numbers = #tpu.dot_dimension_numbers<[1], [0], [0], [1], [0, 0, 1, 1], [], []>} : vector<8x16xf32>, vector<16x8xf32>, vector<8x8xf32> -> vector<8x8xf32>
    %145 = arith.addf %143, %144 : vector<8x8xf32>
    %cst_171 = arith.constant dense<0.000000e+00> : vector<8x8xf32>
    %146 = tpu.matmul %135, %7, %cst_171 {dimension_numbers = #tpu.dot_dimension_numbers<[1], [0], [0], [1], [0, 0, 1, 1], [], []>} : vector<8x16xf32>, vector<16x8xf32>, vector<8x8xf32> -> vector<8x8xf32>
    %147 = arith.addf %145, %146 : vector<8x8xf32>
    %cst_172 = arith.constant dense<0.000000e+00> : vector<8x8xf32>
    %148 = tpu.matmul %133, %1, %cst_172 {dimension_numbers = #tpu.dot_dimension_numbers<[1], [0], [0], [1], [0, 0, 1, 1], [], []>} : vector<8x16xf32>, vector<16x8xf32>, vector<8x8xf32> -> vector<8x8xf32>
    %149 = arith.addf %10, %148 : vector<8x8xf32>
    %cst_173 = arith.constant dense<0.000000e+00> : vector<8x8xf32>
    %150 = tpu.matmul %135, %3, %cst_173 {dimension_numbers = #tpu.dot_dimension_numbers<[1], [0], [0], [1], [0, 0, 1, 1], [], []>} : vector<8x16xf32>, vector<16x8xf32>, vector<8x8xf32> -> vector<8x8xf32>
    %151 = arith.addf %149, %150 : vector<8x8xf32>
    %cst_174 = arith.constant dense<0.000000e+00> : vector<8x8xf32>
    %152 = tpu.matmul %137, %5, %cst_174 {dimension_numbers = #tpu.dot_dimension_numbers<[1], [0], [0], [1], [0, 0, 1, 1], [], []>} : vector<8x16xf32>, vector<16x8xf32>, vector<8x8xf32> -> vector<8x8xf32>
    %153 = arith.addf %151, %152 : vector<8x8xf32>
    %cst_175 = arith.constant dense<0.000000e+00> : vector<8x8xf32>
    %154 = tpu.matmul %139, %7, %cst_175 {dimension_numbers = #tpu.dot_dimension_numbers<[1], [0], [0], [1], [0, 0, 1, 1], [], []>} : vector<8x16xf32>, vector<16x8xf32>, vector<8x8xf32> -> vector<8x8xf32>
    %155 = arith.addf %153, %154 : vector<8x8xf32>
    %156 = arith.maximumf %147, %155 : vector<8x8xf32>
    %c0_176 = arith.constant 0 : index
    %c0_177 = arith.constant 0 : index
    %c0_178 = arith.constant 0 : index
    %157 = vector.load %arg7[%c0_176, %c0_177, %c0_178] : memref<1x8x8xf32, #tpu.memory_space<vmem>>, vector<1x8x8xf32>
    %158 = vector.shape_cast %157 : vector<1x8x8xf32> to vector<8x8xf32>
    %159 = vector.shape_cast %156 : vector<8x8xf32> to vector<1x8x8xf32>
    tpu.vector_store %arg7[%c0_176, %c0_177, %c0_178], %159 {strides = array<i32>} : memref<1x8x8xf32, #tpu.memory_space<vmem>>, vector<1x8x8xf32>,
    %c0_179 = arith.constant 0 : index
    %c0_180 = arith.constant 0 : index
    %c0_181 = arith.constant 0 : index
    %160 = tpu.strided_load %arg7[%c0_179, %c0_180, %c0_181] {strides = array<i32: 1, 2, 1>} : memref<1x8x8xf32, #tpu.memory_space<vmem>>, vector<1x4x8xf32>
    %c0_182 = arith.constant 0 : index
    %c1_183 = arith.constant 1 : index
    %c0_184 = arith.constant 0 : index
    %161 = tpu.strided_load %arg7[%c0_182, %c1_183, %c0_184] {strides = array<i32: 1, 2, 1>} : memref<1x8x8xf32, #tpu.memory_space<vmem>>, vector<1x4x8xf32>
    %162 = arith.maximumf %160, %161 : vector<1x4x8xf32>
    %163 = vector.shape_cast %162 : vector<1x4x8xf32> to vector<4x8xf32>
    %c0_185 = arith.constant 0 : index
    %c3_186 = arith.constant 3 : index
    %c0_187 = arith.constant 0 : index
    %c0_188 = arith.constant 0 : index
    %164 = vector.load %arg6[%c0_185, %c3_186, %c0_187, %c0_188] : memref<1x4x4x8xf32, #tpu.memory_space<vmem>>, vector<1x1x4x8xf32>
    %165 = vector.shape_cast %164 : vector<1x1x4x8xf32> to vector<4x8xf32>
    %166 = vector.shape_cast %163 : vector<4x8xf32> to vector<1x1x4x8xf32>
    tpu.vector_store %arg6[%c0_185, %c3_186, %c0_187, %c0_188], %166 {strides = array<i32>} : memref<1x4x4x8xf32, #tpu.memory_space<vmem>>, vector<1x1x4x8xf32>,
    return
  }
  func.func @transform_0(%arg0: i32, %arg1: i32) -> (i32, i32, i32, i32) {
    %c0_i32 = arith.constant 0 : i32
    %c0_i32_0 = arith.constant 0 : i32
    %c0_i32_1 = arith.constant 0 : i32
    return %arg0, %arg1, %c0_i32, %c0_i32_0 : i32, i32, i32, i32
  }
  func.func @transform_1(%arg0: i32, %arg1: i32) -> (i32, i32, i32, i32) {
    %c0_i32 = arith.constant 0 : i32
    %c0_i32_0 = arith.constant 0 : i32
    %c0_i32_1 = arith.constant 0 : i32
    return %arg0, %arg1, %c0_i32, %c0_i32_0 : i32, i32, i32, i32
  }
  func.func @transform_2(%arg0: i32, %arg1: i32) -> (i32, i32, i32, i32) {
    %c0_i32 = arith.constant 0 : i32
    %c0_i32_0 = arith.constant 0 : i32
    %c0_i32_1 = arith.constant 0 : i32
    %c0_i32_2 = arith.constant 0 : i32
    %c0_i32_3 = arith.constant 0 : i32
    return %c0_i32, %c0_i32_0, %c0_i32_1, %c0_i32_2 : i32, i32, i32, i32
  }
  func.func @transform_3(%arg0: i32, %arg1: i32) -> (i32, i32) {
    %c0_i32 = arith.constant 0 : i32
    %c0_i32_0 = arith.constant 0 : i32
    %c0_i32_1 = arith.constant 0 : i32
    return %c0_i32, %c0_i32_0 : i32, i32
  }
  func.func @transform_4(%arg0: i32, %arg1: i32) -> (i32, i32, i32, i32) {
    %c0_i32 = arith.constant 0 : i32
    %c0_i32_0 = arith.constant 0 : i32
    %c0_i32_1 = arith.constant 0 : i32
    return %arg0, %arg1, %c0_i32, %c0_i32_0 : i32, i32, i32, i32
  }
}

</mosaic_0001>

<llo_original>
// kernel: downsampling_block.1
$region0: #{downsampling_block.1}
  #allocation0 [shape = 'u32[]', space=smem, size = 0x4, offset = 0x4, fixed_abs, tag = 'smem constant byte address 0x4 - core index']
  #allocation1 [shape = 'u32[144,128]{1,0:T(1,128)}', space=vmem, size = 0x12000, scoped, tag = 'internal scratch']
  #allocation2 [shape = 'f32[1,8,8]{2,1,0:T(8,128)}', space=vmem, size = 0x1000, scoped, tag = 'scratch operand']
  %s0 = inlined_call_operand.vmem [shape: f32[2,9,9,16], index: 0, kind: input, shape index: {}]
  %s1 = inlined_call_operand.vmem [shape: f32[2,1,9,16], index: 1, kind: input, shape index: {}]
  %s2 = inlined_call_operand.vmem [shape: f32[2,2,16,8], index: 2, kind: input, shape index: {}]
  %s3 = inlined_call_operand.vmem [shape: f32[1,8], index: 3, kind: input, shape index: {}]
  %s4 = inlined_call_operand.hbm [shape: f32[2,4,4,8], index: 4, kind: output, shape index: {}]
  %s5 = sld [smem:[#allocation0]]
  $region49: #{downsampling_block.1} parent=0
    _
  %s7 = ssub.s32 1, %s5
  %s8 = scalar_select 0, %s7, %s5
  $region1: #{downsampling_block.1} parent=0
    #allocation3 [shape = 'u8[16384]{0}', space=vmem, size = 0x4000, scoped, tag = 'output window, operand 0']
    #allocation4 [shape = 's32[2]{0}', space=sflag, size = 0x8, scoped, tag = 'scoped memory for downsampling_block.1']
    %9 = vsyncpa [#allocation4], 0
    %s10 = scalar_lea.sflag [#allocation4], 1
    %11 = vsyncpa %s10, 0
    loop: start=0, step=1, limit=4
    $region2: #{downsampling_block.1} parent=1 // loop_pre_header
      _
    $region3: #{downsampling_block.1} parent=1 // loop_header
      %s13 = sphi 0, %s17
      %p14 = scmp.ge.s32.totalorder %s13, 4
      %s20 = sphi 0, %s32
      %s21 = sphi 0, %s28
      %s22 = sphi 0, %s20
      %s23 = sphi 0, %s21
      %s24 = sphi 0, %s22
      %s25 = sphi 0, %s23
      %s37 = sphi 0, %s39
      %s40 = sphi 0, %s37
      %s41 = sphi 0, %s40
      %s57 = sphi 0, %s41
      %s65 = sphi 0, %s67
      %s68 = sphi 0, %s65
      %s69 = sphi 0, %s68
      %s85 = sphi 0, %s69
      %s89 = sphi 0, %s89
      %s91 = sphi 0, %s89
      %s92 = sphi 0, %s91
      %s106 = sphi 0, %s92
      %s110 = sphi 0, %s110
      %s112 = sphi 0, %s110
      %s113 = sphi 0, %s112
      %s127 = sphi 0, %s113
      %s135 = sphi 0, %s137
      %s138 = sphi 0, %s135
      %s139 = sphi 0, %s138
      %s155 = sphi 0, %s139
    $region4: #{downsampling_block.1} parent=1 // loop_header_branch
      %16 = sbr.rel (%p14) target = $region8
    $region5: #{downsampling_block.1} parent=1 // loop_body
      %s18 = ssub.s32 %s13, 1
      %s19 = ssub.s32 %s13, 2
      %s26 = sadd.s32 1, %s21
      %p27 = scmp.ge.s32.totalorder %s26, 1
      %s28 = scalar_select %p27, 0, %s26
      %s29 = sadd.s32 1, %s20
      %s30 = scalar_select %p27, %s29, %s20
      %p31 = scmp.ge.s32.totalorder %s30, 2
      %s32 = scalar_select %p31, 0, %s30
      %s33 = ssub.s32 %s20, %s32
      %s34 = ssub.s32 %s21, %s28
      %s35 = sor.u32 %s33, %s34
      %p36 = scmp.eq.s32.totalorder %s35, 0
      %s38 = sadd.s32 %s37, 1
      %s39 = scalar_select %p36, %s37, %s38
      %p42 = pneg %p36
      %p43 = scmp.eq.s32.totalorder %s13, 1
      %p44 = por %p42, %p43
      %p45 = scmp.ne.s32.totalorder %s37, %s40
      %p46 = scmp.eq.s32.totalorder %s13, 0
      %p47 = por %p45, %p46
      %p48 = scmp.ne.s32.totalorder %s37, %s40
      %p49 = scmp.eq.s32.totalorder %s18, 1
      %p50 = por %p48, %p49
      %p51 = scmp.ne.s32.totalorder %s40, %s41
      %p52 = scmp.eq.s32.totalorder %s18, 0
      %p53 = por %p51, %p52
      %p54 = scmp.ne.s32.totalorder %s40, %s41
      %p55 = scmp.eq.s32.totalorder %s19, 1
      %p56 = por %p54, %p55
      %p58 = scmp.ne.s32.totalorder %s41, %s57
      %p59 = scmp.eq.s32.totalorder %s19, 0
      %p60 = por %p58, %p59
      %s61 = ssub.s32 %s20, %s32
      %s62 = ssub.s32 %s21, %s28
      %s63 = sor.u32 %s61, %s62
      %p64 = scmp.eq.s32.totalorder %s63, 0
      %s66 = sadd.s32 %s65, 1
      %s67 = scalar_select %p64, %s65, %s66
      %p70 = pneg %p64
      %p71 = scmp.eq.s32.totalorder %s13, 1
      %p72 = por %p70, %p71
      %p73 = scmp.ne.s32.totalorder %s65, %s68
      %p74 = scmp.eq.s32.totalorder %s13, 0
      %p75 = por %p73, %p74
      %p76 = scmp.ne.s32.totalorder %s65, %s68
      %p77 = scmp.eq.s32.totalorder %s18, 1
      %p78 = por %p76, %p77
      %p79 = scmp.ne.s32.totalorder %s68, %s69
      %p80 = scmp.eq.s32.totalorder %s18, 0
      %p81 = por %p79, %p80
      %p82 = scmp.ne.s32.totalorder %s68, %s69
      %p83 = scmp.eq.s32.totalorder %s19, 1
      %p84 = por %p82, %p83
      %p86 = scmp.ne.s32.totalorder %s69, %s85
      %p87 = scmp.eq.s32.totalorder %s19, 0
      %p88 = por %p86, %p87
      %s90 = sadd.s32 %s89, 1
      %p93 = scmp.eq.s32.totalorder %s13, 1
      %p94 = scmp.ne.s32.totalorder %s89, %s91
      %p95 = scmp.eq.s32.totalorder %s13, 0
      %p96 = por %p94, %p95
      %p97 = scmp.ne.s32.totalorder %s89, %s91
      %p98 = scmp.eq.s32.totalorder %s18, 1
      %p99 = por %p97, %p98
      %p100 = scmp.ne.s32.totalorder %s91, %s92
      %p101 = scmp.eq.s32.totalorder %s18, 0
      %p102 = por %p100, %p101
      %p103 = scmp.ne.s32.totalorder %s91, %s92
      %p104 = scmp.eq.s32.totalorder %s19, 1
      %p105 = por %p103, %p104
      %p107 = scmp.ne.s32.totalorder %s92, %s106
      %p108 = scmp.eq.s32.totalorder %s19, 0
      %p109 = por %p107, %p108
      %s111 = sadd.s32 %s110, 1
      %p114 = scmp.eq.s32.totalorder %s13, 1
      %p115 = scmp.ne.s32.totalorder %s110, %s112
      %p116 = scmp.eq.s32.totalorder %s13, 0
      %p117 = por %p115, %p116
      %p118 = scmp.ne.s32.totalorder %s110, %s112
      %p119 = scmp.eq.s32.totalorder %s18, 1
      %p120 = por %p118, %p119
      %p121 = scmp.ne.s32.totalorder %s112, %s113
      %p122 = scmp.eq.s32.totalorder %s18, 0
      %p123 = por %p121, %p122
      %p124 = scmp.ne.s32.totalorder %s112, %s113
      %p125 = scmp.eq.s32.totalorder %s19, 1
      %p126 = por %p124, %p125
      %p128 = scmp.ne.s32.totalorder %s113, %s127
      %p129 = scmp.eq.s32.totalorder %s19, 0
      %p130 = por %p128, %p129
      %s131 = ssub.s32 %s20, %s32
      %s132 = ssub.s32 %s21, %s28
      %s133 = sor.u32 %s131, %s132
      %p134 = scmp.eq.s32.totalorder %s133, 0
      %s136 = sadd.s32 %s135, 1
      %s137 = scalar_select %p134, %s135, %s136
      %p140 = pneg %p134
      %p141 = scmp.eq.s32.totalorder %s13, 1
      %p142 = por %p140, %p141
      %p143 = scmp.ne.s32.totalorder %s135, %s138
      %p144 = scmp.eq.s32.totalorder %s13, 0
      %p145 = por %p143, %p144
      %p146 = scmp.ne.s32.totalorder %s135, %s138
      %p147 = scmp.eq.s32.totalorder %s18, 1
      %p148 = por %p146, %p147
      %p149 = scmp.ne.s32.totalorder %s138, %s139
      %p150 = scmp.eq.s32.totalorder %s18, 0
      %p151 = por %p149, %p150
      %p152 = scmp.ne.s32.totalorder %s138, %s139
      %p153 = scmp.eq.s32.totalorder %s19, 1
      %p154 = por %p152, %p153
      %p156 = scmp.ne.s32.totalorder %s139, %s155
      %p157 = scmp.eq.s32.totalorder %s19, 0
      %p158 = por %p156, %p157
      %p159 = scmp.le.s32.totalorder 1, %s13
      %p160 = scmp.lt.s32.totalorder %s13, 3
      %p161 = pnand %p159, %p160
      %p162 = pneg %p161
      // Predicated region
      $region9: #{downsampling_block.1} parent=5 // pred_check
        _
      $region10: #{downsampling_block.1} parent=5 // pred_check_branch
        %164 = sbr.rel (%p161) target = $region12
      $region11: #{downsampling_block.1} parent=5 // pred_region
        %s165 = ssub.s32 %s13, 1
        // Predicated region
        $region13: #{downsampling_block.1} parent=11 // pred_check
          %p166 = pneg %p102
        $region14: #{downsampling_block.1} parent=11 // pred_check_branch
          %168 = sbr.rel (%p166) target = $region16
        $region15: #{downsampling_block.1} parent=11 // pred_region
          _
        $region16: #{downsampling_block.1} parent=11 // pred_fallthru
          _
        // Predicated region
        $region17: #{downsampling_block.1} parent=11 // pred_check
          %p169 = pneg %p123
        $region18: #{downsampling_block.1} parent=11 // pred_check_branch
          %171 = sbr.rel (%p169) target = $region20
        $region19: #{downsampling_block.1} parent=11 // pred_region
          _
        $region20: #{downsampling_block.1} parent=11 // pred_fallthru
          _
      $region12: #{downsampling_block.1} parent=5 // pred_fallthru
        _
      %p172 = scmp.lt.s32.totalorder %s13, 2
      // Predicated region
      $region21: #{downsampling_block.1} parent=5 // pred_check
        %p173 = pneg %p172
      $region22: #{downsampling_block.1} parent=5 // pred_check_branch
        %175 = sbr.rel (%p173) target = $region24
      $region23: #{downsampling_block.1} parent=5 // pred_region
        // Predicated region
        $region25: #{downsampling_block.1} parent=23 // pred_check
          %p176 = pneg %p47
        $region26: #{downsampling_block.1} parent=23 // pred_check_branch
          %178 = sbr.rel (%p176) target = $region28
        $region27: #{downsampling_block.1} parent=23 // pred_region
          %s179 = smul.u32 8, %s21
          %s180 = ssub.s32 9, %s179
          %p181 = scmp.lt.s32.totalorder %s180, 8
          %s182 = scalar_select %p181, %s180, 8
          %s183 = smul.u32 128, %s182
          %s184 = smul.u32 %s183, 2
          %p185 = scmp.lt.s32.totalorder %s20, 1
          %s186 = scalar_select %p185, %s20, 1
          %p187 = scmp.lt.s32.totalorder %s179, 8
          %s188 = scalar_select %p187, %s179, 8
          %s189 = smul.addr %s188, 2
          %s190 = smul.addr %s186, 18
          %s191 = sadd.s32 %s189, %s190
          %s192 = smul.addr %s191, 8
          %s193 = scalar_lea.vmem %s0, %s192
          %s194 = smul.u32 8, %s21
          %s195 = ssub.s32 9, %s194
          %p196 = scmp.lt.s32.totalorder %s195, 8
          %s197 = scalar_select %p196, %s195, 8
          %s198 = smul.u32 128, %s197
          %s199 = smul.u32 %s198, 2
        $region28: #{downsampling_block.1} parent=23 // pred_fallthru
          _
        // Predicated region
        $region29: #{downsampling_block.1} parent=23 // pred_check
          %p200 = pneg %p75
        $region30: #{downsampling_block.1} parent=23 // pred_check_branch
          %202 = sbr.rel (%p200) target = $region32
        $region31: #{downsampling_block.1} parent=23 // pred_region
          %p203 = scmp.lt.s32.totalorder %s20, 1
          %s204 = scalar_select %p203, %s20, 1
          %p205 = scmp.lt.s32.totalorder %s21, 0
          %s206 = scalar_select %p205, %s21, 0
          %s207 = smul.addr %s206, 2
          %s208 = smul.addr %s204, 2
          %s209 = sadd.s32 %s207, %s208
          %s210 = smul.addr %s209, 8
          %s211 = scalar_lea.vmem %s1, %s210
        $region32: #{downsampling_block.1} parent=23 // pred_fallthru
          _
      $region24: #{downsampling_block.1} parent=5 // pred_fallthru
        _
      %p212 = scmp.le.s32.totalorder 1, %s13
      %p213 = scmp.lt.s32.totalorder %s13, 3
      %p214 = pnand %p212, %p213
      %p215 = pneg %p214
      // Predicated region
      $region33: #{downsampling_block.1} parent=5 // pred_check
        _
      $region34: #{downsampling_block.1} parent=5 // pred_check_branch
        %217 = sbr.rel (%p214) target = $region36
      $region35: #{downsampling_block.1} parent=5 // pred_region
        %s218 = ssub.s32 %s13, 1
        %s219 = smul.u32 8, %s23
        %s220 = ssub.s32 9, %s219
        %p221 = scmp.lt.s32.totalorder %s220, 8
        %s222 = scalar_select %p221, %s220, 8
        %s223 = smul.u32 128, %s222
        %s224 = smul.u32 %s223, 2
        %p225 = scmp.lt.s32.totalorder %s22, 1
        %s226 = scalar_select %p225, %s22, 1
        %p227 = scmp.lt.s32.totalorder %s219, 8
        %s228 = scalar_select %p227, %s219, 8
        %s229 = smul.addr %s228, 2
        %s230 = smul.addr %s226, 18
        %s231 = sadd.s32 %s229, %s230
        %s232 = smul.addr %s231, 8
        %s233 = scalar_lea.vmem %s0, %s232
        %p234 = pneg %p53
        %p235 = pneg %p50
        %p236 = scmp.lt.s32.totalorder %s22, 1
        %s237 = scalar_select %p236, %s22, 1
        %p238 = scmp.lt.s32.totalorder %s23, 0
        %s239 = scalar_select %p238, %s23, 0
        %s240 = smul.addr %s239, 2
        %s241 = smul.addr %s237, 2
        %s242 = sadd.s32 %s240, %s241
        %s243 = smul.addr %s242, 8
        %s244 = scalar_lea.vmem %s1, %s243
        %p245 = pneg %p81
        %p246 = pneg %p78
        %p247 = pneg %p102
        %p248 = pneg %p99
        %p249 = pneg %p123
        %p250 = pneg %p120
        %p251 = pneg %p151
        %p252 = pneg %p148
        %s253 = sand.u32 %s138, 1
        %s254 = scalar_lea.sflag [#allocation4], %s253
        %s255 = sand.u32 %s138, 1
        %s256 = smul.addr %s255, 16
        %s257 = scalar_lea.vmem [#allocation3], %s256
        %s258 = smul.u32 8, %s23
        %s259 = ssub.s32 9, %s258
        %p260 = scmp.lt.s32.totalorder %s259, 8
        %s261 = scalar_select %p260, %s259, 8
        %s262 = smul.u32 128, %s261
        %s263 = smul.u32 %s262, 2
        %p264 = scmp.lt.s32.totalorder %s22, 1
        %s265 = scalar_select %p264, %s22, 1
        %p266 = scmp.lt.s32.totalorder %s258, 8
        %s267 = scalar_select %p266, %s258, 8
        %s268 = smul.addr %s267, 2
        %s269 = smul.addr %s265, 18
        %s270 = sadd.s32 %s268, %s269
        %s271 = smul.addr %s270, 8
        %s272 = scalar_lea.vmem %s0, %s271
        %s273 = smul.u32 8, %s23
        %s274 = ssub.s32 9, %s273
        %p275 = scmp.lt.s32.totalorder %s274, 8
        %s276 = scalar_select %p275, %s274, 8
        %s277 = smul.u32 128, %s276
        %s278 = smul.u32 %s277, 2
        %p279 = scmp.lt.s32.totalorder %s22, 1
        %s280 = scalar_select %p279, %s22, 1
        %p281 = scmp.lt.s32.totalorder %s23, 0
        %s282 = scalar_select %p281, %s23, 0
        %s283 = smul.addr %s282, 2
        %s284 = smul.addr %s280, 2
        %s285 = sadd.s32 %s283, %s284
        %s286 = smul.addr %s285, 8
        %s287 = scalar_lea.vmem %s1, %s286
        %s288 = smul.u32 4, %s23
        %v289 = vld [vmem:[%s2] sm:$0xff]
        %v290 = vld [vmem:[%s2 + $0x8] sm:$0xff]
        %s291 = scalar_lea.vmem %s2, 16
        %v292 = vld [vmem:[%s291] sm:$0xff]
        %v293 = vld [vmem:[%s291 + $0x8] sm:$0xff]
        %s294 = scalar_lea.vmem %s2, 32
        %v295 = vld [vmem:[%s294] sm:$0xff]
        %v296 = vld [vmem:[%s294 + $0x8] sm:$0xff]
        %s297 = scalar_lea.vmem %s2, 48
        %v298 = vld [vmem:[%s297] sm:$0xff]
        %v299 = vld [vmem:[%s297 + $0x8] sm:$0xff]
        %v300 = vld [vmem:[%s3] sm:$0x1]
        %v302 = vlaneseq
        %v303 = vshrl.u32 %v302, 7
        %v304 = vsub.s32 0, %v303
        %v305 = vrot.slane %v300, %v304
        %v307 = vld [vmem:[%s272] sm:$0xff]
        %v308 = vld [vmem:[%s272 + $0x1] sm:$0xff]
        %s309 = scalar_lea.vmem %s272, 16
        %v310 = vld [vmem:[%s309] sm:$0xff]
        %v311 = vld [vmem:[%s309 + $0x1] sm:$0xff]
        %s312 = scalar_lea.vmem %s272, 32
        %v313 = vld [vmem:[%s312] sm:$0xff]
        %v314 = vld [vmem:[%s312 + $0x1] sm:$0xff]
        %vm315 = vcmask 130048
        %v317 = vsel %vm315, %v307, 0
        %319 = vmatprep.subr.mxu0 0.0
        %320 = vmatpush1.msra.mxu0 %v289
        %321 = vmatprep.subr.mxu0 0.0
        %322 = vmatpush1.msra.mxu0 %v290
        %323 = vmatprep.subr.mxu0 0.0
        %324 = vmatpush1.msra.mxu0 0.0
        %325 = vmatprep.subr.mxu0 0.0
        %326 = vmatpush1.msra.mxu0 0.0
        %327 = vmatprep.subr.mxu0 0.0
        %328 = vmatpush1.msra.mxu0 0.0
        %329 = vmatprep.subr.mxu0 0.0
        %330 = vmatpush1.msra.mxu0 0.0
        %331 = vmatprep.subr.mxu0 0.0
        %332 = vmatpush1.msra.mxu0 0.0
        %333 = vmatprep.subr.mxu0 0.0
        %334 = vmatpush1.msra.mxu0 0.0
        %335 = vmatprep.subr.mxu0 0.0
        %336 = vmatpush1.msra.mxu0 0.0
        %337 = vmatprep.subr.mxu0 0.0
        %338 = vmatpush1.msra.mxu0 0.0
        %339 = vmatprep.subr.mxu0 0.0
        %340 = vmatpush1.msra.mxu0 0.0
        %341 = vmatprep.subr.mxu0 0.0
        %342 = vmatpush1.msra.mxu0 0.0
        %343 = vmatprep.subr.mxu0 0.0
        %344 = vmatpush1.msra.mxu0 0.0
        %345 = vmatprep.subr.mxu0 0.0
        %346 = vmatpush1.msra.mxu0 0.0
        %347 = vmatprep.subr.mxu0 0.0
        %348 = vmatpush1.msra.mxu0 0.0
        %349 = vmatprep.subr.mxu0 0.0
        %350 = vmatpush1.msra.mxu0 0.0
        %351 = vmatprep.subr.mxu0 0.0
        %352 = vmatpush1.msra.mxu0 0.0
        %353 = vmatprep.subr.mxu0 0.0
        %354 = vmatpush1.msra.mxu0 0.0
        %355 = vmatprep.subr.mxu0 0.0
        %356 = vmatpush1.msra.mxu0 0.0
        %357 = vmatprep.subr.mxu0 0.0
        %358 = vmatpush1.msra.mxu0 0.0
        %359 = vmatprep.subr.mxu0 0.0
        %360 = vmatpush1.msra.mxu0 0.0
        %361 = vmatprep.subr.mxu0 0.0
        %362 = vmatpush1.msra.mxu0 0.0
        %363 = vmatprep.subr.mxu0 0.0
        %364 = vmatpush1.msra.mxu0 0.0
        %365 = vmatprep.subr.mxu0 0.0
        %366 = vmatpush1.msra.mxu0 0.0
        %367 = vmatprep.subr.mxu0 0.0
        %368 = vmatpush1.msra.mxu0 0.0
        %369 = vmatprep.subr.mxu0 0.0
        %370 = vmatpush1.msra.mxu0 0.0
        %371 = vmatprep.subr.mxu0 0.0
        %372 = vmatpush1.msra.mxu0 0.0
        %373 = vmatprep.subr.mxu0 0.0
        %374 = vmatpush1.msra.mxu0 0.0
        %375 = vmatprep.subr.mxu0 0.0
        %376 = vmatpush1.msra.mxu0 0.0
        %377 = vmatprep.subr.mxu0 0.0
        %378 = vmatpush1.msra.mxu0 0.0
        %379 = vmatprep.subr.mxu0 0.0
        %380 = vmatpush1.msra.mxu0 0.0
        %381 = vmatprep.subr.mxu0 0.0
        %382 = vmatpush1.msra.mxu0 0.0
        %383 = vmatprep.mubr.f32.mxu0 0.0
        %384 = vmatmul.mubr.f32.gmra.mrb[0].mxu0 %v317
        %v385 = vpop.f32.mrb[0].mxu0
        %v386 = vadd.f32 0.0, %v385
        %v387 = vpop.f32.mrb[0].mxu0
        %388 = vdwg.mxu0
        %v389 = vadd.f32 %v305, %v386
        %v391 = vsel %vm315, %v308, 0
        %393 = vmatprep.subr.mxu0 0.0
        %394 = vmatpush1.msra.mxu0 %v292
        %395 = vmatprep.subr.mxu0 0.0
        %396 = vmatpush1.msra.mxu0 %v293
        %397 = vmatprep.subr.mxu0 0.0
        %398 = vmatpush1.msra.mxu0 0.0
        %399 = vmatprep.subr.mxu0 0.0
        %400 = vmatpush1.msra.mxu0 0.0
        %401 = vmatprep.subr.mxu0 0.0
        %402 = vmatpush1.msra.mxu0 0.0
        %403 = vmatprep.subr.mxu0 0.0
        %404 = vmatpush1.msra.mxu0 0.0
        %405 = vmatprep.subr.mxu0 0.0
        %406 = vmatpush1.msra.mxu0 0.0
        %407 = vmatprep.subr.mxu0 0.0
        %408 = vmatpush1.msra.mxu0 0.0
        %409 = vmatprep.subr.mxu0 0.0
        %410 = vmatpush1.msra.mxu0 0.0
        %411 = vmatprep.subr.mxu0 0.0
        %412 = vmatpush1.msra.mxu0 0.0
        %413 = vmatprep.subr.mxu0 0.0
        %414 = vmatpush1.msra.mxu0 0.0
        %415 = vmatprep.subr.mxu0 0.0
        %416 = vmatpush1.msra.mxu0 0.0
        %417 = vmatprep.subr.mxu0 0.0
        %418 = vmatpush1.msra.mxu0 0.0
        %419 = vmatprep.subr.mxu0 0.0
        %420 = vmatpush1.msra.mxu0 0.0
        %421 = vmatprep.subr.mxu0 0.0
        %422 = vmatpush1.msra.mxu0 0.0
        %423 = vmatprep.subr.mxu0 0.0
        %424 = vmatpush1.msra.mxu0 0.0
        %425 = vmatprep.subr.mxu0 0.0
        %426 = vmatpush1.msra.mxu0 0.0
        %427 = vmatprep.subr.mxu0 0.0
        %428 = vmatpush1.msra.mxu0 0.0
        %429 = vmatprep.subr.mxu0 0.0
        %430 = vmatpush1.msra.mxu0 0.0
        %431 = vmatprep.subr.mxu0 0.0
        %432 = vmatpush1.msra.mxu0 0.0
        %433 = vmatprep.subr.mxu0 0.0
        %434 = vmatpush1.msra.mxu0 0.0
        %435 = vmatprep.subr.mxu0 0.0
        %436 = vmatpush1.msra.mxu0 0.0
        %437 = vmatprep.subr.mxu0 0.0
        %438 = vmatpush1.msra.mxu0 0.0
        %439 = vmatprep.subr.mxu0 0.0
        %440 = vmatpush1.msra.mxu0 0.0
        %441 = vmatprep.subr.mxu0 0.0
        %442 = vmatpush1.msra.mxu0 0.0
        %443 = vmatprep.subr.mxu0 0.0
        %444 = vmatpush1.msra.mxu0 0.0
        %445 = vmatprep.subr.mxu0 0.0
        %446 = vmatpush1.msra.mxu0 0.0
        %447 = vmatprep.subr.mxu0 0.0
        %448 = vmatpush1.msra.mxu0 0.0
        %449 = vmatprep.subr.mxu0 0.0
        %450 = vmatpush1.msra.mxu0 0.0
        %451 = vmatprep.subr.mxu0 0.0
        %452 = vmatpush1.msra.mxu0 0.0
        %453 = vmatprep.subr.mxu0 0.0
        %454 = vmatpush1.msra.mxu0 0.0
        %455 = vmatprep.subr.mxu0 0.0
        %456 = vmatpush1.msra.mxu0 0.0
        %457 = vmatprep.mubr.f32.mxu0 0.0
        %458 = vmatmul.mubr.f32.gmra.mrb[0].mxu0 %v391
        %v459 = vpop.f32.mrb[0].mxu0
        %v460 = vadd.f32 0.0, %v459
        %v461 = vpop.f32.mrb[0].mxu0
        %462 = vdwg.mxu0
        %v463 = vadd.f32 %v389, %v460
        %v465 = vsel %vm315, %v310, 0
        %467 = vmatprep.subr.mxu0 0.0
        %468 = vmatpush1.msra.mxu0 %v295
        %469 = vmatprep.subr.mxu0 0.0
        %470 = vmatpush1.msra.mxu0 %v296
        %471 = vmatprep.subr.mxu0 0.0
        %472 = vmatpush1.msra.mxu0 0.0
        %473 = vmatprep.subr.mxu0 0.0
        %474 = vmatpush1.msra.mxu0 0.0
        %475 = vmatprep.subr.mxu0 0.0
        %476 = vmatpush1.msra.mxu0 0.0
        %477 = vmatprep.subr.mxu0 0.0
        %478 = vmatpush1.msra.mxu0 0.0
        %479 = vmatprep.subr.mxu0 0.0
        %480 = vmatpush1.msra.mxu0 0.0
        %481 = vmatprep.subr.mxu0 0.0
        %482 = vmatpush1.msra.mxu0 0.0
        %483 = vmatprep.subr.mxu0 0.0
        %484 = vmatpush1.msra.mxu0 0.0
        %485 = vmatprep.subr.mxu0 0.0
        %486 = vmatpush1.msra.mxu0 0.0
        %487 = vmatprep.subr.mxu0 0.0
        %488 = vmatpush1.msra.mxu0 0.0
        %489 = vmatprep.subr.mxu0 0.0
        %490 = vmatpush1.msra.mxu0 0.0
        %491 = vmatprep.subr.mxu0 0.0
        %492 = vmatpush1.msra.mxu0 0.0
        %493 = vmatprep.subr.mxu0 0.0
        %494 = vmatpush1.msra.mxu0 0.0
        %495 = vmatprep.subr.mxu0 0.0
        %496 = vmatpush1.msra.mxu0 0.0
        %497 = vmatprep.subr.mxu0 0.0
        %498 = vmatpush1.msra.mxu0 0.0
        %499 = vmatprep.subr.mxu0 0.0
        %500 = vmatpush1.msra.mxu0 0.0
        %501 = vmatprep.subr.mxu0 0.0
        %502 = vmatpush1.msra.mxu0 0.0
        %503 = vmatprep.subr.mxu0 0.0
        %504 = vmatpush1.msra.mxu0 0.0
        %505 = vmatprep.subr.mxu0 0.0
        %506 = vmatpush1.msra.mxu0 0.0
        %507 = vmatprep.subr.mxu0 0.0
        %508 = vmatpush1.msra.mxu0 0.0
        %509 = vmatprep.subr.mxu0 0.0
        %510 = vmatpush1.msra.mxu0 0.0
        %511 = vmatprep.subr.mxu0 0.0
        %512 = vmatpush1.msra.mxu0 0.0
        %513 = vmatprep.subr.mxu0 0.0
        %514 = vmatpush1.msra.mxu0 0.0
        %515 = vmatprep.subr.mxu0 0.0
        %516 = vmatpush1.msra.mxu0 0.0
        %517 = vmatprep.subr.mxu0 0.0
        %518 = vmatpush1.msra.mxu0 0.0
        %519 = vmatprep.subr.mxu0 0.0
        %520 = vmatpush1.msra.mxu0 0.0
        %521 = vmatprep.subr.mxu0 0.0
        %522 = vmatpush1.msra.mxu0 0.0
        %523 = vmatprep.subr.mxu0 0.0
        %524 = vmatpush1.msra.mxu0 0.0
        %525 = vmatprep.subr.mxu0 0.0
        %526 = vmatpush1.msra.mxu0 0.0
        %527 = vmatprep.subr.mxu0 0.0
        %528 = vmatpush1.msra.mxu0 0.0
        %529 = vmatprep.subr.mxu0 0.0
        %530 = vmatpush1.msra.mxu0 0.0
        %531 = vmatprep.mubr.f32.mxu0 0.0
        %532 = vmatmul.mubr.f32.gmra.mrb[0].mxu0 %v465
        %v533 = vpop.f32.mrb[0].mxu0
        %v534 = vadd.f32 0.0, %v533
        %v535 = vpop.f32.mrb[0].mxu0
        %536 = vdwg.mxu0
        %v537 = vadd.f32 %v463, %v534
        %v539 = vsel %vm315, %v311, 0
        %541 = vmatprep.subr.mxu0 0.0
        %542 = vmatpush1.msra.mxu0 %v298
        %543 = vmatprep.subr.mxu0 0.0
        %544 = vmatpush1.msra.mxu0 %v299
        %545 = vmatprep.subr.mxu0 0.0
        %546 = vmatpush1.msra.mxu0 0.0
        %547 = vmatprep.subr.mxu0 0.0
        %548 = vmatpush1.msra.mxu0 0.0
        %549 = vmatprep.subr.mxu0 0.0
        %550 = vmatpush1.msra.mxu0 0.0
        %551 = vmatprep.subr.mxu0 0.0
        %552 = vmatpush1.msra.mxu0 0.0
        %553 = vmatprep.subr.mxu0 0.0
        %554 = vmatpush1.msra.mxu0 0.0
        %555 = vmatprep.subr.mxu0 0.0
        %556 = vmatpush1.msra.mxu0 0.0
        %557 = vmatprep.subr.mxu0 0.0
        %558 = vmatpush1.msra.mxu0 0.0
        %559 = vmatprep.subr.mxu0 0.0
        %560 = vmatpush1.msra.mxu0 0.0
        %561 = vmatprep.subr.mxu0 0.0
        %562 = vmatpush1.msra.mxu0 0.0
        %563 = vmatprep.subr.mxu0 0.0
        %564 = vmatpush1.msra.mxu0 0.0
        %565 = vmatprep.subr.mxu0 0.0
        %566 = vmatpush1.msra.mxu0 0.0
        %567 = vmatprep.subr.mxu0 0.0
        %568 = vmatpush1.msra.mxu0 0.0
        %569 = vmatprep.subr.mxu0 0.0
        %570 = vmatpush1.msra.mxu0 0.0
        %571 = vmatprep.subr.mxu0 0.0
        %572 = vmatpush1.msra.mxu0 0.0
        %573 = vmatprep.subr.mxu0 0.0
        %574 = vmatpush1.msra.mxu0 0.0
        %575 = vmatprep.subr.mxu0 0.0
        %576 = vmatpush1.msra.mxu0 0.0
        %577 = vmatprep.subr.mxu0 0.0
        %578 = vmatpush1.msra.mxu0 0.0
        %579 = vmatprep.subr.mxu0 0.0
        %580 = vmatpush1.msra.mxu0 0.0
        %581 = vmatprep.subr.mxu0 0.0
        %582 = vmatpush1.msra.mxu0 0.0
        %583 = vmatprep.subr.mxu0 0.0
        %584 = vmatpush1.msra.mxu0 0.0
        %585 = vmatprep.subr.mxu0 0.0
        %586 = vmatpush1.msra.mxu0 0.0
        %587 = vmatprep.subr.mxu0 0.0
        %588 = vmatpush1.msra.mxu0 0.0
        %589 = vmatprep.subr.mxu0 0.0
        %590 = vmatpush1.msra.mxu0 0.0
        %591 = vmatprep.subr.mxu0 0.0
        %592 = vmatpush1.msra.mxu0 0.0
        %593 = vmatprep.subr.mxu0 0.0
        %594 = vmatpush1.msra.mxu0 0.0
        %595 = vmatprep.subr.mxu0 0.0
        %596 = vmatpush1.msra.mxu0 0.0
        %597 = vmatprep.subr.mxu0 0.0
        %598 = vmatpush1.msra.mxu0 0.0
        %599 = vmatprep.subr.mxu0 0.0
        %600 = vmatpush1.msra.mxu0 0.0
        %601 = vmatprep.subr.mxu0 0.0
        %602 = vmatpush1.msra.mxu0 0.0
        %603 = vmatprep.subr.mxu0 0.0
        %604 = vmatpush1.msra.mxu0 0.0
        %605 = vmatprep.mubr.f32.mxu0 0.0
        %606 = vmatmul.mubr.f32.gmra.mrb[0].mxu0 %v539
        %v607 = vpop.f32.mrb[0].mxu0
        %v608 = vadd.f32 0.0, %v607
        %v609 = vpop.f32.mrb[0].mxu0
        %610 = vdwg.mxu0
        %v611 = vadd.f32 %v537, %v608
        %612 = vmatprep.subr.mxu0 0.0
        %613 = vmatpush1.msra.mxu0 %v289
        %614 = vmatprep.subr.mxu0 0.0
        %615 = vmatpush1.msra.mxu0 %v290
        %616 = vmatprep.subr.mxu0 0.0
        %617 = vmatpush1.msra.mxu0 0.0
        %618 = vmatprep.subr.mxu0 0.0
        %619 = vmatpush1.msra.mxu0 0.0
        %620 = vmatprep.subr.mxu0 0.0
        %621 = vmatpush1.msra.mxu0 0.0
        %622 = vmatprep.subr.mxu0 0.0
        %623 = vmatpush1.msra.mxu0 0.0
        %624 = vmatprep.subr.mxu0 0.0
        %625 = vmatpush1.msra.mxu0 0.0
        %626 = vmatprep.subr.mxu0 0.0
        %627 = vmatpush1.msra.mxu0 0.0
        %628 = vmatprep.subr.mxu0 0.0
        %629 = vmatpush1.msra.mxu0 0.0
        %630 = vmatprep.subr.mxu0 0.0
        %631 = vmatpush1.msra.mxu0 0.0
        %632 = vmatprep.subr.mxu0 0.0
        %633 = vmatpush1.msra.mxu0 0.0
        %634 = vmatprep.subr.mxu0 0.0
        %635 = vmatpush1.msra.mxu0 0.0
        %636 = vmatprep.subr.mxu0 0.0
        %637 = vmatpush1.msra.mxu0 0.0
        %638 = vmatprep.subr.mxu0 0.0
        %639 = vmatpush1.msra.mxu0 0.0
        %640 = vmatprep.subr.mxu0 0.0
        %641 = vmatpush1.msra.mxu0 0.0
        %642 = vmatprep.subr.mxu0 0.0
        %643 = vmatpush1.msra.mxu0 0.0
        %644 = vmatprep.subr.mxu0 0.0
        %645 = vmatpush1.msra.mxu0 0.0
        %646 = vmatprep.subr.mxu0 0.0
        %647 = vmatpush1.msra.mxu0 0.0
        %648 = vmatprep.subr.mxu0 0.0
        %649 = vmatpush1.msra.mxu0 0.0
        %650 = vmatprep.subr.mxu0 0.0
        %651 = vmatpush1.msra.mxu0 0.0
        %652 = vmatprep.subr.mxu0 0.0
        %653 = vmatpush1.msra.mxu0 0.0
        %654 = vmatprep.subr.mxu0 0.0
        %655 = vmatpush1.msra.mxu0 0.0
        %656 = vmatprep.subr.mxu0 0.0
        %657 = vmatpush1.msra.mxu0 0.0
        %658 = vmatprep.subr.mxu0 0.0
        %659 = vmatpush1.msra.mxu0 0.0
        %660 = vmatprep.subr.mxu0 0.0
        %661 = vmatpush1.msra.mxu0 0.0
        %662 = vmatprep.subr.mxu0 0.0
        %663 = vmatpush1.msra.mxu0 0.0
        %664 = vmatprep.subr.mxu0 0.0
        %665 = vmatpush1.msra.mxu0 0.0
        %666 = vmatprep.subr.mxu0 0.0
        %667 = vmatpush1.msra.mxu0 0.0
        %668 = vmatprep.subr.mxu0 0.0
        %669 = vmatpush1.msra.mxu0 0.0
        %670 = vmatprep.subr.mxu0 0.0
        %671 = vmatpush1.msra.mxu0 0.0
        %672 = vmatprep.subr.mxu0 0.0
        %673 = vmatpush1.msra.mxu0 0.0
        %674 = vmatprep.subr.mxu0 0.0
        %675 = vmatpush1.msra.mxu0 0.0
        %676 = vmatprep.mubr.f32.mxu0 0.0
        %677 = vmatmul.mubr.f32.gmra.mrb[0].mxu0 %v465
        %v678 = vpop.f32.mrb[0].mxu0
        %v679 = vadd.f32 0.0, %v678
        %v680 = vpop.f32.mrb[0].mxu0
        %681 = vdwg.mxu0
        %v682 = vadd.f32 %v305, %v679
        %683 = vmatprep.subr.mxu0 0.0
        %684 = vmatpush1.msra.mxu0 %v292
        %685 = vmatprep.subr.mxu0 0.0
        %686 = vmatpush1.msra.mxu0 %v293
        %687 = vmatprep.subr.mxu0 0.0
        %688 = vmatpush1.msra.mxu0 0.0
        %689 = vmatprep.subr.mxu0 0.0
        %690 = vmatpush1.msra.mxu0 0.0
        %691 = vmatprep.subr.mxu0 0.0
        %692 = vmatpush1.msra.mxu0 0.0
        %693 = vmatprep.subr.mxu0 0.0
        %694 = vmatpush1.msra.mxu0 0.0
        %695 = vmatprep.subr.mxu0 0.0
        %696 = vmatpush1.msra.mxu0 0.0
        %697 = vmatprep.subr.mxu0 0.0
        %698 = vmatpush1.msra.mxu0 0.0
        %699 = vmatprep.subr.mxu0 0.0
        %700 = vmatpush1.msra.mxu0 0.0
        %701 = vmatprep.subr.mxu0 0.0
        %702 = vmatpush1.msra.mxu0 0.0
        %703 = vmatprep.subr.mxu0 0.0
        %704 = vmatpush1.msra.mxu0 0.0
        %705 = vmatprep.subr.mxu0 0.0
        %706 = vmatpush1.msra.mxu0 0.0
        %707 = vmatprep.subr.mxu0 0.0
        %708 = vmatpush1.msra.mxu0 0.0
        %709 = vmatprep.subr.mxu0 0.0
        %710 = vmatpush1.msra.mxu0 0.0
        %711 = vmatprep.subr.mxu0 0.0
        %712 = vmatpush1.msra.mxu0 0.0
        %713 = vmatprep.subr.mxu0 0.0
        %714 = vmatpush1.msra.mxu0 0.0
        %715 = vmatprep.subr.mxu0 0.0
        %716 = vmatpush1.msra.mxu0 0.0
        %717 = vmatprep.subr.mxu0 0.0
        %718 = vmatpush1.msra.mxu0 0.0
        %719 = vmatprep.subr.mxu0 0.0
        %720 = vmatpush1.msra.mxu0 0.0
        %721 = vmatprep.subr.mxu0 0.0
        %722 = vmatpush1.msra.mxu0 0.0
        %723 = vmatprep.subr.mxu0 0.0
        %724 = vmatpush1.msra.mxu0 0.0
        %725 = vmatprep.subr.mxu0 0.0
        %726 = vmatpush1.msra.mxu0 0.0
        %727 = vmatprep.subr.mxu0 0.0
        %728 = vmatpush1.msra.mxu0 0.0
        %729 = vmatprep.subr.mxu0 0.0
        %730 = vmatpush1.msra.mxu0 0.0
        %731 = vmatprep.subr.mxu0 0.0
        %732 = vmatpush1.msra.mxu0 0.0
        %733 = vmatprep.subr.mxu0 0.0
        %734 = vmatpush1.msra.mxu0 0.0
        %735 = vmatprep.subr.mxu0 0.0
        %736 = vmatpush1.msra.mxu0 0.0
        %737 = vmatprep.subr.mxu0 0.0
        %738 = vmatpush1.msra.mxu0 0.0
        %739 = vmatprep.subr.mxu0 0.0
        %740 = vmatpush1.msra.mxu0 0.0
        %741 = vmatprep.subr.mxu0 0.0
        %742 = vmatpush1.msra.mxu0 0.0
        %743 = vmatprep.subr.mxu0 0.0
        %744 = vmatpush1.msra.mxu0 0.0
        %745 = vmatprep.subr.mxu0 0.0
        %746 = vmatpush1.msra.mxu0 0.0
        %747 = vmatprep.mubr.f32.mxu0 0.0
        %748 = vmatmul.mubr.f32.gmra.mrb[0].mxu0 %v539
        %v749 = vpop.f32.mrb[0].mxu0
        %v750 = vadd.f32 0.0, %v749
        %v751 = vpop.f32.mrb[0].mxu0
        %752 = vdwg.mxu0
        %v753 = vadd.f32 %v682, %v750
        %v755 = vsel %vm315, %v313, 0
        %757 = vmatprep.subr.mxu0 0.0
        %758 = vmatpush1.msra.mxu0 %v295
        %759 = vmatprep.subr.mxu0 0.0
        %760 = vmatpush1.msra.mxu0 %v296
        %761 = vmatprep.subr.mxu0 0.0
        %762 = vmatpush1.msra.mxu0 0.0
        %763 = vmatprep.subr.mxu0 0.0
        %764 = vmatpush1.msra.mxu0 0.0
        %765 = vmatprep.subr.mxu0 0.0
        %766 = vmatpush1.msra.mxu0 0.0
        %767 = vmatprep.subr.mxu0 0.0
        %768 = vmatpush1.msra.mxu0 0.0
        %769 = vmatprep.subr.mxu0 0.0
        %770 = vmatpush1.msra.mxu0 0.0
        %771 = vmatprep.subr.mxu0 0.0
        %772 = vmatpush1.msra.mxu0 0.0
        %773 = vmatprep.subr.mxu0 0.0
        %774 = vmatpush1.msra.mxu0 0.0
        %775 = vmatprep.subr.mxu0 0.0
        %776 = vmatpush1.msra.mxu0 0.0
        %777 = vmatprep.subr.mxu0 0.0
        %778 = vmatpush1.msra.mxu0 0.0
        %779 = vmatprep.subr.mxu0 0.0
        %780 = vmatpush1.msra.mxu0 0.0
        %781 = vmatprep.subr.mxu0 0.0
        %782 = vmatpush1.msra.mxu0 0.0
        %783 = vmatprep.subr.mxu0 0.0
        %784 = vmatpush1.msra.mxu0 0.0
        %785 = vmatprep.subr.mxu0 0.0
        %786 = vmatpush1.msra.mxu0 0.0
        %787 = vmatprep.subr.mxu0 0.0
        %788 = vmatpush1.msra.mxu0 0.0
        %789 = vmatprep.subr.mxu0 0.0
        %790 = vmatpush1.msra.mxu0 0.0
        %791 = vmatprep.subr.mxu0 0.0
        %792 = vmatpush1.msra.mxu0 0.0
        %793 = vmatprep.subr.mxu0 0.0
        %794 = vmatpush1.msra.mxu0 0.0
        %795 = vmatprep.subr.mxu0 0.0
        %796 = vmatpush1.msra.mxu0 0.0
        %797 = vmatprep.subr.mxu0 0.0
        %798 = vmatpush1.msra.mxu0 0.0
        %799 = vmatprep.subr.mxu0 0.0
        %800 = vmatpush1.msra.mxu0 0.0
        %801 = vmatprep.subr.mxu0 0.0
        %802 = vmatpush1.msra.mxu0 0.0
        %803 = vmatprep.subr.mxu0 0.0
        %804 = vmatpush1.msra.mxu0 0.0
        %805 = vmatprep.subr.mxu0 0.0
        %806 = vmatpush1.msra.mxu0 0.0
        %807 = vmatprep.subr.mxu0 0.0
        %808 = vmatpush1.msra.mxu0 0.0
        %809 = vmatprep.subr.mxu0 0.0
        %810 = vmatpush1.msra.mxu0 0.0
        %811 = vmatprep.subr.mxu0 0.0
        %812 = vmatpush1.msra.mxu0 0.0
        %813 = vmatprep.subr.mxu0 0.0
        %814 = vmatpush1.msra.mxu0 0.0
        %815 = vmatprep.subr.mxu0 0.0
        %816 = vmatpush1.msra.mxu0 0.0
        %817 = vmatprep.subr.mxu0 0.0
        %818 = vmatpush1.msra.mxu0 0.0
        %819 = vmatprep.subr.mxu0 0.0
        %820 = vmatpush1.msra.mxu0 0.0
        %821 = vmatprep.mubr.f32.mxu0 0.0
        %822 = vmatmul.mubr.f32.gmra.mrb[0].mxu0 %v755
        %v823 = vpop.f32.mrb[0].mxu0
        %v824 = vadd.f32 0.0, %v823
        %v825 = vpop.f32.mrb[0].mxu0
        %826 = vdwg.mxu0
        %v827 = vadd.f32 %v753, %v824
        %v829 = vsel %vm315, %v314, 0
        %831 = vmatprep.subr.mxu0 0.0
        %832 = vmatpush1.msra.mxu0 %v298
        %833 = vmatprep.subr.mxu0 0.0
        %834 = vmatpush1.msra.mxu0 %v299
        %835 = vmatprep.subr.mxu0 0.0
        %836 = vmatpush1.msra.mxu0 0.0
        %837 = vmatprep.subr.mxu0 0.0
        %838 = vmatpush1.msra.mxu0 0.0
        %839 = vmatprep.subr.mxu0 0.0
        %840 = vmatpush1.msra.mxu0 0.0
        %841 = vmatprep.subr.mxu0 0.0
        %842 = vmatpush1.msra.mxu0 0.0
        %843 = vmatprep.subr.mxu0 0.0
        %844 = vmatpush1.msra.mxu0 0.0
        %845 = vmatprep.subr.mxu0 0.0
        %846 = vmatpush1.msra.mxu0 0.0
        %847 = vmatprep.subr.mxu0 0.0
        %848 = vmatpush1.msra.mxu0 0.0
        %849 = vmatprep.subr.mxu0 0.0
        %850 = vmatpush1.msra.mxu0 0.0
        %851 = vmatprep.subr.mxu0 0.0
        %852 = vmatpush1.msra.mxu0 0.0
        %853 = vmatprep.subr.mxu0 0.0
        %854 = vmatpush1.msra.mxu0 0.0
        %855 = vmatprep.subr.mxu0 0.0
        %856 = vmatpush1.msra.mxu0 0.0
        %857 = vmatprep.subr.mxu0 0.0
        %858 = vmatpush1.msra.mxu0 0.0
        %859 = vmatprep.subr.mxu0 0.0
        %860 = vmatpush1.msra.mxu0 0.0
        %861 = vmatprep.subr.mxu0 0.0
        %862 = vmatpush1.msra.mxu0 0.0
        %863 = vmatprep.subr.mxu0 0.0
        %864 = vmatpush1.msra.mxu0 0.0
        %865 = vmatprep.subr.mxu0 0.0
        %866 = vmatpush1.msra.mxu0 0.0
        %867 = vmatprep.subr.mxu0 0.0
        %868 = vmatpush1.msra.mxu0 0.0
        %869 = vmatprep.subr.mxu0 0.0
        %870 = vmatpush1.msra.mxu0 0.0
        %871 = vmatprep.subr.mxu0 0.0
        %872 = vmatpush1.msra.mxu0 0.0
        %873 = vmatprep.subr.mxu0 0.0
        %874 = vmatpush1.msra.mxu0 0.0
        %875 = vmatprep.subr.mxu0 0.0
        %876 = vmatpush1.msra.mxu0 0.0
        %877 = vmatprep.subr.mxu0 0.0
        %878 = vmatpush1.msra.mxu0 0.0
        %879 = vmatprep.subr.mxu0 0.0
        %880 = vmatpush1.msra.mxu0 0.0
        %881 = vmatprep.subr.mxu0 0.0
        %882 = vmatpush1.msra.mxu0 0.0
        %883 = vmatprep.subr.mxu0 0.0
        %884 = vmatpush1.msra.mxu0 0.0
        %885 = vmatprep.subr.mxu0 0.0
        %886 = vmatpush1.msra.mxu0 0.0
        %887 = vmatprep.subr.mxu0 0.0
        %888 = vmatpush1.msra.mxu0 0.0
        %889 = vmatprep.subr.mxu0 0.0
        %890 = vmatpush1.msra.mxu0 0.0
        %891 = vmatprep.subr.mxu0 0.0
        %892 = vmatpush1.msra.mxu0 0.0
        %893 = vmatprep.subr.mxu0 0.0
        %894 = vmatpush1.msra.mxu0 0.0
        %895 = vmatprep.mubr.f32.mxu0 0.0
        %896 = vmatmul.mubr.f32.gmra.mrb[0].mxu0 %v829
        %v897 = vpop.f32.mrb[0].mxu0
        %v898 = vadd.f32 0.0, %v897
        %v899 = vpop.f32.mrb[0].mxu0
        %900 = vdwg.mxu0
        %v901 = vadd.f32 %v827, %v898
        %v902 = vmax.f32 %v611, %v901
        %vm903 = vcmask 64512
        %904 = vst.msk [vmem:[#allocation2] sm:$0xff] %vm903, %v902
        %v905 = vld [vmem:[#allocation2] ss:$2 sm:$0xf]
        %s906 = scalar_lea.vmem [#allocation2], 1
        %v907 = vld [vmem:[%s906] ss:$2 sm:$0xf]
        %v908 = vmax.f32 %v905, %v907
        %vm909 = vcmask 60416
        %910 = vst.msk [vmem:[%s257] sm:$0xf] %vm909, %v908
        %v911 = vld [vmem:[%s312] sm:$0xff]
        %v912 = vld [vmem:[%s312 + $0x1] sm:$0xff]
        %s913 = scalar_lea.vmem %s272, 48
        %v914 = vld [vmem:[%s913] sm:$0xff]
        %v915 = vld [vmem:[%s913 + $0x1] sm:$0xff]
        %s916 = scalar_lea.vmem %s272, 64
        %v917 = vld [vmem:[%s916] sm:$0xff]
        %v918 = vld [vmem:[%s916 + $0x1] sm:$0xff]
        %v920 = vsel %vm315, %v911, 0
        %922 = vmatprep.subr.mxu0 0.0
        %923 = vmatpush1.msra.mxu0 %v289
        %924 = vmatprep.subr.mxu0 0.0
        %925 = vmatpush1.msra.mxu0 %v290
        %926 = vmatprep.subr.mxu0 0.0
        %927 = vmatpush1.msra.mxu0 0.0
        %928 = vmatprep.subr.mxu0 0.0
        %929 = vmatpush1.msra.mxu0 0.0
        %930 = vmatprep.subr.mxu0 0.0
        %931 = vmatpush1.msra.mxu0 0.0
        %932 = vmatprep.subr.mxu0 0.0
        %933 = vmatpush1.msra.mxu0 0.0
        %934 = vmatprep.subr.mxu0 0.0
        %935 = vmatpush1.msra.mxu0 0.0
        %936 = vmatprep.subr.mxu0 0.0
        %937 = vmatpush1.msra.mxu0 0.0
        %938 = vmatprep.subr.mxu0 0.0
        %939 = vmatpush1.msra.mxu0 0.0
        %940 = vmatprep.subr.mxu0 0.0
        %941 = vmatpush1.msra.mxu0 0.0
        %942 = vmatprep.subr.mxu0 0.0
        %943 = vmatpush1.msra.mxu0 0.0
        %944 = vmatprep.subr.mxu0 0.0
        %945 = vmatpush1.msra.mxu0 0.0
        %946 = vmatprep.subr.mxu0 0.0
        %947 = vmatpush1.msra.mxu0 0.0
        %948 = vmatprep.subr.mxu0 0.0
        %949 = vmatpush1.msra.mxu0 0.0
        %950 = vmatprep.subr.mxu0 0.0
        %951 = vmatpush1.msra.mxu0 0.0
        %952 = vmatprep.subr.mxu0 0.0
        %953 = vmatpush1.msra.mxu0 0.0
        %954 = vmatprep.subr.mxu0 0.0
        %955 = vmatpush1.msra.mxu0 0.0
        %956 = vmatprep.subr.mxu0 0.0
        %957 = vmatpush1.msra.mxu0 0.0
        %958 = vmatprep.subr.mxu0 0.0
        %959 = vmatpush1.msra.mxu0 0.0
        %960 = vmatprep.subr.mxu0 0.0
        %961 = vmatpush1.msra.mxu0 0.0
        %962 = vmatprep.subr.mxu0 0.0
        %963 = vmatpush1.msra.mxu0 0.0
        %964 = vmatprep.subr.mxu0 0.0
        %965 = vmatpush1.msra.mxu0 0.0
        %966 = vmatprep.subr.mxu0 0.0
        %967 = vmatpush1.msra.mxu0 0.0
        %968 = vmatprep.subr.mxu0 0.0
        %969 = vmatpush1.msra.mxu0 0.0
        %970 = vmatprep.subr.mxu0 0.0
        %971 = vmatpush1.msra.mxu0 0.0
        %972 = vmatprep.subr.mxu0 0.0
        %973 = vmatpush1.msra.mxu0 0.0
        %974 = vmatprep.subr.mxu0 0.0
        %975 = vmatpush1.msra.mxu0 0.0
        %976 = vmatprep.subr.mxu0 0.0
        %977 = vmatpush1.msra.mxu0 0.0
        %978 = vmatprep.subr.mxu0 0.0
        %979 = vmatpush1.msra.mxu0 0.0
        %980 = vmatprep.subr.mxu0 0.0
        %981 = vmatpush1.msra.mxu0 0.0
        %982 = vmatprep.subr.mxu0 0.0
        %983 = vmatpush1.msra.mxu0 0.0
        %984 = vmatprep.subr.mxu0 0.0
        %985 = vmatpush1.msra.mxu0 0.0
        %986 = vmatprep.mubr.f32.mxu0 0.0
        %987 = vmatmul.mubr.f32.gmra.mrb[0].mxu0 %v920
        %v988 = vpop.f32.mrb[0].mxu0
        %v989 = vadd.f32 0.0, %v988
        %v990 = vpop.f32.mrb[0].mxu0
        %991 = vdwg.mxu0
        %v992 = vadd.f32 %v305, %v989
        %v994 = vsel %vm315, %v912, 0
        %996 = vmatprep.subr.mxu0 0.0
        %997 = vmatpush1.msra.mxu0 %v292
        %998 = vmatprep.subr.mxu0 0.0
        %999 = vmatpush1.msra.mxu0 %v293
        %1000 = vmatprep.subr.mxu0 0.0
        %1001 = vmatpush1.msra.mxu0 0.0
        %1002 = vmatprep.subr.mxu0 0.0
        %1003 = vmatpush1.msra.mxu0 0.0
        %1004 = vmatprep.subr.mxu0 0.0
        %1005 = vmatpush1.msra.mxu0 0.0
        %1006 = vmatprep.subr.mxu0 0.0
        %1007 = vmatpush1.msra.mxu0 0.0
        %1008 = vmatprep.subr.mxu0 0.0
        %1009 = vmatpush1.msra.mxu0 0.0
        %1010 = vmatprep.subr.mxu0 0.0
        %1011 = vmatpush1.msra.mxu0 0.0
        %1012 = vmatprep.subr.mxu0 0.0
        %1013 = vmatpush1.msra.mxu0 0.0
        %1014 = vmatprep.subr.mxu0 0.0
        %1015 = vmatpush1.msra.mxu0 0.0
        %1016 = vmatprep.subr.mxu0 0.0
        %1017 = vmatpush1.msra.mxu0 0.0
        %1018 = vmatprep.subr.mxu0 0.0
        %1019 = vmatpush1.msra.mxu0 0.0
        %1020 = vmatprep.subr.mxu0 0.0
        %1021 = vmatpush1.msra.mxu0 0.0
        %1022 = vmatprep.subr.mxu0 0.0
        %1023 = vmatpush1.msra.mxu0 0.0
        %1024 = vmatprep.subr.mxu0 0.0
        %1025 = vmatpush1.msra.mxu0 0.0
        %1026 = vmatprep.subr.mxu0 0.0
        %1027 = vmatpush1.msra.mxu0 0.0
        %1028 = vmatprep.subr.mxu0 0.0
        %1029 = vmatpush1.msra.mxu0 0.0
        %1030 = vmatprep.subr.mxu0 0.0
        %1031 = vmatpush1.msra.mxu0 0.0
        %1032 = vmatprep.subr.mxu0 0.0
        %1033 = vmatpush1.msra.mxu0 0.0
        %1034 = vmatprep.subr.mxu0 0.0
        %1035 = vmatpush1.msra.mxu0 0.0
        %1036 = vmatprep.subr.mxu0 0.0
        %1037 = vmatpush1.msra.mxu0 0.0
        %1038 = vmatprep.subr.mxu0 0.0
        %1039 = vmatpush1.msra.mxu0 0.0
        %1040 = vmatprep.subr.mxu0 0.0
        %1041 = vmatpush1.msra.mxu0 0.0
        %1042 = vmatprep.subr.mxu0 0.0
        %1043 = vmatpush1.msra.mxu0 0.0
        %1044 = vmatprep.subr.mxu0 0.0
        %1045 = vmatpush1.msra.mxu0 0.0
        %1046 = vmatprep.subr.mxu0 0.0
        %1047 = vmatpush1.msra.mxu0 0.0
        %1048 = vmatprep.subr.mxu0 0.0
        %1049 = vmatpush1.msra.mxu0 0.0
        %1050 = vmatprep.subr.mxu0 0.0
        %1051 = vmatpush1.msra.mxu0 0.0
        %1052 = vmatprep.subr.mxu0 0.0
        %1053 = vmatpush1.msra.mxu0 0.0
        %1054 = vmatprep.subr.mxu0 0.0
        %1055 = vmatpush1.msra.mxu0 0.0
        %1056 = vmatprep.subr.mxu0 0.0
        %1057 = vmatpush1.msra.mxu0 0.0
        %1058 = vmatprep.subr.mxu0 0.0
        %1059 = vmatpush1.msra.mxu0 0.0
        %1060 = vmatprep.mubr.f32.mxu0 0.0
        %1061 = vmatmul.mubr.f32.gmra.mrb[0].mxu0 %v994
        %v1062 = vpop.f32.mrb[0].mxu0
        %v1063 = vadd.f32 0.0, %v1062
        %v1064 = vpop.f32.mrb[0].mxu0
        %1065 = vdwg.mxu0
        %v1066 = vadd.f32 %v992, %v1063
        %v1068 = vsel %vm315, %v914, 0
        %1070 = vmatprep.subr.mxu0 0.0
        %1071 = vmatpush1.msra.mxu0 %v295
        %1072 = vmatprep.subr.mxu0 0.0
        %1073 = vmatpush1.msra.mxu0 %v296
        %1074 = vmatprep.subr.mxu0 0.0
        %1075 = vmatpush1.msra.mxu0 0.0
        %1076 = vmatprep.subr.mxu0 0.0
        %1077 = vmatpush1.msra.mxu0 0.0
        %1078 = vmatprep.subr.mxu0 0.0
        %1079 = vmatpush1.msra.mxu0 0.0
        %1080 = vmatprep.subr.mxu0 0.0
        %1081 = vmatpush1.msra.mxu0 0.0
        %1082 = vmatprep.subr.mxu0 0.0
        %1083 = vmatpush1.msra.mxu0 0.0
        %1084 = vmatprep.subr.mxu0 0.0
        %1085 = vmatpush1.msra.mxu0 0.0
        %1086 = vmatprep.subr.mxu0 0.0
        %1087 = vmatpush1.msra.mxu0 0.0
        %1088 = vmatprep.subr.mxu0 0.0
        %1089 = vmatpush1.msra.mxu0 0.0
        %1090 = vmatprep.subr.mxu0 0.0
        %1091 = vmatpush1.msra.mxu0 0.0
        %1092 = vmatprep.subr.mxu0 0.0
        %1093 = vmatpush1.msra.mxu0 0.0
        %1094 = vmatprep.subr.mxu0 0.0
        %1095 = vmatpush1.msra.mxu0 0.0
        %1096 = vmatprep.subr.mxu0 0.0
        %1097 = vmatpush1.msra.mxu0 0.0
        %1098 = vmatprep.subr.mxu0 0.0
        %1099 = vmatpush1.msra.mxu0 0.0
        %1100 = vmatprep.subr.mxu0 0.0
        %1101 = vmatpush1.msra.mxu0 0.0
        %1102 = vmatprep.subr.mxu0 0.0
        %1103 = vmatpush1.msra.mxu0 0.0
        %1104 = vmatprep.subr.mxu0 0.0
        %1105 = vmatpush1.msra.mxu0 0.0
        %1106 = vmatprep.subr.mxu0 0.0
        %1107 = vmatpush1.msra.mxu0 0.0
        %1108 = vmatprep.subr.mxu0 0.0
        %1109 = vmatpush1.msra.mxu0 0.0
        %1110 = vmatprep.subr.mxu0 0.0
        %1111 = vmatpush1.msra.mxu0 0.0
        %1112 = vmatprep.subr.mxu0 0.0
        %1113 = vmatpush1.msra.mxu0 0.0
        %1114 = vmatprep.subr.mxu0 0.0
        %1115 = vmatpush1.msra.mxu0 0.0
        %1116 = vmatprep.subr.mxu0 0.0
        %1117 = vmatpush1.msra.mxu0 0.0
        %1118 = vmatprep.subr.mxu0 0.0
        %1119 = vmatpush1.msra.mxu0 0.0
        %1120 = vmatprep.subr.mxu0 0.0
        %1121 = vmatpush1.msra.mxu0 0.0
        %1122 = vmatprep.subr.mxu0 0.0
        %1123 = vmatpush1.msra.mxu0 0.0
        %1124 = vmatprep.subr.mxu0 0.0
        %1125 = vmatpush1.msra.mxu0 0.0
        %1126 = vmatprep.subr.mxu0 0.0
        %1127 = vmatpush1.msra.mxu0 0.0
        %1128 = vmatprep.subr.mxu0 0.0
        %1129 = vmatpush1.msra.mxu0 0.0
        %1130 = vmatprep.subr.mxu0 0.0
        %1131 = vmatpush1.msra.mxu0 0.0
        %1132 = vmatprep.subr.mxu0 0.0
        %1133 = vmatpush1.msra.mxu0 0.0
        %1134 = vmatprep.mubr.f32.mxu0 0.0
        %1135 = vmatmul.mubr.f32.gmra.mrb[0].mxu0 %v1068
        %v1136 = vpop.f32.mrb[0].mxu0
        %v1137 = vadd.f32 0.0, %v1136
        %v1138 = vpop.f32.mrb[0].mxu0
        %1139 = vdwg.mxu0
        %v1140 = vadd.f32 %v1066, %v1137
        %v1142 = vsel %vm315, %v915, 0
        %1144 = vmatprep.subr.mxu0 0.0
        %1145 = vmatpush1.msra.mxu0 %v298
        %1146 = vmatprep.subr.mxu0 0.0
        %1147 = vmatpush1.msra.mxu0 %v299
        %1148 = vmatprep.subr.mxu0 0.0
        %1149 = vmatpush1.msra.mxu0 0.0
        %1150 = vmatprep.subr.mxu0 0.0
        %1151 = vmatpush1.msra.mxu0 0.0
        %1152 = vmatprep.subr.mxu0 0.0
        %1153 = vmatpush1.msra.mxu0 0.0
        %1154 = vmatprep.subr.mxu0 0.0
        %1155 = vmatpush1.msra.mxu0 0.0
        %1156 = vmatprep.subr.mxu0 0.0
        %1157 = vmatpush1.msra.mxu0 0.0
        %1158 = vmatprep.subr.mxu0 0.0
        %1159 = vmatpush1.msra.mxu0 0.0
        %1160 = vmatprep.subr.mxu0 0.0
        %1161 = vmatpush1.msra.mxu0 0.0
        %1162 = vmatprep.subr.mxu0 0.0
        %1163 = vmatpush1.msra.mxu0 0.0
        %1164 = vmatprep.subr.mxu0 0.0
        %1165 = vmatpush1.msra.mxu0 0.0
        %1166 = vmatprep.subr.mxu0 0.0
        %1167 = vmatpush1.msra.mxu0 0.0
        %1168 = vmatprep.subr.mxu0 0.0
        %1169 = vmatpush1.msra.mxu0 0.0
        %1170 = vmatprep.subr.mxu0 0.0
        %1171 = vmatpush1.msra.mxu0 0.0
        %1172 = vmatprep.subr.mxu0 0.0
        %1173 = vmatpush1.msra.mxu0 0.0
        %1174 = vmatprep.subr.mxu0 0.0
        %1175 = vmatpush1.msra.mxu0 0.0
        %1176 = vmatprep.subr.mxu0 0.0
        %1177 = vmatpush1.msra.mxu0 0.0
        %1178 = vmatprep.subr.mxu0 0.0
        %1179 = vmatpush1.msra.mxu0 0.0
        %1180 = vmatprep.subr.mxu0 0.0
        %1181 = vmatpush1.msra.mxu0 0.0
        %1182 = vmatprep.subr.mxu0 0.0
        %1183 = vmatpush1.msra.mxu0 0.0
        %1184 = vmatprep.subr.mxu0 0.0
        %1185 = vmatpush1.msra.mxu0 0.0
        %1186 = vmatprep.subr.mxu0 0.0
        %1187 = vmatpush1.msra.mxu0 0.0
        %1188 = vmatprep.subr.mxu0 0.0
        %1189 = vmatpush1.msra.mxu0 0.0
        %1190 = vmatprep.subr.mxu0 0.0
        %1191 = vmatpush1.msra.mxu0 0.0
        %1192 = vmatprep.subr.mxu0 0.0
        %1193 = vmatpush1.msra.mxu0 0.0
        %1194 = vmatprep.subr.mxu0 0.0
        %1195 = vmatpush1.msra.mxu0 0.0
        %1196 = vmatprep.subr.mxu0 0.0
        %1197 = vmatpush1.msra.mxu0 0.0
        %1198 = vmatprep.subr.mxu0 0.0
        %1199 = vmatpush1.msra.mxu0 0.0
        %1200 = vmatprep.subr.mxu0 0.0
        %1201 = vmatpush1.msra.mxu0 0.0
        %1202 = vmatprep.subr.mxu0 0.0
        %1203 = vmatpush1.msra.mxu0 0.0
        %1204 = vmatprep.subr.mxu0 0.0
        %1205 = vmatpush1.msra.mxu0 0.0
        %1206 = vmatprep.subr.mxu0 0.0
        %1207 = vmatpush1.msra.mxu0 0.0
        %1208 = vmatprep.mubr.f32.mxu0 0.0
        %1209 = vmatmul.mubr.f32.gmra.mrb[0].mxu0 %v1142
        %v1210 = vpop.f32.mrb[0].mxu0
        %v1211 = vadd.f32 0.0, %v1210
        %v1212 = vpop.f32.mrb[0].mxu0
        %1213 = vdwg.mxu0
        %v1214 = vadd.f32 %v1140, %v1211
        %1215 = vmatprep.subr.mxu0 0.0
        %1216 = vmatpush1.msra.mxu0 %v289
        %1217 = vmatprep.subr.mxu0 0.0
        %1218 = vmatpush1.msra.mxu0 %v290
        %1219 = vmatprep.subr.mxu0 0.0
        %1220 = vmatpush1.msra.mxu0 0.0
        %1221 = vmatprep.subr.mxu0 0.0
        %1222 = vmatpush1.msra.mxu0 0.0
        %1223 = vmatprep.subr.mxu0 0.0
        %1224 = vmatpush1.msra.mxu0 0.0
        %1225 = vmatprep.subr.mxu0 0.0
        %1226 = vmatpush1.msra.mxu0 0.0
        %1227 = vmatprep.subr.mxu0 0.0
        %1228 = vmatpush1.msra.mxu0 0.0
        %1229 = vmatprep.subr.mxu0 0.0
        %1230 = vmatpush1.msra.mxu0 0.0
        %1231 = vmatprep.subr.mxu0 0.0
        %1232 = vmatpush1.msra.mxu0 0.0
        %1233 = vmatprep.subr.mxu0 0.0
        %1234 = vmatpush1.msra.mxu0 0.0
        %1235 = vmatprep.subr.mxu0 0.0
        %1236 = vmatpush1.msra.mxu0 0.0
        %1237 = vmatprep.subr.mxu0 0.0
        %1238 = vmatpush1.msra.mxu0 0.0
        %1239 = vmatprep.subr.mxu0 0.0
        %1240 = vmatpush1.msra.mxu0 0.0
        %1241 = vmatprep.subr.mxu0 0.0
        %1242 = vmatpush1.msra.mxu0 0.0
        %1243 = vmatprep.subr.mxu0 0.0
        %1244 = vmatpush1.msra.mxu0 0.0
        %1245 = vmatprep.subr.mxu0 0.0
        %1246 = vmatpush1.msra.mxu0 0.0
        %1247 = vmatprep.subr.mxu0 0.0
        %1248 = vmatpush1.msra.mxu0 0.0
        %1249 = vmatprep.subr.mxu0 0.0
        %1250 = vmatpush1.msra.mxu0 0.0
        %1251 = vmatprep.subr.mxu0 0.0
        %1252 = vmatpush1.msra.mxu0 0.0
        %1253 = vmatprep.subr.mxu0 0.0
        %1254 = vmatpush1.msra.mxu0 0.0
        %1255 = vmatprep.subr.mxu0 0.0
        %1256 = vmatpush1.msra.mxu0 0.0
        %1257 = vmatprep.subr.mxu0 0.0
        %1258 = vmatpush1.msra.mxu0 0.0
        %1259 = vmatprep.subr.mxu0 0.0
        %1260 = vmatpush1.msra.mxu0 0.0
        %1261 = vmatprep.subr.mxu0 0.0
        %1262 = vmatpush1.msra.mxu0 0.0
        %1263 = vmatprep.subr.mxu0 0.0
        %1264 = vmatpush1.msra.mxu0 0.0
        %1265 = vmatprep.subr.mxu0 0.0
        %1266 = vmatpush1.msra.mxu0 0.0
        %1267 = vmatprep.subr.mxu0 0.0
        %1268 = vmatpush1.msra.mxu0 0.0
        %1269 = vmatprep.subr.mxu0 0.0
        %1270 = vmatpush1.msra.mxu0 0.0
        %1271 = vmatprep.subr.mxu0 0.0
        %1272 = vmatpush1.msra.mxu0 0.0
        %1273 = vmatprep.subr.mxu0 0.0
        %1274 = vmatpush1.msra.mxu0 0.0
        %1275 = vmatprep.subr.mxu0 0.0
        %1276 = vmatpush1.msra.mxu0 0.0
        %1277 = vmatprep.subr.mxu0 0.0
        %1278 = vmatpush1.msra.mxu0 0.0
        %1279 = vmatprep.mubr.f32.mxu0 0.0
        %1280 = vmatmul.mubr.f32.gmra.mrb[0].mxu0 %v1068
        %v1281 = vpop.f32.mrb[0].mxu0
        %v1282 = vadd.f32 0.0, %v1281
        %v1283 = vpop.f32.mrb[0].mxu0
        %1284 = vdwg.mxu0
        %v1285 = vadd.f32 %v305, %v1282
        %1286 = vmatprep.subr.mxu0 0.0
        %1287 = vmatpush1.msra.mxu0 %v292
        %1288 = vmatprep.subr.mxu0 0.0
        %1289 = vmatpush1.msra.mxu0 %v293
        %1290 = vmatprep.subr.mxu0 0.0
        %1291 = vmatpush1.msra.mxu0 0.0
        %1292 = vmatprep.subr.mxu0 0.0
        %1293 = vmatpush1.msra.mxu0 0.0
        %1294 = vmatprep.subr.mxu0 0.0
        %1295 = vmatpush1.msra.mxu0 0.0
        %1296 = vmatprep.subr.mxu0 0.0
        %1297 = vmatpush1.msra.mxu0 0.0
        %1298 = vmatprep.subr.mxu0 0.0
        %1299 = vmatpush1.msra.mxu0 0.0
        %1300 = vmatprep.subr.mxu0 0.0
        %1301 = vmatpush1.msra.mxu0 0.0
        %1302 = vmatprep.subr.mxu0 0.0
        %1303 = vmatpush1.msra.mxu0 0.0
        %1304 = vmatprep.subr.mxu0 0.0
        %1305 = vmatpush1.msra.mxu0 0.0
        %1306 = vmatprep.subr.mxu0 0.0
        %1307 = vmatpush1.msra.mxu0 0.0
        %1308 = vmatprep.subr.mxu0 0.0
        %1309 = vmatpush1.msra.mxu0 0.0
        %1310 = vmatprep.subr.mxu0 0.0
        %1311 = vmatpush1.msra.mxu0 0.0
        %1312 = vmatprep.subr.mxu0 0.0
        %1313 = vmatpush1.msra.mxu0 0.0
        %1314 = vmatprep.subr.mxu0 0.0
        %1315 = vmatpush1.msra.mxu0 0.0
        %1316 = vmatprep.subr.mxu0 0.0
        %1317 = vmatpush1.msra.mxu0 0.0
        %1318 = vmatprep.subr.mxu0 0.0
        %1319 = vmatpush1.msra.mxu0 0.0
        %1320 = vmatprep.subr.mxu0 0.0
        %1321 = vmatpush1.msra.mxu0 0.0
        %1322 = vmatprep.subr.mxu0 0.0
        %1323 = vmatpush1.msra.mxu0 0.0
        %1324 = vmatprep.subr.mxu0 0.0
        %1325 = vmatpush1.msra.mxu0 0.0
        %1326 = vmatprep.subr.mxu0 0.0
        %1327 = vmatpush1.msra.mxu0 0.0
        %1328 = vmatprep.subr.mxu0 0.0
        %1329 = vmatpush1.msra.mxu0 0.0
        %1330 = vmatprep.subr.mxu0 0.0
        %1331 = vmatpush1.msra.mxu0 0.0
        %1332 = vmatprep.subr.mxu0 0.0
        %1333 = vmatpush1.msra.mxu0 0.0
        %1334 = vmatprep.subr.mxu0 0.0
        %1335 = vmatpush1.msra.mxu0 0.0
        %1336 = vmatprep.subr.mxu0 0.0
        %1337 = vmatpush1.msra.mxu0 0.0
        %1338 = vmatprep.subr.mxu0 0.0
        %1339 = vmatpush1.msra.mxu0 0.0
        %1340 = vmatprep.subr.mxu0 0.0
        %1341 = vmatpush1.msra.mxu0 0.0
        %1342 = vmatprep.subr.mxu0 0.0
        %1343 = vmatpush1.msra.mxu0 0.0
        %1344 = vmatprep.subr.mxu0 0.0
        %1345 = vmatpush1.msra.mxu0 0.0
        %1346 = vmatprep.subr.mxu0 0.0
        %1347 = vmatpush1.msra.mxu0 0.0
        %1348 = vmatprep.subr.mxu0 0.0
        %1349 = vmatpush1.msra.mxu0 0.0
        %1350 = vmatprep.mubr.f32.mxu0 0.0
        %1351 = vmatmul.mubr.f32.gmra.mrb[0].mxu0 %v1142
        %v1352 = vpop.f32.mrb[0].mxu0
        %v1353 = vadd.f32 0.0, %v1352
        %v1354 = vpop.f32.mrb[0].mxu0
        %1355 = vdwg.mxu0
        %v1356 = vadd.f32 %v1285, %v1353
        %v1358 = vsel %vm315, %v917, 0
        %1360 = vmatprep.subr.mxu0 0.0
        %1361 = vmatpush1.msra.mxu0 %v295
        %1362 = vmatprep.subr.mxu0 0.0
        %1363 = vmatpush1.msra.mxu0 %v296
        %1364 = vmatprep.subr.mxu0 0.0
        %1365 = vmatpush1.msra.mxu0 0.0
        %1366 = vmatprep.subr.mxu0 0.0
        %1367 = vmatpush1.msra.mxu0 0.0
        %1368 = vmatprep.subr.mxu0 0.0
        %1369 = vmatpush1.msra.mxu0 0.0
        %1370 = vmatprep.subr.mxu0 0.0
        %1371 = vmatpush1.msra.mxu0 0.0
        %1372 = vmatprep.subr.mxu0 0.0
        %1373 = vmatpush1.msra.mxu0 0.0
        %1374 = vmatprep.subr.mxu0 0.0
        %1375 = vmatpush1.msra.mxu0 0.0
        %1376 = vmatprep.subr.mxu0 0.0
        %1377 = vmatpush1.msra.mxu0 0.0
        %1378 = vmatprep.subr.mxu0 0.0
        %1379 = vmatpush1.msra.mxu0 0.0
        %1380 = vmatprep.subr.mxu0 0.0
        %1381 = vmatpush1.msra.mxu0 0.0
        %1382 = vmatprep.subr.mxu0 0.0
        %1383 = vmatpush1.msra.mxu0 0.0
        %1384 = vmatprep.subr.mxu0 0.0
        %1385 = vmatpush1.msra.mxu0 0.0
        %1386 = vmatprep.subr.mxu0 0.0
        %1387 = vmatpush1.msra.mxu0 0.0
        %1388 = vmatprep.subr.mxu0 0.0
        %1389 = vmatpush1.msra.mxu0 0.0
        %1390 = vmatprep.subr.mxu0 0.0
        %1391 = vmatpush1.msra.mxu0 0.0
        %1392 = vmatprep.subr.mxu0 0.0
        %1393 = vmatpush1.msra.mxu0 0.0
        %1394 = vmatprep.subr.mxu0 0.0
        %1395 = vmatpush1.msra.mxu0 0.0
        %1396 = vmatprep.subr.mxu0 0.0
        %1397 = vmatpush1.msra.mxu0 0.0
        %1398 = vmatprep.subr.mxu0 0.0
        %1399 = vmatpush1.msra.mxu0 0.0
        %1400 = vmatprep.subr.mxu0 0.0
        %1401 = vmatpush1.msra.mxu0 0.0
        %1402 = vmatprep.subr.mxu0 0.0
        %1403 = vmatpush1.msra.mxu0 0.0
        %1404 = vmatprep.subr.mxu0 0.0
        %1405 = vmatpush1.msra.mxu0 0.0
        %1406 = vmatprep.subr.mxu0 0.0
        %1407 = vmatpush1.msra.mxu0 0.0
        %1408 = vmatprep.subr.mxu0 0.0
        %1409 = vmatpush1.msra.mxu0 0.0
        %1410 = vmatprep.subr.mxu0 0.0
        %1411 = vmatpush1.msra.mxu0 0.0
        %1412 = vmatprep.subr.mxu0 0.0
        %1413 = vmatpush1.msra.mxu0 0.0
        %1414 = vmatprep.subr.mxu0 0.0
        %1415 = vmatpush1.msra.mxu0 0.0
        %1416 = vmatprep.subr.mxu0 0.0
        %1417 = vmatpush1.msra.mxu0 0.0
        %1418 = vmatprep.subr.mxu0 0.0
        %1419 = vmatpush1.msra.mxu0 0.0
        %1420 = vmatprep.subr.mxu0 0.0
        %1421 = vmatpush1.msra.mxu0 0.0
        %1422 = vmatprep.subr.mxu0 0.0
        %1423 = vmatpush1.msra.mxu0 0.0
        %1424 = vmatprep.mubr.f32.mxu0 0.0
        %1425 = vmatmul.mubr.f32.gmra.mrb[0].mxu0 %v1358
        %v1426 = vpop.f32.mrb[0].mxu0
        %v1427 = vadd.f32 0.0, %v1426
        %v1428 = vpop.f32.mrb[0].mxu0
        %1429 = vdwg.mxu0
        %v1430 = vadd.f32 %v1356, %v1427
        %v1432 = vsel %vm315, %v918, 0
        %1434 = vmatprep.subr.mxu0 0.0
        %1435 = vmatpush1.msra.mxu0 %v298
        %1436 = vmatprep.subr.mxu0 0.0
        %1437 = vmatpush1.msra.mxu0 %v299
        %1438 = vmatprep.subr.mxu0 0.0
        %1439 = vmatpush1.msra.mxu0 0.0
        %1440 = vmatprep.subr.mxu0 0.0
        %1441 = vmatpush1.msra.mxu0 0.0
        %1442 = vmatprep.subr.mxu0 0.0
        %1443 = vmatpush1.msra.mxu0 0.0
        %1444 = vmatprep.subr.mxu0 0.0
        %1445 = vmatpush1.msra.mxu0 0.0
        %1446 = vmatprep.subr.mxu0 0.0
        %1447 = vmatpush1.msra.mxu0 0.0
        %1448 = vmatprep.subr.mxu0 0.0
        %1449 = vmatpush1.msra.mxu0 0.0
        %1450 = vmatprep.subr.mxu0 0.0
        %1451 = vmatpush1.msra.mxu0 0.0
        %1452 = vmatprep.subr.mxu0 0.0
        %1453 = vmatpush1.msra.mxu0 0.0
        %1454 = vmatprep.subr.mxu0 0.0
        %1455 = vmatpush1.msra.mxu0 0.0
        %1456 = vmatprep.subr.mxu0 0.0
        %1457 = vmatpush1.msra.mxu0 0.0
        %1458 = vmatprep.subr.mxu0 0.0
        %1459 = vmatpush1.msra.mxu0 0.0
        %1460 = vmatprep.subr.mxu0 0.0
        %1461 = vmatpush1.msra.mxu0 0.0
        %1462 = vmatprep.subr.mxu0 0.0
        %1463 = vmatpush1.msra.mxu0 0.0
        %1464 = vmatprep.subr.mxu0 0.0
        %1465 = vmatpush1.msra.mxu0 0.0
        %1466 = vmatprep.subr.mxu0 0.0
        %1467 = vmatpush1.msra.mxu0 0.0
        %1468 = vmatprep.subr.mxu0 0.0
        %1469 = vmatpush1.msra.mxu0 0.0
        %1470 = vmatprep.subr.mxu0 0.0
        %1471 = vmatpush1.msra.mxu0 0.0
        %1472 = vmatprep.subr.mxu0 0.0
        %1473 = vmatpush1.msra.mxu0 0.0
        %1474 = vmatprep.subr.mxu0 0.0
        %1475 = vmatpush1.msra.mxu0 0.0
        %1476 = vmatprep.subr.mxu0 0.0
        %1477 = vmatpush1.msra.mxu0 0.0
        %1478 = vmatprep.subr.mxu0 0.0
        %1479 = vmatpush1.msra.mxu0 0.0
        %1480 = vmatprep.subr.mxu0 0.0
        %1481 = vmatpush1.msra.mxu0 0.0
        %1482 = vmatprep.subr.mxu0 0.0
        %1483 = vmatpush1.msra.mxu0 0.0
        %1484 = vmatprep.subr.mxu0 0.0
        %1485 = vmatpush1.msra.mxu0 0.0
        %1486 = vmatprep.subr.mxu0 0.0
        %1487 = vmatpush1.msra.mxu0 0.0
        %1488 = vmatprep.subr.mxu0 0.0
        %1489 = vmatpush1.msra.mxu0 0.0
        %1490 = vmatprep.subr.mxu0 0.0
        %1491 = vmatpush1.msra.mxu0 0.0
        %1492 = vmatprep.subr.mxu0 0.0
        %1493 = vmatpush1.msra.mxu0 0.0
        %1494 = vmatprep.subr.mxu0 0.0
        %1495 = vmatpush1.msra.mxu0 0.0
        %1496 = vmatprep.subr.mxu0 0.0
        %1497 = vmatpush1.msra.mxu0 0.0
        %1498 = vmatprep.mubr.f32.mxu0 0.0
        %1499 = vmatmul.mubr.f32.gmra.mrb[0].mxu0 %v1432
        %v1500 = vpop.f32.mrb[0].mxu0
        %v1501 = vadd.f32 0.0, %v1500
        %v1502 = vpop.f32.mrb[0].mxu0
        %1503 = vdwg.mxu0
        %v1504 = vadd.f32 %v1430, %v1501
        %v1505 = vmax.f32 %v1214, %v1504
        %1506 = vst.msk [vmem:[#allocation2] sm:$0xff] %vm903, %v1505
        %v1507 = vld [vmem:[#allocation2] ss:$2 sm:$0xf]
        %v1508 = vld [vmem:[%s906] ss:$2 sm:$0xf]
        %v1509 = vmax.f32 %v1507, %v1508
        %s1510 = scalar_lea.vmem %s257, 4 [#allocation3]
        %1511 = vst.msk [vmem:[%s1510] sm:$0xf] %vm909, %v1509
        %v1512 = vld [vmem:[%s916] sm:$0xff]
        %v1513 = vld [vmem:[%s916 + $0x1] sm:$0xff]
        %s1514 = scalar_lea.vmem %s272, 80
        %v1515 = vld [vmem:[%s1514] sm:$0xff]
        %v1516 = vld [vmem:[%s1514 + $0x1] sm:$0xff]
        %s1517 = scalar_lea.vmem %s272, 96
        %v1518 = vld [vmem:[%s1517] sm:$0xff]
        %v1519 = vld [vmem:[%s1517 + $0x1] sm:$0xff]
        %v1521 = vsel %vm315, %v1512, 0
        %1523 = vmatprep.subr.mxu0 0.0
        %1524 = vmatpush1.msra.mxu0 %v289
        %1525 = vmatprep.subr.mxu0 0.0
        %1526 = vmatpush1.msra.mxu0 %v290
        %1527 = vmatprep.subr.mxu0 0.0
        %1528 = vmatpush1.msra.mxu0 0.0
        %1529 = vmatprep.subr.mxu0 0.0
        %1530 = vmatpush1.msra.mxu0 0.0
        %1531 = vmatprep.subr.mxu0 0.0
        %1532 = vmatpush1.msra.mxu0 0.0
        %1533 = vmatprep.subr.mxu0 0.0
        %1534 = vmatpush1.msra.mxu0 0.0
        %1535 = vmatprep.subr.mxu0 0.0
        %1536 = vmatpush1.msra.mxu0 0.0
        %1537 = vmatprep.subr.mxu0 0.0
        %1538 = vmatpush1.msra.mxu0 0.0
        %1539 = vmatprep.subr.mxu0 0.0
        %1540 = vmatpush1.msra.mxu0 0.0
        %1541 = vmatprep.subr.mxu0 0.0
        %1542 = vmatpush1.msra.mxu0 0.0
        %1543 = vmatprep.subr.mxu0 0.0
        %1544 = vmatpush1.msra.mxu0 0.0
        %1545 = vmatprep.subr.mxu0 0.0
        %1546 = vmatpush1.msra.mxu0 0.0
        %1547 = vmatprep.subr.mxu0 0.0
        %1548 = vmatpush1.msra.mxu0 0.0
        %1549 = vmatprep.subr.mxu0 0.0
        %1550 = vmatpush1.msra.mxu0 0.0
        %1551 = vmatprep.subr.mxu0 0.0
        %1552 = vmatpush1.msra.mxu0 0.0
        %1553 = vmatprep.subr.mxu0 0.0
        %1554 = vmatpush1.msra.mxu0 0.0
        %1555 = vmatprep.subr.mxu0 0.0
        %1556 = vmatpush1.msra.mxu0 0.0
        %1557 = vmatprep.subr.mxu0 0.0
        %1558 = vmatpush1.msra.mxu0 0.0
        %1559 = vmatprep.subr.mxu0 0.0
        %1560 = vmatpush1.msra.mxu0 0.0
        %1561 = vmatprep.subr.mxu0 0.0
        %1562 = vmatpush1.msra.mxu0 0.0
        %1563 = vmatprep.subr.mxu0 0.0
        %1564 = vmatpush1.msra.mxu0 0.0
        %1565 = vmatprep.subr.mxu0 0.0
        %1566 = vmatpush1.msra.mxu0 0.0
        %1567 = vmatprep.subr.mxu0 0.0
        %1568 = vmatpush1.msra.mxu0 0.0
        %1569 = vmatprep.subr.mxu0 0.0
        %1570 = vmatpush1.msra.mxu0 0.0
        %1571 = vmatprep.subr.mxu0 0.0
        %1572 = vmatpush1.msra.mxu0 0.0
        %1573 = vmatprep.subr.mxu0 0.0
        %1574 = vmatpush1.msra.mxu0 0.0
        %1575 = vmatprep.subr.mxu0 0.0
        %1576 = vmatpush1.msra.mxu0 0.0
        %1577 = vmatprep.subr.mxu0 0.0
        %1578 = vmatpush1.msra.mxu0 0.0
        %1579 = vmatprep.subr.mxu0 0.0
        %1580 = vmatpush1.msra.mxu0 0.0
        %1581 = vmatprep.subr.mxu0 0.0
        %1582 = vmatpush1.msra.mxu0 0.0
        %1583 = vmatprep.subr.mxu0 0.0
        %1584 = vmatpush1.msra.mxu0 0.0
        %1585 = vmatprep.subr.mxu0 0.0
        %1586 = vmatpush1.msra.mxu0 0.0
        %1587 = vmatprep.mubr.f32.mxu0 0.0
        %1588 = vmatmul.mubr.f32.gmra.mrb[0].mxu0 %v1521
        %v1589 = vpop.f32.mrb[0].mxu0
        %v1590 = vadd.f32 0.0, %v1589
        %v1591 = vpop.f32.mrb[0].mxu0
        %1592 = vdwg.mxu0
        %v1593 = vadd.f32 %v305, %v1590
        %v1595 = vsel %vm315, %v1513, 0
        %1597 = vmatprep.subr.mxu0 0.0
        %1598 = vmatpush1.msra.mxu0 %v292
        %1599 = vmatprep.subr.mxu0 0.0
        %1600 = vmatpush1.msra.mxu0 %v293
        %1601 = vmatprep.subr.mxu0 0.0
        %1602 = vmatpush1.msra.mxu0 0.0
        %1603 = vmatprep.subr.mxu0 0.0
        %1604 = vmatpush1.msra.mxu0 0.0
        %1605 = vmatprep.subr.mxu0 0.0
        %1606 = vmatpush1.msra.mxu0 0.0
        %1607 = vmatprep.subr.mxu0 0.0
        %1608 = vmatpush1.msra.mxu0 0.0
        %1609 = vmatprep.subr.mxu0 0.0
        %1610 = vmatpush1.msra.mxu0 0.0
        %1611 = vmatprep.subr.mxu0 0.0
        %1612 = vmatpush1.msra.mxu0 0.0
        %1613 = vmatprep.subr.mxu0 0.0
        %1614 = vmatpush1.msra.mxu0 0.0
        %1615 = vmatprep.subr.mxu0 0.0
        %1616 = vmatpush1.msra.mxu0 0.0
        %1617 = vmatprep.subr.mxu0 0.0
        %1618 = vmatpush1.msra.mxu0 0.0
        %1619 = vmatprep.subr.mxu0 0.0
        %1620 = vmatpush1.msra.mxu0 0.0
        %1621 = vmatprep.subr.mxu0 0.0
        %1622 = vmatpush1.msra.mxu0 0.0
        %1623 = vmatprep.subr.mxu0 0.0
        %1624 = vmatpush1.msra.mxu0 0.0
        %1625 = vmatprep.subr.mxu0 0.0
        %1626 = vmatpush1.msra.mxu0 0.0
        %1627 = vmatprep.subr.mxu0 0.0
        %1628 = vmatpush1.msra.mxu0 0.0
        %1629 = vmatprep.subr.mxu0 0.0
        %1630 = vmatpush1.msra.mxu0 0.0
        %1631 = vmatprep.subr.mxu0 0.0
        %1632 = vmatpush1.msra.mxu0 0.0
        %1633 = vmatprep.subr.mxu0 0.0
        %1634 = vmatpush1.msra.mxu0 0.0
        %1635 = vmatprep.subr.mxu0 0.0
        %1636 = vmatpush1.msra.mxu0 0.0
        %1637 = vmatprep.subr.mxu0 0.0
        %1638 = vmatpush1.msra.mxu0 0.0
        %1639 = vmatprep.subr.mxu0 0.0
        %1640 = vmatpush1.msra.mxu0 0.0
        %1641 = vmatprep.subr.mxu0 0.0
        %1642 = vmatpush1.msra.mxu0 0.0
        %1643 = vmatprep.subr.mxu0 0.0
        %1644 = vmatpush1.msra.mxu0 0.0
        %1645 = vmatprep.subr.mxu0 0.0
        %1646 = vmatpush1.msra.mxu0 0.0
        %1647 = vmatprep.subr.mxu0 0.0
        %1648 = vmatpush1.msra.mxu0 0.0
        %1649 = vmatprep.subr.mxu0 0.0
        %1650 = vmatpush1.msra.mxu0 0.0
        %1651 = vmatprep.subr.mxu0 0.0
        %1652 = vmatpush1.msra.mxu0 0.0
        %1653 = vmatprep.subr.mxu0 0.0
        %1654 = vmatpush1.msra.mxu0 0.0
        %1655 = vmatprep.subr.mxu0 0.0
        %1656 = vmatpush1.msra.mxu0 0.0
        %1657 = vmatprep.subr.mxu0 0.0
        %1658 = vmatpush1.msra.mxu0 0.0
        %1659 = vmatprep.subr.mxu0 0.0
        %1660 = vmatpush1.msra.mxu0 0.0
        %1661 = vmatprep.mubr.f32.mxu0 0.0
        %1662 = vmatmul.mubr.f32.gmra.mrb[0].mxu0 %v1595
        %v1663 = vpop.f32.mrb[0].mxu0
        %v1664 = vadd.f32 0.0, %v1663
        %v1665 = vpop.f32.mrb[0].mxu0
        %1666 = vdwg.mxu0
        %v1667 = vadd.f32 %v1593, %v1664
        %v1669 = vsel %vm315, %v1515, 0
        %1671 = vmatprep.subr.mxu0 0.0
        %1672 = vmatpush1.msra.mxu0 %v295
        %1673 = vmatprep.subr.mxu0 0.0
        %1674 = vmatpush1.msra.mxu0 %v296
        %1675 = vmatprep.subr.mxu0 0.0
        %1676 = vmatpush1.msra.mxu0 0.0
        %1677 = vmatprep.subr.mxu0 0.0
        %1678 = vmatpush1.msra.mxu0 0.0
        %1679 = vmatprep.subr.mxu0 0.0
        %1680 = vmatpush1.msra.mxu0 0.0
        %1681 = vmatprep.subr.mxu0 0.0
        %1682 = vmatpush1.msra.mxu0 0.0
        %1683 = vmatprep.subr.mxu0 0.0
        %1684 = vmatpush1.msra.mxu0 0.0
        %1685 = vmatprep.subr.mxu0 0.0
        %1686 = vmatpush1.msra.mxu0 0.0
        %1687 = vmatprep.subr.mxu0 0.0
        %1688 = vmatpush1.msra.mxu0 0.0
        %1689 = vmatprep.subr.mxu0 0.0
        %1690 = vmatpush1.msra.mxu0 0.0
        %1691 = vmatprep.subr.mxu0 0.0
        %1692 = vmatpush1.msra.mxu0 0.0
        %1693 = vmatprep.subr.mxu0 0.0
        %1694 = vmatpush1.msra.mxu0 0.0
        %1695 = vmatprep.subr.mxu0 0.0
        %1696 = vmatpush1.msra.mxu0 0.0
        %1697 = vmatprep.subr.mxu0 0.0
        %1698 = vmatpush1.msra.mxu0 0.0
        %1699 = vmatprep.subr.mxu0 0.0
        %1700 = vmatpush1.msra.mxu0 0.0
        %1701 = vmatprep.subr.mxu0 0.0
        %1702 = vmatpush1.msra.mxu0 0.0
        %1703 = vmatprep.subr.mxu0 0.0
        %1704 = vmatpush1.msra.mxu0 0.0
        %1705 = vmatprep.subr.mxu0 0.0
        %1706 = vmatpush1.msra.mxu0 0.0
        %1707 = vmatprep.subr.mxu0 0.0
        %1708 = vmatpush1.msra.mxu0 0.0
        %1709 = vmatprep.subr.mxu0 0.0
        %1710 = vmatpush1.msra.mxu0 0.0
        %1711 = vmatprep.subr.mxu0 0.0
        %1712 = vmatpush1.msra.mxu0 0.0
        %1713 = vmatprep.subr.mxu0 0.0
        %1714 = vmatpush1.msra.mxu0 0.0
        %1715 = vmatprep.subr.mxu0 0.0
        %1716 = vmatpush1.msra.mxu0 0.0
        %1717 = vmatprep.subr.mxu0 0.0
        %1718 = vmatpush1.msra.mxu0 0.0
        %1719 = vmatprep.subr.mxu0 0.0
        %1720 = vmatpush1.msra.mxu0 0.0
        %1721 = vmatprep.subr.mxu0 0.0
        %1722 = vmatpush1.msra.mxu0 0.0
        %1723 = vmatprep.subr.mxu0 0.0
        %1724 = vmatpush1.msra.mxu0 0.0
        %1725 = vmatprep.subr.mxu0 0.0
        %1726 = vmatpush1.msra.mxu0 0.0
        %1727 = vmatprep.subr.mxu0 0.0
        %1728 = vmatpush1.msra.mxu0 0.0
        %1729 = vmatprep.subr.mxu0 0.0
        %1730 = vmatpush1.msra.mxu0 0.0
        %1731 = vmatprep.subr.mxu0 0.0
        %1732 = vmatpush1.msra.mxu0 0.0
        %1733 = vmatprep.subr.mxu0 0.0
        %1734 = vmatpush1.msra.mxu0 0.0
        %1735 = vmatprep.mubr.f32.mxu0 0.0
        %1736 = vmatmul.mubr.f32.gmra.mrb[0].mxu0 %v1669
        %v1737 = vpop.f32.mrb[0].mxu0
        %v1738 = vadd.f32 0.0, %v1737
        %v1739 = vpop.f32.mrb[0].mxu0
        %1740 = vdwg.mxu0
        %v1741 = vadd.f32 %v1667, %v1738
        %v1743 = vsel %vm315, %v1516, 0
        %1745 = vmatprep.subr.mxu0 0.0
        %1746 = vmatpush1.msra.mxu0 %v298
        %1747 = vmatprep.subr.mxu0 0.0
        %1748 = vmatpush1.msra.mxu0 %v299
        %1749 = vmatprep.subr.mxu0 0.0
        %1750 = vmatpush1.msra.mxu0 0.0
        %1751 = vmatprep.subr.mxu0 0.0
        %1752 = vmatpush1.msra.mxu0 0.0
        %1753 = vmatprep.subr.mxu0 0.0
        %1754 = vmatpush1.msra.mxu0 0.0
        %1755 = vmatprep.subr.mxu0 0.0
        %1756 = vmatpush1.msra.mxu0 0.0
        %1757 = vmatprep.subr.mxu0 0.0
        %1758 = vmatpush1.msra.mxu0 0.0
        %1759 = vmatprep.subr.mxu0 0.0
        %1760 = vmatpush1.msra.mxu0 0.0
        %1761 = vmatprep.subr.mxu0 0.0
        %1762 = vmatpush1.msra.mxu0 0.0
        %1763 = vmatprep.subr.mxu0 0.0
        %1764 = vmatpush1.msra.mxu0 0.0
        %1765 = vmatprep.subr.mxu0 0.0
        %1766 = vmatpush1.msra.mxu0 0.0
        %1767 = vmatprep.subr.mxu0 0.0
        %1768 = vmatpush1.msra.mxu0 0.0
        %1769 = vmatprep.subr.mxu0 0.0
        %1770 = vmatpush1.msra.mxu0 0.0
        %1771 = vmatprep.subr.mxu0 0.0
        %1772 = vmatpush1.msra.mxu0 0.0
        %1773 = vmatprep.subr.mxu0 0.0
        %1774 = vmatpush1.msra.mxu0 0.0
        %1775 = vmatprep.subr.mxu0 0.0
        %1776 = vmatpush1.msra.mxu0 0.0
        %1777 = vmatprep.subr.mxu0 0.0
        %1778 = vmatpush1.msra.mxu0 0.0
        %1779 = vmatprep.subr.mxu0 0.0
        %1780 = vmatpush1.msra.mxu0 0.0
        %1781 = vmatprep.subr.mxu0 0.0
        %1782 = vmatpush1.msra.mxu0 0.0
        %1783 = vmatprep.subr.mxu0 0.0
        %1784 = vmatpush1.msra.mxu0 0.0
        %1785 = vmatprep.subr.mxu0 0.0
        %1786 = vmatpush1.msra.mxu0 0.0
        %1787 = vmatprep.subr.mxu0 0.0
        %1788 = vmatpush1.msra.mxu0 0.0
        %1789 = vmatprep.subr.mxu0 0.0
        %1790 = vmatpush1.msra.mxu0 0.0
        %1791 = vmatprep.subr.mxu0 0.0
        %1792 = vmatpush1.msra.mxu0 0.0
        %1793 = vmatprep.subr.mxu0 0.0
        %1794 = vmatpush1.msra.mxu0 0.0
        %1795 = vmatprep.subr.mxu0 0.0
        %1796 = vmatpush1.msra.mxu0 0.0
        %1797 = vmatprep.subr.mxu0 0.0
        %1798 = vmatpush1.msra.mxu0 0.0
        %1799 = vmatprep.subr.mxu0 0.0
        %1800 = vmatpush1.msra.mxu0 0.0
        %1801 = vmatprep.subr.mxu0 0.0
        %1802 = vmatpush1.msra.mxu0 0.0
        %1803 = vmatprep.subr.mxu0 0.0
        %1804 = vmatpush1.msra.mxu0 0.0
        %1805 = vmatprep.subr.mxu0 0.0
        %1806 = vmatpush1.msra.mxu0 0.0
        %1807 = vmatprep.subr.mxu0 0.0
        %1808 = vmatpush1.msra.mxu0 0.0
        %1809 = vmatprep.mubr.f32.mxu0 0.0
        %1810 = vmatmul.mubr.f32.gmra.mrb[0].mxu0 %v1743
        %v1811 = vpop.f32.mrb[0].mxu0
        %v1812 = vadd.f32 0.0, %v1811
        %v1813 = vpop.f32.mrb[0].mxu0
        %1814 = vdwg.mxu0
        %v1815 = vadd.f32 %v1741, %v1812
        %1816 = vmatprep.subr.mxu0 0.0
        %1817 = vmatpush1.msra.mxu0 %v289
        %1818 = vmatprep.subr.mxu0 0.0
        %1819 = vmatpush1.msra.mxu0 %v290
        %1820 = vmatprep.subr.mxu0 0.0
        %1821 = vmatpush1.msra.mxu0 0.0
        %1822 = vmatprep.subr.mxu0 0.0
        %1823 = vmatpush1.msra.mxu0 0.0
        %1824 = vmatprep.subr.mxu0 0.0
        %1825 = vmatpush1.msra.mxu0 0.0
        %1826 = vmatprep.subr.mxu0 0.0
        %1827 = vmatpush1.msra.mxu0 0.0
        %1828 = vmatprep.subr.mxu0 0.0
        %1829 = vmatpush1.msra.mxu0 0.0
        %1830 = vmatprep.subr.mxu0 0.0
        %1831 = vmatpush1.msra.mxu0 0.0
        %1832 = vmatprep.subr.mxu0 0.0
        %1833 = vmatpush1.msra.mxu0 0.0
        %1834 = vmatprep.subr.mxu0 0.0
        %1835 = vmatpush1.msra.mxu0 0.0
        %1836 = vmatprep.subr.mxu0 0.0
        %1837 = vmatpush1.msra.mxu0 0.0
        %1838 = vmatprep.subr.mxu0 0.0
        %1839 = vmatpush1.msra.mxu0 0.0
        %1840 = vmatprep.subr.mxu0 0.0
        %1841 = vmatpush1.msra.mxu0 0.0
        %1842 = vmatprep.subr.mxu0 0.0
        %1843 = vmatpush1.msra.mxu0 0.0
        %1844 = vmatprep.subr.mxu0 0.0
        %1845 = vmatpush1.msra.mxu0 0.0
        %1846 = vmatprep.subr.mxu0 0.0
        %1847 = vmatpush1.msra.mxu0 0.0
        %1848 = vmatprep.subr.mxu0 0.0
        %1849 = vmatpush1.msra.mxu0 0.0
        %1850 = vmatprep.subr.mxu0 0.0
        %1851 = vmatpush1.msra.mxu0 0.0
        %1852 = vmatprep.subr.mxu0 0.0
        %1853 = vmatpush1.msra.mxu0 0.0
        %1854 = vmatprep.subr.mxu0 0.0
        %1855 = vmatpush1.msra.mxu0 0.0
        %1856 = vmatprep.subr.mxu0 0.0
        %1857 = vmatpush1.msra.mxu0 0.0
        %1858 = vmatprep.subr.mxu0 0.0
        %1859 = vmatpush1.msra.mxu0 0.0
        %1860 = vmatprep.subr.mxu0 0.0
        %1861 = vmatpush1.msra.mxu0 0.0
        %1862 = vmatprep.subr.mxu0 0.0
        %1863 = vmatpush1.msra.mxu0 0.0
        %1864 = vmatprep.subr.mxu0 0.0
        %1865 = vmatpush1.msra.mxu0 0.0
        %1866 = vmatprep.subr.mxu0 0.0
        %1867 = vmatpush1.msra.mxu0 0.0
        %1868 = vmatprep.subr.mxu0 0.0
        %1869 = vmatpush1.msra.mxu0 0.0
        %1870 = vmatprep.subr.mxu0 0.0
        %1871 = vmatpush1.msra.mxu0 0.0
        %1872 = vmatprep.subr.mxu0 0.0
        %1873 = vmatpush1.msra.mxu0 0.0
        %1874 = vmatprep.subr.mxu0 0.0
        %1875 = vmatpush1.msra.mxu0 0.0
        %1876 = vmatprep.subr.mxu0 0.0
        %1877 = vmatpush1.msra.mxu0 0.0
        %1878 = vmatprep.subr.mxu0 0.0
        %1879 = vmatpush1.msra.mxu0 0.0
        %1880 = vmatprep.mubr.f32.mxu0 0.0
        %1881 = vmatmul.mubr.f32.gmra.mrb[0].mxu0 %v1669
        %v1882 = vpop.f32.mrb[0].mxu0
        %v1883 = vadd.f32 0.0, %v1882
        %v1884 = vpop.f32.mrb[0].mxu0
        %1885 = vdwg.mxu0
        %v1886 = vadd.f32 %v305, %v1883
        %1887 = vmatprep.subr.mxu0 0.0
        %1888 = vmatpush1.msra.mxu0 %v292
        %1889 = vmatprep.subr.mxu0 0.0
        %1890 = vmatpush1.msra.mxu0 %v293
        %1891 = vmatprep.subr.mxu0 0.0
        %1892 = vmatpush1.msra.mxu0 0.0
        %1893 = vmatprep.subr.mxu0 0.0
        %1894 = vmatpush1.msra.mxu0 0.0
        %1895 = vmatprep.subr.mxu0 0.0
        %1896 = vmatpush1.msra.mxu0 0.0
        %1897 = vmatprep.subr.mxu0 0.0
        %1898 = vmatpush1.msra.mxu0 0.0
        %1899 = vmatprep.subr.mxu0 0.0
        %1900 = vmatpush1.msra.mxu0 0.0
        %1901 = vmatprep.subr.mxu0 0.0
        %1902 = vmatpush1.msra.mxu0 0.0
        %1903 = vmatprep.subr.mxu0 0.0
        %1904 = vmatpush1.msra.mxu0 0.0
        %1905 = vmatprep.subr.mxu0 0.0
        %1906 = vmatpush1.msra.mxu0 0.0
        %1907 = vmatprep.subr.mxu0 0.0
        %1908 = vmatpush1.msra.mxu0 0.0
        %1909 = vmatprep.subr.mxu0 0.0
        %1910 = vmatpush1.msra.mxu0 0.0
        %1911 = vmatprep.subr.mxu0 0.0
        %1912 = vmatpush1.msra.mxu0 0.0
        %1913 = vmatprep.subr.mxu0 0.0
        %1914 = vmatpush1.msra.mxu0 0.0
        %1915 = vmatprep.subr.mxu0 0.0
        %1916 = vmatpush1.msra.mxu0 0.0
        %1917 = vmatprep.subr.mxu0 0.0
        %1918 = vmatpush1.msra.mxu0 0.0
        %1919 = vmatprep.subr.mxu0 0.0
        %1920 = vmatpush1.msra.mxu0 0.0
        %1921 = vmatprep.subr.mxu0 0.0
        %1922 = vmatpush1.msra.mxu0 0.0
        %1923 = vmatprep.subr.mxu0 0.0
        %1924 = vmatpush1.msra.mxu0 0.0
        %1925 = vmatprep.subr.mxu0 0.0
        %1926 = vmatpush1.msra.mxu0 0.0
        %1927 = vmatprep.subr.mxu0 0.0
        %1928 = vmatpush1.msra.mxu0 0.0
        %1929 = vmatprep.subr.mxu0 0.0
        %1930 = vmatpush1.msra.mxu0 0.0
        %1931 = vmatprep.subr.mxu0 0.0
        %1932 = vmatpush1.msra.mxu0 0.0
        %1933 = vmatprep.subr.mxu0 0.0
        %1934 = vmatpush1.msra.mxu0 0.0
        %1935 = vmatprep.subr.mxu0 0.0
        %1936 = vmatpush1.msra.mxu0 0.0
        %1937 = vmatprep.subr.mxu0 0.0
        %1938 = vmatpush1.msra.mxu0 0.0
        %1939 = vmatprep.subr.mxu0 0.0
        %1940 = vmatpush1.msra.mxu0 0.0
        %1941 = vmatprep.subr.mxu0 0.0
        %1942 = vmatpush1.msra.mxu0 0.0
        %1943 = vmatprep.subr.mxu0 0.0
        %1944 = vmatpush1.msra.mxu0 0.0
        %1945 = vmatprep.subr.mxu0 0.0
        %1946 = vmatpush1.msra.mxu0 0.0
        %1947 = vmatprep.subr.mxu0 0.0
        %1948 = vmatpush1.msra.mxu0 0.0
        %1949 = vmatprep.subr.mxu0 0.0
        %1950 = vmatpush1.msra.mxu0 0.0
        %1951 = vmatprep.mubr.f32.mxu0 0.0
        %1952 = vmatmul.mubr.f32.gmra.mrb[0].mxu0 %v1743
        %v1953 = vpop.f32.mrb[0].mxu0
        %v1954 = vadd.f32 0.0, %v1953
        %v1955 = vpop.f32.mrb[0].mxu0
        %1956 = vdwg.mxu0
        %v1957 = vadd.f32 %v1886, %v1954
        %v1959 = vsel %vm315, %v1518, 0
        %1961 = vmatprep.subr.mxu0 0.0
        %1962 = vmatpush1.msra.mxu0 %v295
        %1963 = vmatprep.subr.mxu0 0.0
        %1964 = vmatpush1.msra.mxu0 %v296
        %1965 = vmatprep.subr.mxu0 0.0
        %1966 = vmatpush1.msra.mxu0 0.0
        %1967 = vmatprep.subr.mxu0 0.0
        %1968 = vmatpush1.msra.mxu0 0.0
        %1969 = vmatprep.subr.mxu0 0.0
        %1970 = vmatpush1.msra.mxu0 0.0
        %1971 = vmatprep.subr.mxu0 0.0
        %1972 = vmatpush1.msra.mxu0 0.0
        %1973 = vmatprep.subr.mxu0 0.0
        %1974 = vmatpush1.msra.mxu0 0.0
        %1975 = vmatprep.subr.mxu0 0.0
        %1976 = vmatpush1.msra.mxu0 0.0
        %1977 = vmatprep.subr.mxu0 0.0
        %1978 = vmatpush1.msra.mxu0 0.0
        %1979 = vmatprep.subr.mxu0 0.0
        %1980 = vmatpush1.msra.mxu0 0.0
        %1981 = vmatprep.subr.mxu0 0.0
        %1982 = vmatpush1.msra.mxu0 0.0
        %1983 = vmatprep.subr.mxu0 0.0
        %1984 = vmatpush1.msra.mxu0 0.0
        %1985 = vmatprep.subr.mxu0 0.0
        %1986 = vmatpush1.msra.mxu0 0.0
        %1987 = vmatprep.subr.mxu0 0.0
        %1988 = vmatpush1.msra.mxu0 0.0
        %1989 = vmatprep.subr.mxu0 0.0
        %1990 = vmatpush1.msra.mxu0 0.0
        %1991 = vmatprep.subr.mxu0 0.0
        %1992 = vmatpush1.msra.mxu0 0.0
        %1993 = vmatprep.subr.mxu0 0.0
        %1994 = vmatpush1.msra.mxu0 0.0
        %1995 = vmatprep.subr.mxu0 0.0
        %1996 = vmatpush1.msra.mxu0 0.0
        %1997 = vmatprep.subr.mxu0 0.0
        %1998 = vmatpush1.msra.mxu0 0.0
        %1999 = vmatprep.subr.mxu0 0.0
        %2000 = vmatpush1.msra.mxu0 0.0
        %2001 = vmatprep.subr.mxu0 0.0
        %2002 = vmatpush1.msra.mxu0 0.0
        %2003 = vmatprep.subr.mxu0 0.0
        %2004 = vmatpush1.msra.mxu0 0.0
        %2005 = vmatprep.subr.mxu0 0.0
        %2006 = vmatpush1.msra.mxu0 0.0
        %2007 = vmatprep.subr.mxu0 0.0
        %2008 = vmatpush1.msra.mxu0 0.0
        %2009 = vmatprep.subr.mxu0 0.0
        %2010 = vmatpush1.msra.mxu0 0.0
        %2011 = vmatprep.subr.mxu0 0.0
        %2012 = vmatpush1.msra.mxu0 0.0
        %2013 = vmatprep.subr.mxu0 0.0
        %2014 = vmatpush1.msra.mxu0 0.0
        %2015 = vmatprep.subr.mxu0 0.0
        %2016 = vmatpush1.msra.mxu0 0.0
        %2017 = vmatprep.subr.mxu0 0.0
        %2018 = vmatpush1.msra.mxu0 0.0
        %2019 = vmatprep.subr.mxu0 0.0
        %2020 = vmatpush1.msra.mxu0 0.0
        %2021 = vmatprep.subr.mxu0 0.0
        %2022 = vmatpush1.msra.mxu0 0.0
        %2023 = vmatprep.subr.mxu0 0.0
        %2024 = vmatpush1.msra.mxu0 0.0
        %2025 = vmatprep.mubr.f32.mxu0 0.0
        %2026 = vmatmul.mubr.f32.gmra.mrb[0].mxu0 %v1959
        %v2027 = vpop.f32.mrb[0].mxu0
        %v2028 = vadd.f32 0.0, %v2027
        %v2029 = vpop.f32.mrb[0].mxu0
        %2030 = vdwg.mxu0
        %v2031 = vadd.f32 %v1957, %v2028
        %v2033 = vsel %vm315, %v1519, 0
        %2035 = vmatprep.subr.mxu0 0.0
        %2036 = vmatpush1.msra.mxu0 %v298
        %2037 = vmatprep.subr.mxu0 0.0
        %2038 = vmatpush1.msra.mxu0 %v299
        %2039 = vmatprep.subr.mxu0 0.0
        %2040 = vmatpush1.msra.mxu0 0.0
        %2041 = vmatprep.subr.mxu0 0.0
        %2042 = vmatpush1.msra.mxu0 0.0
        %2043 = vmatprep.subr.mxu0 0.0
        %2044 = vmatpush1.msra.mxu0 0.0
        %2045 = vmatprep.subr.mxu0 0.0
        %2046 = vmatpush1.msra.mxu0 0.0
        %2047 = vmatprep.subr.mxu0 0.0
        %2048 = vmatpush1.msra.mxu0 0.0
        %2049 = vmatprep.subr.mxu0 0.0
        %2050 = vmatpush1.msra.mxu0 0.0
        %2051 = vmatprep.subr.mxu0 0.0
        %2052 = vmatpush1.msra.mxu0 0.0
        %2053 = vmatprep.subr.mxu0 0.0
        %2054 = vmatpush1.msra.mxu0 0.0
        %2055 = vmatprep.subr.mxu0 0.0
        %2056 = vmatpush1.msra.mxu0 0.0
        %2057 = vmatprep.subr.mxu0 0.0
        %2058 = vmatpush1.msra.mxu0 0.0
        %2059 = vmatprep.subr.mxu0 0.0
        %2060 = vmatpush1.msra.mxu0 0.0
        %2061 = vmatprep.subr.mxu0 0.0
        %2062 = vmatpush1.msra.mxu0 0.0
        %2063 = vmatprep.subr.mxu0 0.0
        %2064 = vmatpush1.msra.mxu0 0.0
        %2065 = vmatprep.subr.mxu0 0.0
        %2066 = vmatpush1.msra.mxu0 0.0
        %2067 = vmatprep.subr.mxu0 0.0
        %2068 = vmatpush1.msra.mxu0 0.0
        %2069 = vmatprep.subr.mxu0 0.0
        %2070 = vmatpush1.msra.mxu0 0.0
        %2071 = vmatprep.subr.mxu0 0.0
        %2072 = vmatpush1.msra.mxu0 0.0
        %2073 = vmatprep.subr.mxu0 0.0
        %2074 = vmatpush1.msra.mxu0 0.0
        %2075 = vmatprep.subr.mxu0 0.0
        %2076 = vmatpush1.msra.mxu0 0.0
        %2077 = vmatprep.subr.mxu0 0.0
        %2078 = vmatpush1.msra.mxu0 0.0
        %2079 = vmatprep.subr.mxu0 0.0
        %2080 = vmatpush1.msra.mxu0 0.0
        %2081 = vmatprep.subr.mxu0 0.0
        %2082 = vmatpush1.msra.mxu0 0.0
        %2083 = vmatprep.subr.mxu0 0.0
        %2084 = vmatpush1.msra.mxu0 0.0
        %2085 = vmatprep.subr.mxu0 0.0
        %2086 = vmatpush1.msra.mxu0 0.0
        %2087 = vmatprep.subr.mxu0 0.0
        %2088 = vmatpush1.msra.mxu0 0.0
        %2089 = vmatprep.subr.mxu0 0.0
        %2090 = vmatpush1.msra.mxu0 0.0
        %2091 = vmatprep.subr.mxu0 0.0
        %2092 = vmatpush1.msra.mxu0 0.0
        %2093 = vmatprep.subr.mxu0 0.0
        %2094 = vmatpush1.msra.mxu0 0.0
        %2095 = vmatprep.subr.mxu0 0.0
        %2096 = vmatpush1.msra.mxu0 0.0
        %2097 = vmatprep.subr.mxu0 0.0
        %2098 = vmatpush1.msra.mxu0 0.0
        %2099 = vmatprep.mubr.f32.mxu0 0.0
        %2100 = vmatmul.mubr.f32.gmra.mrb[0].mxu0 %v2033
        %v2101 = vpop.f32.mrb[0].mxu0
        %v2102 = vadd.f32 0.0, %v2101
        %v2103 = vpop.f32.mrb[0].mxu0
        %2104 = vdwg.mxu0
        %v2105 = vadd.f32 %v2031, %v2102
        %v2106 = vmax.f32 %v1815, %v2105
        %2107 = vst.msk [vmem:[#allocation2] sm:$0xff] %vm903, %v2106
        %v2108 = vld [vmem:[#allocation2] ss:$2 sm:$0xf]
        %v2109 = vld [vmem:[%s906] ss:$2 sm:$0xf]
        %v2110 = vmax.f32 %v2108, %v2109
        %s2111 = scalar_lea.vmem %s257, 8 [#allocation3]
        %2112 = vst.msk [vmem:[%s2111] sm:$0xf] %vm909, %v2110
        %v2113 = vld [vmem:[%s1517] sm:$0xff]
        %v2114 = vld [vmem:[%s1517 + $0x1] sm:$0xff]
        %s2115 = scalar_lea.vmem %s272, 112
        %v2116 = vld [vmem:[%s2115] sm:$0xff]
        %v2117 = vld [vmem:[%s2115 + $0x1] sm:$0xff]
        %v2118 = vld [vmem:[%s287] sm:$0xff]
        %v2119 = vld [vmem:[%s287 + $0x1] sm:$0xff]
        %v2121 = vsel %vm315, %v2113, 0
        %2123 = vmatprep.subr.mxu0 0.0
        %2124 = vmatpush1.msra.mxu0 %v289
        %2125 = vmatprep.subr.mxu0 0.0
        %2126 = vmatpush1.msra.mxu0 %v290
        %2127 = vmatprep.subr.mxu0 0.0
        %2128 = vmatpush1.msra.mxu0 0.0
        %2129 = vmatprep.subr.mxu0 0.0
        %2130 = vmatpush1.msra.mxu0 0.0
        %2131 = vmatprep.subr.mxu0 0.0
        %2132 = vmatpush1.msra.mxu0 0.0
        %2133 = vmatprep.subr.mxu0 0.0
        %2134 = vmatpush1.msra.mxu0 0.0
        %2135 = vmatprep.subr.mxu0 0.0
        %2136 = vmatpush1.msra.mxu0 0.0
        %2137 = vmatprep.subr.mxu0 0.0
        %2138 = vmatpush1.msra.mxu0 0.0
        %2139 = vmatprep.subr.mxu0 0.0
        %2140 = vmatpush1.msra.mxu0 0.0
        %2141 = vmatprep.subr.mxu0 0.0
        %2142 = vmatpush1.msra.mxu0 0.0
        %2143 = vmatprep.subr.mxu0 0.0
        %2144 = vmatpush1.msra.mxu0 0.0
        %2145 = vmatprep.subr.mxu0 0.0
        %2146 = vmatpush1.msra.mxu0 0.0
        %2147 = vmatprep.subr.mxu0 0.0
        %2148 = vmatpush1.msra.mxu0 0.0
        %2149 = vmatprep.subr.mxu0 0.0
        %2150 = vmatpush1.msra.mxu0 0.0
        %2151 = vmatprep.subr.mxu0 0.0
        %2152 = vmatpush1.msra.mxu0 0.0
        %2153 = vmatprep.subr.mxu0 0.0
        %2154 = vmatpush1.msra.mxu0 0.0
        %2155 = vmatprep.subr.mxu0 0.0
        %2156 = vmatpush1.msra.mxu0 0.0
        %2157 = vmatprep.subr.mxu0 0.0
        %2158 = vmatpush1.msra.mxu0 0.0
        %2159 = vmatprep.subr.mxu0 0.0
        %2160 = vmatpush1.msra.mxu0 0.0
        %2161 = vmatprep.subr.mxu0 0.0
        %2162 = vmatpush1.msra.mxu0 0.0
        %2163 = vmatprep.subr.mxu0 0.0
        %2164 = vmatpush1.msra.mxu0 0.0
        %2165 = vmatprep.subr.mxu0 0.0
        %2166 = vmatpush1.msra.mxu0 0.0
        %2167 = vmatprep.subr.mxu0 0.0
        %2168 = vmatpush1.msra.mxu0 0.0
        %2169 = vmatprep.subr.mxu0 0.0
        %2170 = vmatpush1.msra.mxu0 0.0
        %2171 = vmatprep.subr.mxu0 0.0
        %2172 = vmatpush1.msra.mxu0 0.0
        %2173 = vmatprep.subr.mxu0 0.0
        %2174 = vmatpush1.msra.mxu0 0.0
        %2175 = vmatprep.subr.mxu0 0.0
        %2176 = vmatpush1.msra.mxu0 0.0
        %2177 = vmatprep.subr.mxu0 0.0
        %2178 = vmatpush1.msra.mxu0 0.0
        %2179 = vmatprep.subr.mxu0 0.0
        %2180 = vmatpush1.msra.mxu0 0.0
        %2181 = vmatprep.subr.mxu0 0.0
        %2182 = vmatpush1.msra.mxu0 0.0
        %2183 = vmatprep.subr.mxu0 0.0
        %2184 = vmatpush1.msra.mxu0 0.0
        %2185 = vmatprep.subr.mxu0 0.0
        %2186 = vmatpush1.msra.mxu0 0.0
        %2187 = vmatprep.mubr.f32.mxu0 0.0
        %2188 = vmatmul.mubr.f32.gmra.mrb[0].mxu0 %v2121
        %v2189 = vpop.f32.mrb[0].mxu0
        %v2190 = vadd.f32 0.0, %v2189
        %v2191 = vpop.f32.mrb[0].mxu0
        %2192 = vdwg.mxu0
        %v2193 = vadd.f32 %v305, %v2190
        %v2195 = vsel %vm315, %v2114, 0
        %2197 = vmatprep.subr.mxu0 0.0
        %2198 = vmatpush1.msra.mxu0 %v292
        %2199 = vmatprep.subr.mxu0 0.0
        %2200 = vmatpush1.msra.mxu0 %v293
        %2201 = vmatprep.subr.mxu0 0.0
        %2202 = vmatpush1.msra.mxu0 0.0
        %2203 = vmatprep.subr.mxu0 0.0
        %2204 = vmatpush1.msra.mxu0 0.0
        %2205 = vmatprep.subr.mxu0 0.0
        %2206 = vmatpush1.msra.mxu0 0.0
        %2207 = vmatprep.subr.mxu0 0.0
        %2208 = vmatpush1.msra.mxu0 0.0
        %2209 = vmatprep.subr.mxu0 0.0
        %2210 = vmatpush1.msra.mxu0 0.0
        %2211 = vmatprep.subr.mxu0 0.0
        %2212 = vmatpush1.msra.mxu0 0.0
        %2213 = vmatprep.subr.mxu0 0.0
        %2214 = vmatpush1.msra.mxu0 0.0
        %2215 = vmatprep.subr.mxu0 0.0
        %2216 = vmatpush1.msra.mxu0 0.0
        %2217 = vmatprep.subr.mxu0 0.0
        %2218 = vmatpush1.msra.mxu0 0.0
        %2219 = vmatprep.subr.mxu0 0.0
        %2220 = vmatpush1.msra.mxu0 0.0
        %2221 = vmatprep.subr.mxu0 0.0
        %2222 = vmatpush1.msra.mxu0 0.0
        %2223 = vmatprep.subr.mxu0 0.0
        %2224 = vmatpush1.msra.mxu0 0.0
        %2225 = vmatprep.subr.mxu0 0.0
        %2226 = vmatpush1.msra.mxu0 0.0
        %2227 = vmatprep.subr.mxu0 0.0
        %2228 = vmatpush1.msra.mxu0 0.0
        %2229 = vmatprep.subr.mxu0 0.0
        %2230 = vmatpush1.msra.mxu0 0.0
        %2231 = vmatprep.subr.mxu0 0.0
        %2232 = vmatpush1.msra.mxu0 0.0
        %2233 = vmatprep.subr.mxu0 0.0
        %2234 = vmatpush1.msra.mxu0 0.0
        %2235 = vmatprep.subr.mxu0 0.0
        %2236 = vmatpush1.msra.mxu0 0.0
        %2237 = vmatprep.subr.mxu0 0.0
        %2238 = vmatpush1.msra.mxu0 0.0
        %2239 = vmatprep.subr.mxu0 0.0
        %2240 = vmatpush1.msra.mxu0 0.0
        %2241 = vmatprep.subr.mxu0 0.0
        %2242 = vmatpush1.msra.mxu0 0.0
        %2243 = vmatprep.subr.mxu0 0.0
        %2244 = vmatpush1.msra.mxu0 0.0
        %2245 = vmatprep.subr.mxu0 0.0
        %2246 = vmatpush1.msra.mxu0 0.0
        %2247 = vmatprep.subr.mxu0 0.0
        %2248 = vmatpush1.msra.mxu0 0.0
        %2249 = vmatprep.subr.mxu0 0.0
        %2250 = vmatpush1.msra.mxu0 0.0
        %2251 = vmatprep.subr.mxu0 0.0
        %2252 = vmatpush1.msra.mxu0 0.0
        %2253 = vmatprep.subr.mxu0 0.0
        %2254 = vmatpush1.msra.mxu0 0.0
        %2255 = vmatprep.subr.mxu0 0.0
        %2256 = vmatpush1.msra.mxu0 0.0
        %2257 = vmatprep.subr.mxu0 0.0
        %2258 = vmatpush1.msra.mxu0 0.0
        %2259 = vmatprep.subr.mxu0 0.0
        %2260 = vmatpush1.msra.mxu0 0.0
        %2261 = vmatprep.mubr.f32.mxu0 0.0
        %2262 = vmatmul.mubr.f32.gmra.mrb[0].mxu0 %v2195
        %v2263 = vpop.f32.mrb[0].mxu0
        %v2264 = vadd.f32 0.0, %v2263
        %v2265 = vpop.f32.mrb[0].mxu0
        %2266 = vdwg.mxu0
        %v2267 = vadd.f32 %v2193, %v2264
        %v2269 = vsel %vm315, %v2116, 0
        %2271 = vmatprep.subr.mxu0 0.0
        %2272 = vmatpush1.msra.mxu0 %v295
        %2273 = vmatprep.subr.mxu0 0.0
        %2274 = vmatpush1.msra.mxu0 %v296
        %2275 = vmatprep.subr.mxu0 0.0
        %2276 = vmatpush1.msra.mxu0 0.0
        %2277 = vmatprep.subr.mxu0 0.0
        %2278 = vmatpush1.msra.mxu0 0.0
        %2279 = vmatprep.subr.mxu0 0.0
        %2280 = vmatpush1.msra.mxu0 0.0
        %2281 = vmatprep.subr.mxu0 0.0
        %2282 = vmatpush1.msra.mxu0 0.0
        %2283 = vmatprep.subr.mxu0 0.0
        %2284 = vmatpush1.msra.mxu0 0.0
        %2285 = vmatprep.subr.mxu0 0.0
        %2286 = vmatpush1.msra.mxu0 0.0
        %2287 = vmatprep.subr.mxu0 0.0
        %2288 = vmatpush1.msra.mxu0 0.0
        %2289 = vmatprep.subr.mxu0 0.0
        %2290 = vmatpush1.msra.mxu0 0.0
        %2291 = vmatprep.subr.mxu0 0.0
        %2292 = vmatpush1.msra.mxu0 0.0
        %2293 = vmatprep.subr.mxu0 0.0
        %2294 = vmatpush1.msra.mxu0 0.0
        %2295 = vmatprep.subr.mxu0 0.0
        %2296 = vmatpush1.msra.mxu0 0.0
        %2297 = vmatprep.subr.mxu0 0.0
        %2298 = vmatpush1.msra.mxu0 0.0
        %2299 = vmatprep.subr.mxu0 0.0
        %2300 = vmatpush1.msra.mxu0 0.0
        %2301 = vmatprep.subr.mxu0 0.0
        %2302 = vmatpush1.msra.mxu0 0.0
        %2303 = vmatprep.subr.mxu0 0.0
        %2304 = vmatpush1.msra.mxu0 0.0
        %2305 = vmatprep.subr.mxu0 0.0
        %2306 = vmatpush1.msra.mxu0 0.0
        %2307 = vmatprep.subr.mxu0 0.0
        %2308 = vmatpush1.msra.mxu0 0.0
        %2309 = vmatprep.subr.mxu0 0.0
        %2310 = vmatpush1.msra.mxu0 0.0
        %2311 = vmatprep.subr.mxu0 0.0
        %2312 = vmatpush1.msra.mxu0 0.0
        %2313 = vmatprep.subr.mxu0 0.0
        %2314 = vmatpush1.msra.mxu0 0.0
        %2315 = vmatprep.subr.mxu0 0.0
        %2316 = vmatpush1.msra.mxu0 0.0
        %2317 = vmatprep.subr.mxu0 0.0
        %2318 = vmatpush1.msra.mxu0 0.0
        %2319 = vmatprep.subr.mxu0 0.0
        %2320 = vmatpush1.msra.mxu0 0.0
        %2321 = vmatprep.subr.mxu0 0.0
        %2322 = vmatpush1.msra.mxu0 0.0
        %2323 = vmatprep.subr.mxu0 0.0
        %2324 = vmatpush1.msra.mxu0 0.0
        %2325 = vmatprep.subr.mxu0 0.0
        %2326 = vmatpush1.msra.mxu0 0.0
        %2327 = vmatprep.subr.mxu0 0.0
        %2328 = vmatpush1.msra.mxu0 0.0
        %2329 = vmatprep.subr.mxu0 0.0
        %2330 = vmatpush1.msra.mxu0 0.0
        %2331 = vmatprep.subr.mxu0 0.0
        %2332 = vmatpush1.msra.mxu0 0.0
        %2333 = vmatprep.subr.mxu0 0.0
        %2334 = vmatpush1.msra.mxu0 0.0
        %2335 = vmatprep.mubr.f32.mxu0 0.0
        %2336 = vmatmul.mubr.f32.gmra.mrb[0].mxu0 %v2269
        %v2337 = vpop.f32.mrb[0].mxu0
        %v2338 = vadd.f32 0.0, %v2337
        %v2339 = vpop.f32.mrb[0].mxu0
        %2340 = vdwg.mxu0
        %v2341 = vadd.f32 %v2267, %v2338
        %v2343 = vsel %vm315, %v2117, 0
        %2345 = vmatprep.subr.mxu0 0.0
        %2346 = vmatpush1.msra.mxu0 %v298
        %2347 = vmatprep.subr.mxu0 0.0
        %2348 = vmatpush1.msra.mxu0 %v299
        %2349 = vmatprep.subr.mxu0 0.0
        %2350 = vmatpush1.msra.mxu0 0.0
        %2351 = vmatprep.subr.mxu0 0.0
        %2352 = vmatpush1.msra.mxu0 0.0
        %2353 = vmatprep.subr.mxu0 0.0
        %2354 = vmatpush1.msra.mxu0 0.0
        %2355 = vmatprep.subr.mxu0 0.0
        %2356 = vmatpush1.msra.mxu0 0.0
        %2357 = vmatprep.subr.mxu0 0.0
        %2358 = vmatpush1.msra.mxu0 0.0
        %2359 = vmatprep.subr.mxu0 0.0
        %2360 = vmatpush1.msra.mxu0 0.0
        %2361 = vmatprep.subr.mxu0 0.0
        %2362 = vmatpush1.msra.mxu0 0.0
        %2363 = vmatprep.subr.mxu0 0.0
        %2364 = vmatpush1.msra.mxu0 0.0
        %2365 = vmatprep.subr.mxu0 0.0
        %2366 = vmatpush1.msra.mxu0 0.0
        %2367 = vmatprep.subr.mxu0 0.0
        %2368 = vmatpush1.msra.mxu0 0.0
        %2369 = vmatprep.subr.mxu0 0.0
        %2370 = vmatpush1.msra.mxu0 0.0
        %2371 = vmatprep.subr.mxu0 0.0
        %2372 = vmatpush1.msra.mxu0 0.0
        %2373 = vmatprep.subr.mxu0 0.0
        %2374 = vmatpush1.msra.mxu0 0.0
        %2375 = vmatprep.subr.mxu0 0.0
        %2376 = vmatpush1.msra.mxu0 0.0
        %2377 = vmatprep.subr.mxu0 0.0
        %2378 = vmatpush1.msra.mxu0 0.0
        %2379 = vmatprep.subr.mxu0 0.0
        %2380 = vmatpush1.msra.mxu0 0.0
        %2381 = vmatprep.subr.mxu0 0.0
        %2382 = vmatpush1.msra.mxu0 0.0
        %2383 = vmatprep.subr.mxu0 0.0
        %2384 = vmatpush1.msra.mxu0 0.0
        %2385 = vmatprep.subr.mxu0 0.0
        %2386 = vmatpush1.msra.mxu0 0.0
        %2387 = vmatprep.subr.mxu0 0.0
        %2388 = vmatpush1.msra.mxu0 0.0
        %2389 = vmatprep.subr.mxu0 0.0
        %2390 = vmatpush1.msra.mxu0 0.0
        %2391 = vmatprep.subr.mxu0 0.0
        %2392 = vmatpush1.msra.mxu0 0.0
        %2393 = vmatprep.subr.mxu0 0.0
        %2394 = vmatpush1.msra.mxu0 0.0
        %2395 = vmatprep.subr.mxu0 0.0
        %2396 = vmatpush1.msra.mxu0 0.0
        %2397 = vmatprep.subr.mxu0 0.0
        %2398 = vmatpush1.msra.mxu0 0.0
        %2399 = vmatprep.subr.mxu0 0.0
        %2400 = vmatpush1.msra.mxu0 0.0
        %2401 = vmatprep.subr.mxu0 0.0
        %2402 = vmatpush1.msra.mxu0 0.0
        %2403 = vmatprep.subr.mxu0 0.0
        %2404 = vmatpush1.msra.mxu0 0.0
        %2405 = vmatprep.subr.mxu0 0.0
        %2406 = vmatpush1.msra.mxu0 0.0
        %2407 = vmatprep.subr.mxu0 0.0
        %2408 = vmatpush1.msra.mxu0 0.0
        %2409 = vmatprep.mubr.f32.mxu0 0.0
        %2410 = vmatmul.mubr.f32.gmra.mrb[0].mxu0 %v2343
        %v2411 = vpop.f32.mrb[0].mxu0
        %v2412 = vadd.f32 0.0, %v2411
        %v2413 = vpop.f32.mrb[0].mxu0
        %2414 = vdwg.mxu0
        %v2415 = vadd.f32 %v2341, %v2412
        %2416 = vmatprep.subr.mxu0 0.0
        %2417 = vmatpush1.msra.mxu0 %v289
        %2418 = vmatprep.subr.mxu0 0.0
        %2419 = vmatpush1.msra.mxu0 %v290
        %2420 = vmatprep.subr.mxu0 0.0
        %2421 = vmatpush1.msra.mxu0 0.0
        %2422 = vmatprep.subr.mxu0 0.0
        %2423 = vmatpush1.msra.mxu0 0.0
        %2424 = vmatprep.subr.mxu0 0.0
        %2425 = vmatpush1.msra.mxu0 0.0
        %2426 = vmatprep.subr.mxu0 0.0
        %2427 = vmatpush1.msra.mxu0 0.0
        %2428 = vmatprep.subr.mxu0 0.0
        %2429 = vmatpush1.msra.mxu0 0.0
        %2430 = vmatprep.subr.mxu0 0.0
        %2431 = vmatpush1.msra.mxu0 0.0
        %2432 = vmatprep.subr.mxu0 0.0
        %2433 = vmatpush1.msra.mxu0 0.0
        %2434 = vmatprep.subr.mxu0 0.0
        %2435 = vmatpush1.msra.mxu0 0.0
        %2436 = vmatprep.subr.mxu0 0.0
        %2437 = vmatpush1.msra.mxu0 0.0
        %2438 = vmatprep.subr.mxu0 0.0
        %2439 = vmatpush1.msra.mxu0 0.0
        %2440 = vmatprep.subr.mxu0 0.0
        %2441 = vmatpush1.msra.mxu0 0.0
        %2442 = vmatprep.subr.mxu0 0.0
        %2443 = vmatpush1.msra.mxu0 0.0
        %2444 = vmatprep.subr.mxu0 0.0
        %2445 = vmatpush1.msra.mxu0 0.0
        %2446 = vmatprep.subr.mxu0 0.0
        %2447 = vmatpush1.msra.mxu0 0.0
        %2448 = vmatprep.subr.mxu0 0.0
        %2449 = vmatpush1.msra.mxu0 0.0
        %2450 = vmatprep.subr.mxu0 0.0
        %2451 = vmatpush1.msra.mxu0 0.0
        %2452 = vmatprep.subr.mxu0 0.0
        %2453 = vmatpush1.msra.mxu0 0.0
        %2454 = vmatprep.subr.mxu0 0.0
        %2455 = vmatpush1.msra.mxu0 0.0
        %2456 = vmatprep.subr.mxu0 0.0
        %2457 = vmatpush1.msra.mxu0 0.0
        %2458 = vmatprep.subr.mxu0 0.0
        %2459 = vmatpush1.msra.mxu0 0.0
        %2460 = vmatprep.subr.mxu0 0.0
        %2461 = vmatpush1.msra.mxu0 0.0
        %2462 = vmatprep.subr.mxu0 0.0
        %2463 = vmatpush1.msra.mxu0 0.0
        %2464 = vmatprep.subr.mxu0 0.0
        %2465 = vmatpush1.msra.mxu0 0.0
        %2466 = vmatprep.subr.mxu0 0.0
        %2467 = vmatpush1.msra.mxu0 0.0
        %2468 = vmatprep.subr.mxu0 0.0
        %2469 = vmatpush1.msra.mxu0 0.0
        %2470 = vmatprep.subr.mxu0 0.0
        %2471 = vmatpush1.msra.mxu0 0.0
        %2472 = vmatprep.subr.mxu0 0.0
        %2473 = vmatpush1.msra.mxu0 0.0
        %2474 = vmatprep.subr.mxu0 0.0
        %2475 = vmatpush1.msra.mxu0 0.0
        %2476 = vmatprep.subr.mxu0 0.0
        %2477 = vmatpush1.msra.mxu0 0.0
        %2478 = vmatprep.subr.mxu0 0.0
        %2479 = vmatpush1.msra.mxu0 0.0
        %2480 = vmatprep.mubr.f32.mxu0 0.0
        %2481 = vmatmul.mubr.f32.gmra.mrb[0].mxu0 %v2269
        %v2482 = vpop.f32.mrb[0].mxu0
        %v2483 = vadd.f32 0.0, %v2482
        %v2484 = vpop.f32.mrb[0].mxu0
        %2485 = vdwg.mxu0
        %v2486 = vadd.f32 %v305, %v2483
        %2487 = vmatprep.subr.mxu0 0.0
        %2488 = vmatpush1.msra.mxu0 %v292
        %2489 = vmatprep.subr.mxu0 0.0
        %2490 = vmatpush1.msra.mxu0 %v293
        %2491 = vmatprep.subr.mxu0 0.0
        %2492 = vmatpush1.msra.mxu0 0.0
        %2493 = vmatprep.subr.mxu0 0.0
        %2494 = vmatpush1.msra.mxu0 0.0
        %2495 = vmatprep.subr.mxu0 0.0
        %2496 = vmatpush1.msra.mxu0 0.0
        %2497 = vmatprep.subr.mxu0 0.0
        %2498 = vmatpush1.msra.mxu0 0.0
        %2499 = vmatprep.subr.mxu0 0.0
        %2500 = vmatpush1.msra.mxu0 0.0
        %2501 = vmatprep.subr.mxu0 0.0
        %2502 = vmatpush1.msra.mxu0 0.0
        %2503 = vmatprep.subr.mxu0 0.0
        %2504 = vmatpush1.msra.mxu0 0.0
        %2505 = vmatprep.subr.mxu0 0.0
        %2506 = vmatpush1.msra.mxu0 0.0
        %2507 = vmatprep.subr.mxu0 0.0
        %2508 = vmatpush1.msra.mxu0 0.0
        %2509 = vmatprep.subr.mxu0 0.0
        %2510 = vmatpush1.msra.mxu0 0.0
        %2511 = vmatprep.subr.mxu0 0.0
        %2512 = vmatpush1.msra.mxu0 0.0
        %2513 = vmatprep.subr.mxu0 0.0
        %2514 = vmatpush1.msra.mxu0 0.0
        %2515 = vmatprep.subr.mxu0 0.0
        %2516 = vmatpush1.msra.mxu0 0.0
        %2517 = vmatprep.subr.mxu0 0.0
        %2518 = vmatpush1.msra.mxu0 0.0
        %2519 = vmatprep.subr.mxu0 0.0
        %2520 = vmatpush1.msra.mxu0 0.0
        %2521 = vmatprep.subr.mxu0 0.0
        %2522 = vmatpush1.msra.mxu0 0.0
        %2523 = vmatprep.subr.mxu0 0.0
        %2524 = vmatpush1.msra.mxu0 0.0
        %2525 = vmatprep.subr.mxu0 0.0
        %2526 = vmatpush1.msra.mxu0 0.0
        %2527 = vmatprep.subr.mxu0 0.0
        %2528 = vmatpush1.msra.mxu0 0.0
        %2529 = vmatprep.subr.mxu0 0.0
        %2530 = vmatpush1.msra.mxu0 0.0
        %2531 = vmatprep.subr.mxu0 0.0
        %2532 = vmatpush1.msra.mxu0 0.0
        %2533 = vmatprep.subr.mxu0 0.0
        %2534 = vmatpush1.msra.mxu0 0.0
        %2535 = vmatprep.subr.mxu0 0.0
        %2536 = vmatpush1.msra.mxu0 0.0
        %2537 = vmatprep.subr.mxu0 0.0
        %2538 = vmatpush1.msra.mxu0 0.0
        %2539 = vmatprep.subr.mxu0 0.0
        %2540 = vmatpush1.msra.mxu0 0.0
        %2541 = vmatprep.subr.mxu0 0.0
        %2542 = vmatpush1.msra.mxu0 0.0
        %2543 = vmatprep.subr.mxu0 0.0
        %2544 = vmatpush1.msra.mxu0 0.0
        %2545 = vmatprep.subr.mxu0 0.0
        %2546 = vmatpush1.msra.mxu0 0.0
        %2547 = vmatprep.subr.mxu0 0.0
        %2548 = vmatpush1.msra.mxu0 0.0
        %2549 = vmatprep.subr.mxu0 0.0
        %2550 = vmatpush1.msra.mxu0 0.0
        %2551 = vmatprep.mubr.f32.mxu0 0.0
        %2552 = vmatmul.mubr.f32.gmra.mrb[0].mxu0 %v2343
        %v2553 = vpop.f32.mrb[0].mxu0
        %v2554 = vadd.f32 0.0, %v2553
        %v2555 = vpop.f32.mrb[0].mxu0
        %2556 = vdwg.mxu0
        %v2557 = vadd.f32 %v2486, %v2554
        %v2559 = vsel %vm315, %v2118, 0
        %2561 = vmatprep.subr.mxu0 0.0
        %2562 = vmatpush1.msra.mxu0 %v295
        %2563 = vmatprep.subr.mxu0 0.0
        %2564 = vmatpush1.msra.mxu0 %v296
        %2565 = vmatprep.subr.mxu0 0.0
        %2566 = vmatpush1.msra.mxu0 0.0
        %2567 = vmatprep.subr.mxu0 0.0
        %2568 = vmatpush1.msra.mxu0 0.0
        %2569 = vmatprep.subr.mxu0 0.0
        %2570 = vmatpush1.msra.mxu0 0.0
        %2571 = vmatprep.subr.mxu0 0.0
        %2572 = vmatpush1.msra.mxu0 0.0
        %2573 = vmatprep.subr.mxu0 0.0
        %2574 = vmatpush1.msra.mxu0 0.0
        %2575 = vmatprep.subr.mxu0 0.0
        %2576 = vmatpush1.msra.mxu0 0.0
        %2577 = vmatprep.subr.mxu0 0.0
        %2578 = vmatpush1.msra.mxu0 0.0
        %2579 = vmatprep.subr.mxu0 0.0
        %2580 = vmatpush1.msra.mxu0 0.0
        %2581 = vmatprep.subr.mxu0 0.0
        %2582 = vmatpush1.msra.mxu0 0.0
        %2583 = vmatprep.subr.mxu0 0.0
        %2584 = vmatpush1.msra.mxu0 0.0
        %2585 = vmatprep.subr.mxu0 0.0
        %2586 = vmatpush1.msra.mxu0 0.0
        %2587 = vmatprep.subr.mxu0 0.0
        %2588 = vmatpush1.msra.mxu0 0.0
        %2589 = vmatprep.subr.mxu0 0.0
        %2590 = vmatpush1.msra.mxu0 0.0
        %2591 = vmatprep.subr.mxu0 0.0
        %2592 = vmatpush1.msra.mxu0 0.0
        %2593 = vmatprep.subr.mxu0 0.0
        %2594 = vmatpush1.msra.mxu0 0.0
        %2595 = vmatprep.subr.mxu0 0.0
        %2596 = vmatpush1.msra.mxu0 0.0
        %2597 = vmatprep.subr.mxu0 0.0
        %2598 = vmatpush1.msra.mxu0 0.0
        %2599 = vmatprep.subr.mxu0 0.0
        %2600 = vmatpush1.msra.mxu0 0.0
        %2601 = vmatprep.subr.mxu0 0.0
        %2602 = vmatpush1.msra.mxu0 0.0
        %2603 = vmatprep.subr.mxu0 0.0
        %2604 = vmatpush1.msra.mxu0 0.0
        %2605 = vmatprep.subr.mxu0 0.0
        %2606 = vmatpush1.msra.mxu0 0.0
        %2607 = vmatprep.subr.mxu0 0.0
        %2608 = vmatpush1.msra.mxu0 0.0
        %2609 = vmatprep.subr.mxu0 0.0
        %2610 = vmatpush1.msra.mxu0 0.0
        %2611 = vmatprep.subr.mxu0 0.0
        %2612 = vmatpush1.msra.mxu0 0.0
        %2613 = vmatprep.subr.mxu0 0.0
        %2614 = vmatpush1.msra.mxu0 0.0
        %2615 = vmatprep.subr.mxu0 0.0
        %2616 = vmatpush1.msra.mxu0 0.0
        %2617 = vmatprep.subr.mxu0 0.0
        %2618 = vmatpush1.msra.mxu0 0.0
        %2619 = vmatprep.subr.mxu0 0.0
        %2620 = vmatpush1.msra.mxu0 0.0
        %2621 = vmatprep.subr.mxu0 0.0
        %2622 = vmatpush1.msra.mxu0 0.0
        %2623 = vmatprep.subr.mxu0 0.0
        %2624 = vmatpush1.msra.mxu0 0.0
        %2625 = vmatprep.mubr.f32.mxu0 0.0
        %2626 = vmatmul.mubr.f32.gmra.mrb[0].mxu0 %v2559
        %v2627 = vpop.f32.mrb[0].mxu0
        %v2628 = vadd.f32 0.0, %v2627
        %v2629 = vpop.f32.mrb[0].mxu0
        %2630 = vdwg.mxu0
        %v2631 = vadd.f32 %v2557, %v2628
        %v2633 = vsel %vm315, %v2119, 0
        %2635 = vmatprep.subr.mxu0 0.0
        %2636 = vmatpush1.msra.mxu0 %v298
        %2637 = vmatprep.subr.mxu0 0.0
        %2638 = vmatpush1.msra.mxu0 %v299
        %2639 = vmatprep.subr.mxu0 0.0
        %2640 = vmatpush1.msra.mxu0 0.0
        %2641 = vmatprep.subr.mxu0 0.0
        %2642 = vmatpush1.msra.mxu0 0.0
        %2643 = vmatprep.subr.mxu0 0.0
        %2644 = vmatpush1.msra.mxu0 0.0
        %2645 = vmatprep.subr.mxu0 0.0
        %2646 = vmatpush1.msra.mxu0 0.0
        %2647 = vmatprep.subr.mxu0 0.0
        %2648 = vmatpush1.msra.mxu0 0.0
        %2649 = vmatprep.subr.mxu0 0.0
        %2650 = vmatpush1.msra.mxu0 0.0
        %2651 = vmatprep.subr.mxu0 0.0
        %2652 = vmatpush1.msra.mxu0 0.0
        %2653 = vmatprep.subr.mxu0 0.0
        %2654 = vmatpush1.msra.mxu0 0.0
        %2655 = vmatprep.subr.mxu0 0.0
        %2656 = vmatpush1.msra.mxu0 0.0
        %2657 = vmatprep.subr.mxu0 0.0
        %2658 = vmatpush1.msra.mxu0 0.0
        %2659 = vmatprep.subr.mxu0 0.0
        %2660 = vmatpush1.msra.mxu0 0.0
        %2661 = vmatprep.subr.mxu0 0.0
        %2662 = vmatpush1.msra.mxu0 0.0
        %2663 = vmatprep.subr.mxu0 0.0
        %2664 = vmatpush1.msra.mxu0 0.0
        %2665 = vmatprep.subr.mxu0 0.0
        %2666 = vmatpush1.msra.mxu0 0.0
        %2667 = vmatprep.subr.mxu0 0.0
        %2668 = vmatpush1.msra.mxu0 0.0
        %2669 = vmatprep.subr.mxu0 0.0
        %2670 = vmatpush1.msra.mxu0 0.0
        %2671 = vmatprep.subr.mxu0 0.0
        %2672 = vmatpush1.msra.mxu0 0.0
        %2673 = vmatprep.subr.mxu0 0.0
        %2674 = vmatpush1.msra.mxu0 0.0
        %2675 = vmatprep.subr.mxu0 0.0
        %2676 = vmatpush1.msra.mxu0 0.0
        %2677 = vmatprep.subr.mxu0 0.0
        %2678 = vmatpush1.msra.mxu0 0.0
        %2679 = vmatprep.subr.mxu0 0.0
        %2680 = vmatpush1.msra.mxu0 0.0
        %2681 = vmatprep.subr.mxu0 0.0
        %2682 = vmatpush1.msra.mxu0 0.0
        %2683 = vmatprep.subr.mxu0 0.0
        %2684 = vmatpush1.msra.mxu0 0.0
        %2685 = vmatprep.subr.mxu0 0.0
        %2686 = vmatpush1.msra.mxu0 0.0
        %2687 = vmatprep.subr.mxu0 0.0
        %2688 = vmatpush1.msra.mxu0 0.0
        %2689 = vmatprep.subr.mxu0 0.0
        %2690 = vmatpush1.msra.mxu0 0.0
        %2691 = vmatprep.subr.mxu0 0.0
        %2692 = vmatpush1.msra.mxu0 0.0
        %2693 = vmatprep.subr.mxu0 0.0
        %2694 = vmatpush1.msra.mxu0 0.0
        %2695 = vmatprep.subr.mxu0 0.0
        %2696 = vmatpush1.msra.mxu0 0.0
        %2697 = vmatprep.subr.mxu0 0.0
        %2698 = vmatpush1.msra.mxu0 0.0
        %2699 = vmatprep.mubr.f32.mxu0 0.0
        %2700 = vmatmul.mubr.f32.gmra.mrb[0].mxu0 %v2633
        %v2701 = vpop.f32.mrb[0].mxu0
        %v2702 = vadd.f32 0.0, %v2701
        %v2703 = vpop.f32.mrb[0].mxu0
        %2704 = vdwg.mxu0
        %v2705 = vadd.f32 %v2631, %v2702
        %v2706 = vmax.f32 %v2415, %v2705
        %2707 = vst.msk [vmem:[#allocation2] sm:$0xff] %vm903, %v2706
        %v2708 = vld [vmem:[#allocation2] ss:$2 sm:$0xf]
        %v2709 = vld [vmem:[%s906] ss:$2 sm:$0xf]
        %v2710 = vmax.f32 %v2708, %v2709
        %s2711 = scalar_lea.vmem %s257, 12 [#allocation3]
        %2712 = vst.msk [vmem:[%s2711] sm:$0xf] %vm909, %v2710
        %s2713 = sand.u32 %s138, 1
        %s2714 = scalar_lea.sflag [#allocation4], %s2713
        %s2715 = sand.u32 %s138, 1
        %s2716 = smul.addr %s2715, 16
        %s2717 = scalar_lea.vmem [#allocation3], %s2716
        // Predicated region
        $region37: #{downsampling_block.1} parent=35 // pred_check
          %p2718 = pneg %p148
        $region38: #{downsampling_block.1} parent=35 // pred_check_branch
          %2720 = sbr.rel (%p2718) target = $region40
        $region39: #{downsampling_block.1} parent=35 // pred_region
          %s2721 = smul.u32 4, %s23
          %s2723 = ssub.s32 256, 256
          %2724 = vsyncadd %s2714, %s2723
          %s2725 = smul.addr %s22, 4
          %s2726 = sadd.s32 %s2721, %s2725
          %s2727 = smul.addr %s2726, 64
          %s2728 = scalar_lea.hbm %s4, %s2727
          %s2729 = sshll.u32 %s2717, 4
          %s2730 = int_to_ptr.vmem [resolvable:$true] %s2729
          %2735 = dma.vmem_to_hbm [thread:$0]  %s2730, 256, %s2728, %s2714, 64, 64, 4
        $region40: #{downsampling_block.1} parent=35 // pred_fallthru
          _
      $region36: #{downsampling_block.1} parent=5 // pred_fallthru
        _
      %p2736 = scmp.le.s32.totalorder 2, %s13
      // Predicated region
      $region41: #{downsampling_block.1} parent=5 // pred_check
        %p2737 = pneg %p2736
      $region42: #{downsampling_block.1} parent=5 // pred_check_branch
        %2739 = sbr.rel (%p2737) target = $region44
      $region43: #{downsampling_block.1} parent=5 // pred_region
        %s2740 = ssub.s32 %s13, 2
        // Predicated region
        $region45: #{downsampling_block.1} parent=43 // pred_check
          %p2741 = pneg %p154
        $region46: #{downsampling_block.1} parent=43 // pred_check_branch
          %2743 = sbr.rel (%p2741) target = $region48
        $region47: #{downsampling_block.1} parent=43 // pred_region
          %s2744 = sand.u32 %s139, 1
          %s2745 = scalar_lea.sflag [#allocation4], %s2744
          %s2746 = sand.u32 %s139, 1
          %s2747 = smul.addr %s2746, 16
          %s2748 = scalar_lea.vmem [#allocation3], %s2747
          %2749 = dma.done %s2745, 256
        $region48: #{downsampling_block.1} parent=43 // pred_fallthru
          _
      $region44: #{downsampling_block.1} parent=5 // pred_fallthru
        _
    $region6: #{downsampling_block.1} parent=1 // loop_footer
      %s17 = sadd.s32 1, %s13
    $region7: #{downsampling_block.1} parent=1 // loop_footer_branch
      %12 = sbr.rel target = $region3
    $region8: #{downsampling_block.1} parent=1 // loop_exit
      _
    %2750 = vsyncpa [#allocation4], 1
    %s2751 = scalar_lea.sflag [#allocation4], 1
    %2752 = vsyncpa %s2751, 1

</llo_original>
